<compile_context>
chip_gen: v6e
topology: v6e:2x2x1
jax: 0.10.0
libtpu: 0.0.40
codegen_flags: <defaults>
</compile_context>

<pallas_src>
import jax
import jax.numpy as jnp
from jax.experimental import pallas as pl
from jax.experimental.pallas import tpu as pltpu

NEG_BIG = -1e30  # bias for padded logit lanes -> exp() underflows to exactly 0


# ------------------------------ fused kernel -------------------------------

def _lenet_kernel(p1_ref, w1_ref, b1_ref, w2_ref, b2_ref,
                  fc1w_ref, fc1b_ref, fc2w_ref, fc2b_ref, out_ref):
    f32 = jnp.float32

    # ---- conv1 (1->20ch, 5x5 valid) as ONE MXU matmul.
    # p1[p, d*32 + t] = pixel for pooled position p = 12*ph+pw, sub-position d = 2*dy+dx,
    # tap t = 5*kh+kw.  w1 is block-diagonal (4 identical 32x32 blocks), so
    # c1[p, d*32 + c] = conv1 output at (2*ph+dy, 2*pw+dx), channel c.
    c1 = jnp.dot(p1_ref[...], w1_ref[...], preferred_element_type=f32) + b1_ref[...]   # (144,128)

    # ---- maxpool1 (2x2/stride 2) fused: max over the 4 sub-position lane blocks ----
    pool1 = jnp.maximum(jnp.maximum(c1[:, 0:32], c1[:, 32:64]),
                        jnp.maximum(c1[:, 64:96], c1[:, 96:128]))                      # (144,32)

    # ---- conv2 (20->50ch, 5x5 valid) as ONE K=800 MXU matmul ----
    # In-register im2col: horizontal taps go to lanes first (5 shifted slices), then
    # vertical taps (5 more shifted slices).  patches2[j, (5*kh+kw)*32 + c] =
    # pool1[j + 12*kh + kw, c] with j = 12*oh2 + ow2 (rows with ow2 >= 8 are junk and
    # never selected downstream).
    pool1p = jnp.concatenate([pool1, jnp.zeros((8, 32), f32)], axis=0)                 # (152,32)
    hexp = jnp.concatenate([pool1p[kw:kw + 144, :] for kw in range(5)], axis=1)        # (144,160)
    patches2 = jnp.concatenate([hexp[12 * kh:12 * kh + 96, :] for kh in range(5)],
                               axis=1)                                                 # (96,800)
    c2 = jnp.dot(patches2, w2_ref[...], preferred_element_type=f32) + b2_ref[...]      # (96,64)

    # ---- maxpool2 (2x2/stride 2): pooled value for (qh,qw) lives at row 24*qh + 2*qw ----
    ma = jnp.maximum(c2[0:95, :], c2[1:96, :])                                         # (95,64)
    mb = jnp.maximum(ma[0:83, :], ma[12:95, :])                                        # (83,64)

    # ---- flatten (NCHW flatten folded into the fc1 weight layout) + fc1 + ReLU ----
    rows = [mb[24 * qh + 2 * qw:24 * qh + 2 * qw + 1, :]
            for qh in range(4) for qw in range(4)]
    flat = jnp.concatenate(rows, axis=1)                                               # (1,1024)
    act = jnp.dot(flat, fc1w_ref[...], preferred_element_type=f32) + fc1b_ref[...]     # (1,512)
    act = jnp.maximum(act, 0.0)
    # TODO(synk): nn.Dropout(p=0.5) is identity in eval mode; training-mode dropout
    # (PyTorch RNG stream) is not reproduced here.

    # ---- fc2 + softmax (padded logit lanes carry a -1e30 bias -> exp == 0) ----
    logits = jnp.dot(act, fc2w_ref[...], preferred_element_type=f32) + fc2b_ref[...]   # (1,128)
    mx = jnp.max(logits, axis=-1, keepdims=True)
    e = jnp.exp(logits - mx)
    probs = e / jnp.sum(e, axis=-1, keepdims=True)
    out_ref[...] = jnp.broadcast_to(probs, (8, 128))       # full-tile, lane-dense store


# ------------------------------- parameters --------------------------------

def init_params(key):
    """PyTorch-layout parameters (same shapes/init style as TorchLeNet)."""
    ks = jax.random.split(key, 8)

    def u(k, shape, fan_in):
        bound = 1.0 / jnp.sqrt(float(fan_in))
        return jax.random.uniform(k, shape, jnp.float32, -bound, bound)

    return {
        "conv1_w": u(ks[0], (20, 1, 5, 5), 1 * 5 * 5),
        "conv1_b": u(ks[1], (20,), 1 * 5 * 5),
        "conv2_w": u(ks[2], (50, 20, 5, 5), 20 * 5 * 5),
        "conv2_b": u(ks[3], (50,), 20 * 5 * 5),
        "fc1_w": u(ks[4], (500, 800), 800),
        "fc1_b": u(ks[5], (500,), 800),
        "fc2_w": u(ks[6], (10, 500), 500),
        "fc2_b": u(ks[7], (10,), 500),
    }


def prepare_params(params):
    """One-time re-layout / zero-padding of the PyTorch weights for the kernel."""
    f32 = jnp.float32

    # conv1: (25, 20) block [t = 5kh+kw, c], replicated block-diagonally 4x -> (128,128)
    w1 = params["conv1_w"].astype(f32).reshape(20, 25).T                    # (25, 20)
    blk = jnp.zeros((32, 32), f32).at[:25, :20].set(w1)
    w1_big = jnp.zeros((128, 128), f32)
    for d in range(4):
        w1_big = w1_big.at[d * 32:(d + 1) * 32, d * 32:(d + 1) * 32].set(blk)
    b1_blk = jnp.zeros((1, 32), f32).at[0, :20].set(params["conv1_b"].astype(f32))
    b1_big = jnp.tile(b1_blk, (1, 4))                                       # (1, 128)

    # conv2: (800, 64) with row index t*32 + c_in
    w2 = jnp.transpose(params["conv2_w"].astype(f32), (2, 3, 1, 0)).reshape(25, 20, 50)
    w2k = jnp.zeros((25, 32, 64), f32).at[:, :20, :50].set(w2).reshape(800, 64)
    b2k = jnp.zeros((1, 64), f32).at[0, :50].set(params["conv2_b"].astype(f32))

    # fc1: (1024, 512) with row index p*64 + c ; PyTorch flatten index = c*16 + p
    fw = params["fc1_w"].astype(f32).reshape(500, 50, 16)                   # [j, c, p]
    fw = jnp.transpose(fw, (2, 1, 0))                                       # [p, c, j]
    fc1k = jnp.zeros((16, 64, 512), f32).at[:, :50, :500].set(fw).reshape(1024, 512)
    fc1b = jnp.zeros((1, 512), f32).at[0, :500].set(params["fc1_b"].astype(f32))

    # fc2: (512, 128) pre-transposed; padded logit lanes get a -1e30 bias
    fc2k = jnp.zeros((512, 128), f32).at[:500, :10].set(params["fc2_w"].astype(f32).T)
    fc2b = jnp.full((1, 128), NEG_BIG, f32).at[0, :10].set(params["fc2_b"].astype(f32))

    return {"w1": w1_big, "b1": b1_big, "w2": w2k, "b2": b2k,
            "fc1w": fc1k, "fc1b": fc1b, "fc2w": fc2k, "fc2b": fc2b}


# --------------------------------- forward ---------------------------------

def _make_patches1(x):
    """(B,1,28,28) -> (B,144,128): [b, 12*ph+pw, (2*dy+dx)*32 + (5*kh+kw)] im2col."""
    b = x.shape[0]
    img = x[:, 0].astype(jnp.float32)                                       # (B, 28, 28)
    taps = jnp.stack([img[:, kh:kh + 24, kw:kw + 24]
                      for kh in range(5) for kw in range(5)], axis=-1)      # (B,24,24,25)
    taps = jnp.pad(taps, ((0, 0), (0, 0), (0, 0), (0, 7)))                  # (B,24,24,32)
    taps = taps.reshape(b, 12, 2, 12, 2, 32)                                # oh=2ph+dy, ow=2pw+dx
    return jnp.transpose(taps, (0, 1, 3, 2, 4, 5)).reshape(b, 144, 128)


def _const_spec(shape):
    return pl.BlockSpec(shape, lambda *_: (0,) * len(shape))


@jax.jit
def lenet_forward(prepped, x):
    # x: (B, 1, 28, 28).  Each image is processed independently (matches the torch
    # forward, which assumes batch 1 via its reshape to (1, -1)).
    b = x.shape[0]
    patches1 = _make_patches1(x)
    out = pl.pallas_call(
        _lenet_kernel,
        out_shape=jax.ShapeDtypeStruct((b, 8, 128), jnp.float32),
        grid=(b,),
        in_specs=[
            pl.BlockSpec((None, 144, 128), lambda i: (i, 0, 0)),   # per-image patches
            _const_spec((128, 128)), _const_spec((1, 128)),        # conv1 w / b (resident)
            _const_spec((800, 64)), _const_spec((1, 64)),          # conv2 w / b
            _const_spec((1024, 512)), _const_spec((1, 512)),       # fc1  w / b
            _const_spec((512, 128)), _const_spec((1, 128)),        # fc2  w / b
        ],
        out_specs=pl.BlockSpec((None, 8, 128), lambda i: (i, 0, 0)),
        compiler_params=pltpu.CompilerParams(dimension_semantics=("parallel",)),
    )(patches1,
      prepped["w1"], prepped["b1"], prepped["w2"], prepped["b2"],
      prepped["fc1w"], prepped["fc1b"], prepped["fc2w"], prepped["fc2b"])
    return out[:, 0, :10]


# ------------------------------ pure-JAX reference --------------------------

def _reference_single(params, xi):
    def conv_valid(inp, w, b):                      # inp (C,H,W), w (O,C,KH,KW)
        o, c, kh, kw = w.shape
        h, wd = inp.shape[1], inp.shape[2]
        oh, ow = h - kh + 1, wd - kw + 1
        patches = jnp.stack([inp[:, i:i + oh, j:j + ow]
                             for i in range(kh) for j in range(kw)], axis=1)
        patches = patches.reshape(c * kh * kw, oh * ow)
        y = w.reshape(o, c * kh * kw) @ patches + b[:, None]
        return y.reshape(o, oh, ow)

    def maxpool2(z):
        c, h, wd = z.shape
        return z.reshape(c, h // 2, 2, wd // 2, 2).max(axis=(2, 4))

    h = conv_valid(xi, params["conv1_w"], params["conv1_b"])
    h = maxpool2(h)
    h = conv_valid(h, params["conv2_w"], params["conv2_b"])
    h = maxpool2(h)
    h = h.reshape(1, -1)
    h = jnp.maximum(h @ params["fc1_w"].T + params["fc1_b"], 0.0)
    h = h @ params["fc2_w"].T + params["fc2_b"]
    h = h - jnp.max(h, axis=1, keepdims=True)
    e = jnp.exp(h)
    return (e / jnp.sum(e, axis=1, keepdims=True))[0]


def lenet_reference(params, x):
    return jax.vmap(lambda xi: _reference_single(params, xi))(x)


if __name__ == "__main__":
    key = jax.random.PRNGKey(0)
    pkey, xkey = jax.random.split(key)
    params = init_params(pkey)
    prepped = prepare_params(params)

    B = 4
    x = jax.random.normal(xkey, (B, 1, 28, 28), jnp.float32)

    out = jax.block_until_ready(lenet_forward(prepped, x))

    with jax.default_matmul_precision("highest"):
        ref = lenet_reference(params, x)

    assert out.shape == (B, 10), out.shape
    assert bool(jnp.allclose(jnp.sum(out, axis=-1), 1.0, atol=1e-4)), jnp.sum(out, axis=-1)
    assert bool(jnp.allclose(out, ref, atol=2e-3)), (out, ref)
    print("KERNEL_OK")
</pallas_src>

<mosaic_0001>
module attributes {stable_mosaic.version = 11 : i64} {
  func.func @_lenet_kernel(%arg0: i32, %arg1: memref<1x144x128xf32, #tpu.memory_space<vmem>>, %arg2: memref<128x128xf32, #tpu.memory_space<vmem>>, %arg3: memref<1x128xf32, #tpu.memory_space<vmem>>, %arg4: memref<800x64xf32, #tpu.memory_space<vmem>>, %arg5: memref<1x64xf32, #tpu.memory_space<vmem>>, %arg6: memref<1024x512xf32, #tpu.memory_space<vmem>>, %arg7: memref<1x512xf32, #tpu.memory_space<vmem>>, %arg8: memref<512x128xf32, #tpu.memory_space<vmem>>, %arg9: memref<1x128xf32, #tpu.memory_space<vmem>>, %arg10: memref<1x8x128xf32, #tpu.memory_space<vmem>>) attributes {dimension_semantics = [#tpu.dimension_semantics<parallel>], iteration_bounds = array<i64: 4>, scalar_prefetch = 0 : i64, scratch_operands = 0 : i64, tpu.core_type = #tpu.core_type<tc>, window_params = [{transform_indices = @transform_0, window_bounds = array<i64: 1, 144, 128>}, {pipeline_mode = #tpu.pipeline_mode<synchronous>, transform_indices = @transform_1, window_bounds = array<i64: 128, 128>}, {pipeline_mode = #tpu.pipeline_mode<synchronous>, transform_indices = @transform_2, window_bounds = array<i64: 1, 128>}, {pipeline_mode = #tpu.pipeline_mode<synchronous>, transform_indices = @transform_3, window_bounds = array<i64: 800, 64>}, {pipeline_mode = #tpu.pipeline_mode<synchronous>, transform_indices = @transform_4, window_bounds = array<i64: 1, 64>}, {pipeline_mode = #tpu.pipeline_mode<synchronous>, transform_indices = @transform_5, window_bounds = array<i64: 1024, 512>}, {pipeline_mode = #tpu.pipeline_mode<synchronous>, transform_indices = @transform_6, window_bounds = array<i64: 1, 512>}, {pipeline_mode = #tpu.pipeline_mode<synchronous>, transform_indices = @transform_7, window_bounds = array<i64: 512, 128>}, {pipeline_mode = #tpu.pipeline_mode<synchronous>, transform_indices = @transform_8, window_bounds = array<i64: 1, 128>}, {transform_indices = @transform_9, window_bounds = array<i64: 1, 8, 128>}]} {
    %c0 = arith.constant 0 : index
    %c0_0 = arith.constant 0 : index
    %c0_1 = arith.constant 0 : index
    %0 = vector.load %arg1[%c0, %c0_0, %c0_1] : memref<1x144x128xf32, #tpu.memory_space<vmem>>, vector<1x144x128xf32>
    %1 = vector.shape_cast %0 : vector<1x144x128xf32> to vector<144x128xf32>
    %c0_2 = arith.constant 0 : index
    %c0_3 = arith.constant 0 : index
    %2 = vector.load %arg2[%c0_2, %c0_3] : memref<128x128xf32, #tpu.memory_space<vmem>>, vector<128x128xf32>
    %cst = arith.constant dense<0.000000e+00> : vector<144x128xf32>
    %3 = tpu.matmul %1, %2, %cst {dimension_numbers = #tpu.dot_dimension_numbers<[1], [0], [0], [1], [0, 0, 1, 1], [], []>} : vector<144x128xf32>, vector<128x128xf32>, vector<144x128xf32> -> vector<144x128xf32>
    %c0_4 = arith.constant 0 : index
    %c0_5 = arith.constant 0 : index
    %4 = vector.load %arg3[%c0_4, %c0_5] : memref<1x128xf32, #tpu.memory_space<vmem>>, vector<1x128xf32>
    %5 = vector.broadcast %4 : vector<1x128xf32> to vector<144x128xf32>
    %6 = arith.addf %3, %5 : vector<144x128xf32>
    %7 = vector.extract_strided_slice %6 {offsets = [0, 0], sizes = [144, 32], strides = [1, 1]} : vector<144x128xf32> to vector<144x32xf32>
    %8 = vector.extract_strided_slice %6 {offsets = [0, 32], sizes = [144, 32], strides = [1, 1]} : vector<144x128xf32> to vector<144x32xf32>
    %9 = arith.maximumf %7, %8 : vector<144x32xf32>
    %10 = vector.extract_strided_slice %6 {offsets = [0, 64], sizes = [144, 32], strides = [1, 1]} : vector<144x128xf32> to vector<144x32xf32>
    %11 = vector.extract_strided_slice %6 {offsets = [0, 96], sizes = [144, 32], strides = [1, 1]} : vector<144x128xf32> to vector<144x32xf32>
    %12 = arith.maximumf %10, %11 : vector<144x32xf32>
    %13 = arith.maximumf %9, %12 : vector<144x32xf32>
    %cst_6 = arith.constant 0.000000e+00 : f32
    %14 = vector.broadcast %cst_6 : f32 to vector<8x32xf32>
    %15 = tpu.concatenate %13, %14 in 0 : vector<144x32xf32>, vector<8x32xf32> -> vector<152x32xf32>
    %16 = vector.extract_strided_slice %15 {offsets = [0, 0], sizes = [144, 32], strides = [1, 1]} : vector<152x32xf32> to vector<144x32xf32>
    %17 = vector.extract_strided_slice %15 {offsets = [1, 0], sizes = [144, 32], strides = [1, 1]} : vector<152x32xf32> to vector<144x32xf32>
    %18 = vector.extract_strided_slice %15 {offsets = [2, 0], sizes = [144, 32], strides = [1, 1]} : vector<152x32xf32> to vector<144x32xf32>
    %19 = vector.extract_strided_slice %15 {offsets = [3, 0], sizes = [144, 32], strides = [1, 1]} : vector<152x32xf32> to vector<144x32xf32>
    %20 = vector.extract_strided_slice %15 {offsets = [4, 0], sizes = [144, 32], strides = [1, 1]} : vector<152x32xf32> to vector<144x32xf32>
    %21 = tpu.concatenate %16, %17, %18, %19, %20 in 1 : vector<144x32xf32>, vector<144x32xf32>, vector<144x32xf32>, vector<144x32xf32>, vector<144x32xf32> -> vector<144x160xf32>
    %22 = vector.extract_strided_slice %21 {offsets = [0, 0], sizes = [96, 160], strides = [1, 1]} : vector<144x160xf32> to vector<96x160xf32>
    %23 = vector.extract_strided_slice %21 {offsets = [12, 0], sizes = [96, 160], strides = [1, 1]} : vector<144x160xf32> to vector<96x160xf32>
    %24 = vector.extract_strided_slice %21 {offsets = [24, 0], sizes = [96, 160], strides = [1, 1]} : vector<144x160xf32> to vector<96x160xf32>
    %25 = vector.extract_strided_slice %21 {offsets = [36, 0], sizes = [96, 160], strides = [1, 1]} : vector<144x160xf32> to vector<96x160xf32>
    %26 = vector.extract_strided_slice %21 {offsets = [48, 0], sizes = [96, 160], strides = [1, 1]} : vector<144x160xf32> to vector<96x160xf32>
    %27 = tpu.concatenate %22, %23, %24, %25, %26 in 1 : vector<96x160xf32>, vector<96x160xf32>, vector<96x160xf32>, vector<96x160xf32>, vector<96x160xf32> -> vector<96x800xf32>
    %c0_7 = arith.constant 0 : index
    %c0_8 = arith.constant 0 : index
    %28 = vector.load %arg4[%c0_7, %c0_8] : memref<800x64xf32, #tpu.memory_space<vmem>>, vector<800x64xf32>
    %cst_9 = arith.constant dense<0.000000e+00> : vector<96x64xf32>
    %29 = tpu.matmul %27, %28, %cst_9 {dimension_numbers = #tpu.dot_dimension_numbers<[1], [0], [0], [1], [0, 0, 1, 1], [], []>} : vector<96x800xf32>, vector<800x64xf32>, vector<96x64xf32> -> vector<96x64xf32>
    %c0_10 = arith.constant 0 : index
    %c0_11 = arith.constant 0 : index
    %30 = vector.load %arg5[%c0_10, %c0_11] : memref<1x64xf32, #tpu.memory_space<vmem>>, vector<1x64xf32>
    %31 = vector.broadcast %30 : vector<1x64xf32> to vector<96x64xf32>
    %32 = arith.addf %29, %31 : vector<96x64xf32>
    %33 = vector.extract_strided_slice %32 {offsets = [0, 0], sizes = [95, 64], strides = [1, 1]} : vector<96x64xf32> to vector<95x64xf32>
    %34 = vector.extract_strided_slice %32 {offsets = [1, 0], sizes = [95, 64], strides = [1, 1]} : vector<96x64xf32> to vector<95x64xf32>
    %35 = arith.maximumf %33, %34 : vector<95x64xf32>
    %36 = vector.extract_strided_slice %35 {offsets = [0, 0], sizes = [83, 64], strides = [1, 1]} : vector<95x64xf32> to vector<83x64xf32>
    %37 = vector.extract_strided_slice %35 {offsets = [12, 0], sizes = [83, 64], strides = [1, 1]} : vector<95x64xf32> to vector<83x64xf32>
    %38 = arith.maximumf %36, %37 : vector<83x64xf32>
    %39 = vector.extract_strided_slice %38 {offsets = [0, 0], sizes = [1, 64], strides = [1, 1]} : vector<83x64xf32> to vector<1x64xf32>
    %40 = vector.extract_strided_slice %38 {offsets = [2, 0], sizes = [1, 64], strides = [1, 1]} : vector<83x64xf32> to vector<1x64xf32>
    %41 = vector.extract_strided_slice %38 {offsets = [4, 0], sizes = [1, 64], strides = [1, 1]} : vector<83x64xf32> to vector<1x64xf32>
    %42 = vector.extract_strided_slice %38 {offsets = [6, 0], sizes = [1, 64], strides = [1, 1]} : vector<83x64xf32> to vector<1x64xf32>
    %43 = vector.extract_strided_slice %38 {offsets = [24, 0], sizes = [1, 64], strides = [1, 1]} : vector<83x64xf32> to vector<1x64xf32>
    %44 = vector.extract_strided_slice %38 {offsets = [26, 0], sizes = [1, 64], strides = [1, 1]} : vector<83x64xf32> to vector<1x64xf32>
    %45 = vector.extract_strided_slice %38 {offsets = [28, 0], sizes = [1, 64], strides = [1, 1]} : vector<83x64xf32> to vector<1x64xf32>
    %46 = vector.extract_strided_slice %38 {offsets = [30, 0], sizes = [1, 64], strides = [1, 1]} : vector<83x64xf32> to vector<1x64xf32>
    %47 = vector.extract_strided_slice %38 {offsets = [48, 0], sizes = [1, 64], strides = [1, 1]} : vector<83x64xf32> to vector<1x64xf32>
    %48 = vector.extract_strided_slice %38 {offsets = [50, 0], sizes = [1, 64], strides = [1, 1]} : vector<83x64xf32> to vector<1x64xf32>
    %49 = vector.extract_strided_slice %38 {offsets = [52, 0], sizes = [1, 64], strides = [1, 1]} : vector<83x64xf32> to vector<1x64xf32>
    %50 = vector.extract_strided_slice %38 {offsets = [54, 0], sizes = [1, 64], strides = [1, 1]} : vector<83x64xf32> to vector<1x64xf32>
    %51 = vector.extract_strided_slice %38 {offsets = [72, 0], sizes = [1, 64], strides = [1, 1]} : vector<83x64xf32> to vector<1x64xf32>
    %52 = vector.extract_strided_slice %38 {offsets = [74, 0], sizes = [1, 64], strides = [1, 1]} : vector<83x64xf32> to vector<1x64xf32>
    %53 = vector.extract_strided_slice %38 {offsets = [76, 0], sizes = [1, 64], strides = [1, 1]} : vector<83x64xf32> to vector<1x64xf32>
    %54 = vector.extract_strided_slice %38 {offsets = [78, 0], sizes = [1, 64], strides = [1, 1]} : vector<83x64xf32> to vector<1x64xf32>
    %55 = tpu.concatenate %39, %40, %41, %42, %43, %44, %45, %46, %47, %48, %49, %50, %51, %52, %53, %54 in 1 : vector<1x64xf32>, vector<1x64xf32>, vector<1x64xf32>, vector<1x64xf32>, vector<1x64xf32>, vector<1x64xf32>, vector<1x64xf32>, vector<1x64xf32>, vector<1x64xf32>, vector<1x64xf32>, vector<1x64xf32>, vector<1x64xf32>, vector<1x64xf32>, vector<1x64xf32>, vector<1x64xf32>, vector<1x64xf32> -> vector<1x1024xf32>
    %c0_12 = arith.constant 0 : index
    %c0_13 = arith.constant 0 : index
    %56 = vector.load %arg6[%c0_12, %c0_13] : memref<1024x512xf32, #tpu.memory_space<vmem>>, vector<1024x512xf32>
    %cst_14 = arith.constant dense<0.000000e+00> : vector<1x512xf32>
    %57 = tpu.matmul %55, %56, %cst_14 {dimension_numbers = #tpu.dot_dimension_numbers<[1], [0], [0], [1], [0, 0, 1, 1], [], []>} : vector<1x1024xf32>, vector<1024x512xf32>, vector<1x512xf32> -> vector<1x512xf32>
    %c0_15 = arith.constant 0 : index
    %c0_16 = arith.constant 0 : index
    %58 = vector.load %arg7[%c0_15, %c0_16] : memref<1x512xf32, #tpu.memory_space<vmem>>, vector<1x512xf32>
    %59 = arith.addf %57, %58 : vector<1x512xf32>
    %cst_17 = arith.constant 0.000000e+00 : f32
    %60 = vector.broadcast %cst_17 : f32 to vector<1x512xf32>
    %61 = arith.maximumf %59, %60 : vector<1x512xf32>
    %c0_18 = arith.constant 0 : index
    %c0_19 = arith.constant 0 : index
    %62 = vector.load %arg8[%c0_18, %c0_19] : memref<512x128xf32, #tpu.memory_space<vmem>>, vector<512x128xf32>
    %cst_20 = arith.constant dense<0.000000e+00> : vector<1x128xf32>
    %63 = tpu.matmul %61, %62, %cst_20 {dimension_numbers = #tpu.dot_dimension_numbers<[1], [0], [0], [1], [0, 0, 1, 1], [], []>} : vector<1x512xf32>, vector<512x128xf32>, vector<1x128xf32> -> vector<1x128xf32>
    %c0_21 = arith.constant 0 : index
    %c0_22 = arith.constant 0 : index
    %64 = vector.load %arg9[%c0_21, %c0_22] : memref<1x128xf32, #tpu.memory_space<vmem>>, vector<1x128xf32>
    %65 = arith.addf %63, %64 : vector<1x128xf32>
    %cst_23 = arith.constant dense<0xFF800000> : vector<1xf32>
    %66 = vector.multi_reduction <maximumf>, %65, %cst_23 [1] : vector<1x128xf32> to vector<1xf32>
    %67 = vector.shape_cast %66 : vector<1xf32> to vector<1x1xf32>
    %68 = vector.broadcast %67 : vector<1x1xf32> to vector<1x128xf32>
    %69 = arith.subf %65, %68 : vector<1x128xf32>
    %70 = math.exp %69 : vector<1x128xf32>
    %cst_24 = arith.constant dense<0.000000e+00> : vector<1xf32>
    %71 = vector.multi_reduction <add>, %70, %cst_24 [1] : vector<1x128xf32> to vector<1xf32>
    %72 = vector.shape_cast %71 : vector<1xf32> to vector<1x1xf32>
    %73 = vector.broadcast %72 : vector<1x1xf32> to vector<1x128xf32>
    %74 = arith.divf %70, %73 : vector<1x128xf32>
    %75 = vector.shape_cast %74 : vector<1x128xf32> to vector<1x128xf32>
    %76 = vector.broadcast %75 : vector<1x128xf32> to vector<8x128xf32>
    %c0_25 = arith.constant 0 : index
    %c0_26 = arith.constant 0 : index
    %c0_27 = arith.constant 0 : index
    %77 = vector.load %arg10[%c0_25, %c0_26, %c0_27] : memref<1x8x128xf32, #tpu.memory_space<vmem>>, vector<1x8x128xf32>
    %78 = vector.shape_cast %77 : vector<1x8x128xf32> to vector<8x128xf32>
    %79 = vector.shape_cast %76 : vector<8x128xf32> to vector<1x8x128xf32>
    tpu.vector_store %arg10[%c0_25, %c0_26, %c0_27], %79 {strides = array<i32>} : memref<1x8x128xf32, #tpu.memory_space<vmem>>, vector<1x8x128xf32>,
    return
  }
  func.func @transform_0(%arg0: i32) -> (i32, i32, i32) {
    %c0_i32 = arith.constant 0 : i32
    %c0_i32_0 = arith.constant 0 : i32
    %c0_i32_1 = arith.constant 0 : i32
    return %arg0, %c0_i32, %c0_i32_0 : i32, i32, i32
  }
  func.func @transform_1(%arg0: i32) -> (i32, i32) {
    %c0_i32 = arith.constant 0 : i32
    %c0_i32_0 = arith.constant 0 : i32
    %c0_i32_1 = arith.constant 0 : i32
    return %c0_i32, %c0_i32_0 : i32, i32
  }
  func.func @transform_2(%arg0: i32) -> (i32, i32) {
    %c0_i32 = arith.constant 0 : i32
    %c0_i32_0 = arith.constant 0 : i32
    %c0_i32_1 = arith.constant 0 : i32
    return %c0_i32, %c0_i32_0 : i32, i32
  }
  func.func @transform_3(%arg0: i32) -> (i32, i32) {
    %c0_i32 = arith.constant 0 : i32
    %c0_i32_0 = arith.constant 0 : i32
    %c0_i32_1 = arith.constant 0 : i32
    return %c0_i32, %c0_i32_0 : i32, i32
  }
  func.func @transform_4(%arg0: i32) -> (i32, i32) {
    %c0_i32 = arith.constant 0 : i32
    %c0_i32_0 = arith.constant 0 : i32
    %c0_i32_1 = arith.constant 0 : i32
    return %c0_i32, %c0_i32_0 : i32, i32
  }
  func.func @transform_5(%arg0: i32) -> (i32, i32) {
    %c0_i32 = arith.constant 0 : i32
    %c0_i32_0 = arith.constant 0 : i32
    %c0_i32_1 = arith.constant 0 : i32
    return %c0_i32, %c0_i32_0 : i32, i32
  }
  func.func @transform_6(%arg0: i32) -> (i32, i32) {
    %c0_i32 = arith.constant 0 : i32
    %c0_i32_0 = arith.constant 0 : i32
    %c0_i32_1 = arith.constant 0 : i32
    return %c0_i32, %c0_i32_0 : i32, i32
  }
  func.func @transform_7(%arg0: i32) -> (i32, i32) {
    %c0_i32 = arith.constant 0 : i32
    %c0_i32_0 = arith.constant 0 : i32
    %c0_i32_1 = arith.constant 0 : i32
    return %c0_i32, %c0_i32_0 : i32, i32
  }
  func.func @transform_8(%arg0: i32) -> (i32, i32) {
    %c0_i32 = arith.constant 0 : i32
    %c0_i32_0 = arith.constant 0 : i32
    %c0_i32_1 = arith.constant 0 : i32
    return %c0_i32, %c0_i32_0 : i32, i32
  }
  func.func @transform_9(%arg0: i32) -> (i32, i32, i32) {
    %c0_i32 = arith.constant 0 : i32
    %c0_i32_0 = arith.constant 0 : i32
    %c0_i32_1 = arith.constant 0 : i32
    return %arg0, %c0_i32, %c0_i32_0 : i32, i32, i32
  }
}

</mosaic_0001>

<llo_original>
// kernel: lenet_forward.1
$region0: #{lenet_forward.1}
  #allocation0 [shape = 'u32[]', space=smem, size = 0x4, offset = 0x4, fixed_abs, tag = 'smem constant byte address 0x4 - core index']
  #allocation1 [shape = 'u32[144,128]{1,0:T(1,128)}', space=vmem, size = 0x12000, scoped, tag = 'internal scratch']
  %s0 = inlined_call_operand.vmem [shape: f32[4,144,128], index: 0, kind: input, shape index: {}]
  %s1 = inlined_call_operand.vmem [shape: f32[128,128], index: 1, kind: input, shape index: {}]
  %s2 = inlined_call_operand.vmem [shape: f32[1,128], index: 2, kind: input, shape index: {}]
  %s3 = inlined_call_operand.vmem [shape: f32[800,64], index: 3, kind: input, shape index: {}]
  %s4 = inlined_call_operand.vmem [shape: f32[1,64], index: 4, kind: input, shape index: {}]
  %s5 = inlined_call_operand.vmem [shape: f32[1024,512], index: 5, kind: input, shape index: {}]
  %s6 = inlined_call_operand.vmem [shape: f32[1,512], index: 6, kind: input, shape index: {}]
  %s7 = inlined_call_operand.vmem [shape: f32[512,128], index: 7, kind: input, shape index: {}]
  %s8 = inlined_call_operand.vmem [shape: f32[1,128], index: 8, kind: input, shape index: {}]
  %s9 = inlined_call_operand.vmem [shape: f32[4,8,128], index: 9, kind: output, shape index: {}]
  %s10 = sld [smem:[#allocation0]]
  $region69: #{lenet_forward.1} parent=0
    _
  %s12 = ssub.s32 1, %s10
  %s13 = scalar_select 0, %s12, %s10
  loop: start=0, step=1, limit=6
  $region2: #{lenet_forward.1} parent=0 // loop_pre_header
    _
  $region3: #{lenet_forward.1} parent=0 // loop_header
    %s15 = sphi 0, %s19
    %p16 = scmp.ge.s32.totalorder %s15, 6
    %s25 = sphi 0, %s27
    %s28 = sphi 0, %s25
    %s29 = sphi 0, %s28
    %s45 = sphi 0, %s29
    %s49 = sphi 0, %s49
    %s51 = sphi 0, %s49
    %s52 = sphi 0, %s51
    %s66 = sphi 0, %s52
    %s70 = sphi 0, %s70
    %s72 = sphi 0, %s70
    %s73 = sphi 0, %s72
    %s87 = sphi 0, %s73
    %s91 = sphi 0, %s91
    %s93 = sphi 0, %s91
    %s94 = sphi 0, %s93
    %s108 = sphi 0, %s94
    %s112 = sphi 0, %s112
    %s114 = sphi 0, %s112
    %s115 = sphi 0, %s114
    %s129 = sphi 0, %s115
    %s133 = sphi 0, %s133
    %s135 = sphi 0, %s133
    %s136 = sphi 0, %s135
    %s150 = sphi 0, %s136
    %s154 = sphi 0, %s154
    %s156 = sphi 0, %s154
    %s157 = sphi 0, %s156
    %s171 = sphi 0, %s157
    %s175 = sphi 0, %s175
    %s177 = sphi 0, %s175
    %s178 = sphi 0, %s177
    %s192 = sphi 0, %s178
    %s196 = sphi 0, %s196
    %s198 = sphi 0, %s196
    %s199 = sphi 0, %s198
    %s213 = sphi 0, %s199
    %s219 = sphi 0, %s221
    %s222 = sphi 0, %s219
    %s223 = sphi 0, %s222
    %s239 = sphi 0, %s223
  $region4: #{lenet_forward.1} parent=0 // loop_header_branch
    %18 = sbr.rel (%p16) target = $region8
  $region5: #{lenet_forward.1} parent=0 // loop_body
    %s20 = ssub.s32 %s15, 1
    %s21 = ssub.s32 %s15, 2
    %s22 = sadd.s32 %s15, 1
    %s23 = ssub.s32 %s15, %s22
    %p24 = scmp.eq.s32.totalorder %s23, 0
    %s26 = sadd.s32 %s25, 1
    %s27 = scalar_select %p24, %s25, %s26
    %p30 = pneg %p24
    %p31 = scmp.eq.s32.totalorder %s15, 3
    %p32 = por %p30, %p31
    %p33 = scmp.ne.s32.totalorder %s25, %s28
    %p34 = scmp.eq.s32.totalorder %s15, 0
    %p35 = por %p33, %p34
    %p36 = scmp.ne.s32.totalorder %s25, %s28
    %p37 = scmp.eq.s32.totalorder %s20, 3
    %p38 = por %p36, %p37
    %p39 = scmp.ne.s32.totalorder %s28, %s29
    %p40 = scmp.eq.s32.totalorder %s20, 0
    %p41 = por %p39, %p40
    %p42 = scmp.ne.s32.totalorder %s28, %s29
    %p43 = scmp.eq.s32.totalorder %s21, 3
    %p44 = por %p42, %p43
    %p46 = scmp.ne.s32.totalorder %s29, %s45
    %p47 = scmp.eq.s32.totalorder %s21, 0
    %p48 = por %p46, %p47
    %s50 = sadd.s32 %s49, 1
    %p53 = scmp.eq.s32.totalorder %s15, 3
    %p54 = scmp.ne.s32.totalorder %s49, %s51
    %p55 = scmp.eq.s32.totalorder %s15, 0
    %p56 = por %p54, %p55
    %p57 = scmp.ne.s32.totalorder %s49, %s51
    %p58 = scmp.eq.s32.totalorder %s20, 3
    %p59 = por %p57, %p58
    %p60 = scmp.ne.s32.totalorder %s51, %s52
    %p61 = scmp.eq.s32.totalorder %s20, 0
    %p62 = por %p60, %p61
    %p63 = scmp.ne.s32.totalorder %s51, %s52
    %p64 = scmp.eq.s32.totalorder %s21, 3
    %p65 = por %p63, %p64
    %p67 = scmp.ne.s32.totalorder %s52, %s66
    %p68 = scmp.eq.s32.totalorder %s21, 0
    %p69 = por %p67, %p68
    %s71 = sadd.s32 %s70, 1
    %p74 = scmp.eq.s32.totalorder %s15, 3
    %p75 = scmp.ne.s32.totalorder %s70, %s72
    %p76 = scmp.eq.s32.totalorder %s15, 0
    %p77 = por %p75, %p76
    %p78 = scmp.ne.s32.totalorder %s70, %s72
    %p79 = scmp.eq.s32.totalorder %s20, 3
    %p80 = por %p78, %p79
    %p81 = scmp.ne.s32.totalorder %s72, %s73
    %p82 = scmp.eq.s32.totalorder %s20, 0
    %p83 = por %p81, %p82
    %p84 = scmp.ne.s32.totalorder %s72, %s73
    %p85 = scmp.eq.s32.totalorder %s21, 3
    %p86 = por %p84, %p85
    %p88 = scmp.ne.s32.totalorder %s73, %s87
    %p89 = scmp.eq.s32.totalorder %s21, 0
    %p90 = por %p88, %p89
    %s92 = sadd.s32 %s91, 1
    %p95 = scmp.eq.s32.totalorder %s15, 3
    %p96 = scmp.ne.s32.totalorder %s91, %s93
    %p97 = scmp.eq.s32.totalorder %s15, 0
    %p98 = por %p96, %p97
    %p99 = scmp.ne.s32.totalorder %s91, %s93
    %p100 = scmp.eq.s32.totalorder %s20, 3
    %p101 = por %p99, %p100
    %p102 = scmp.ne.s32.totalorder %s93, %s94
    %p103 = scmp.eq.s32.totalorder %s20, 0
    %p104 = por %p102, %p103
    %p105 = scmp.ne.s32.totalorder %s93, %s94
    %p106 = scmp.eq.s32.totalorder %s21, 3
    %p107 = por %p105, %p106
    %p109 = scmp.ne.s32.totalorder %s94, %s108
    %p110 = scmp.eq.s32.totalorder %s21, 0
    %p111 = por %p109, %p110
    %s113 = sadd.s32 %s112, 1
    %p116 = scmp.eq.s32.totalorder %s15, 3
    %p117 = scmp.ne.s32.totalorder %s112, %s114
    %p118 = scmp.eq.s32.totalorder %s15, 0
    %p119 = por %p117, %p118
    %p120 = scmp.ne.s32.totalorder %s112, %s114
    %p121 = scmp.eq.s32.totalorder %s20, 3
    %p122 = por %p120, %p121
    %p123 = scmp.ne.s32.totalorder %s114, %s115
    %p124 = scmp.eq.s32.totalorder %s20, 0
    %p125 = por %p123, %p124
    %p126 = scmp.ne.s32.totalorder %s114, %s115
    %p127 = scmp.eq.s32.totalorder %s21, 3
    %p128 = por %p126, %p127
    %p130 = scmp.ne.s32.totalorder %s115, %s129
    %p131 = scmp.eq.s32.totalorder %s21, 0
    %p132 = por %p130, %p131
    %s134 = sadd.s32 %s133, 1
    %p137 = scmp.eq.s32.totalorder %s15, 3
    %p138 = scmp.ne.s32.totalorder %s133, %s135
    %p139 = scmp.eq.s32.totalorder %s15, 0
    %p140 = por %p138, %p139
    %p141 = scmp.ne.s32.totalorder %s133, %s135
    %p142 = scmp.eq.s32.totalorder %s20, 3
    %p143 = por %p141, %p142
    %p144 = scmp.ne.s32.totalorder %s135, %s136
    %p145 = scmp.eq.s32.totalorder %s20, 0
    %p146 = por %p144, %p145
    %p147 = scmp.ne.s32.totalorder %s135, %s136
    %p148 = scmp.eq.s32.totalorder %s21, 3
    %p149 = por %p147, %p148
    %p151 = scmp.ne.s32.totalorder %s136, %s150
    %p152 = scmp.eq.s32.totalorder %s21, 0
    %p153 = por %p151, %p152
    %s155 = sadd.s32 %s154, 1
    %p158 = scmp.eq.s32.totalorder %s15, 3
    %p159 = scmp.ne.s32.totalorder %s154, %s156
    %p160 = scmp.eq.s32.totalorder %s15, 0
    %p161 = por %p159, %p160
    %p162 = scmp.ne.s32.totalorder %s154, %s156
    %p163 = scmp.eq.s32.totalorder %s20, 3
    %p164 = por %p162, %p163
    %p165 = scmp.ne.s32.totalorder %s156, %s157
    %p166 = scmp.eq.s32.totalorder %s20, 0
    %p167 = por %p165, %p166
    %p168 = scmp.ne.s32.totalorder %s156, %s157
    %p169 = scmp.eq.s32.totalorder %s21, 3
    %p170 = por %p168, %p169
    %p172 = scmp.ne.s32.totalorder %s157, %s171
    %p173 = scmp.eq.s32.totalorder %s21, 0
    %p174 = por %p172, %p173
    %s176 = sadd.s32 %s175, 1
    %p179 = scmp.eq.s32.totalorder %s15, 3
    %p180 = scmp.ne.s32.totalorder %s175, %s177
    %p181 = scmp.eq.s32.totalorder %s15, 0
    %p182 = por %p180, %p181
    %p183 = scmp.ne.s32.totalorder %s175, %s177
    %p184 = scmp.eq.s32.totalorder %s20, 3
    %p185 = por %p183, %p184
    %p186 = scmp.ne.s32.totalorder %s177, %s178
    %p187 = scmp.eq.s32.totalorder %s20, 0
    %p188 = por %p186, %p187
    %p189 = scmp.ne.s32.totalorder %s177, %s178
    %p190 = scmp.eq.s32.totalorder %s21, 3
    %p191 = por %p189, %p190
    %p193 = scmp.ne.s32.totalorder %s178, %s192
    %p194 = scmp.eq.s32.totalorder %s21, 0
    %p195 = por %p193, %p194
    %s197 = sadd.s32 %s196, 1
    %p200 = scmp.eq.s32.totalorder %s15, 3
    %p201 = scmp.ne.s32.totalorder %s196, %s198
    %p202 = scmp.eq.s32.totalorder %s15, 0
    %p203 = por %p201, %p202
    %p204 = scmp.ne.s32.totalorder %s196, %s198
    %p205 = scmp.eq.s32.totalorder %s20, 3
    %p206 = por %p204, %p205
    %p207 = scmp.ne.s32.totalorder %s198, %s199
    %p208 = scmp.eq.s32.totalorder %s20, 0
    %p209 = por %p207, %p208
    %p210 = scmp.ne.s32.totalorder %s198, %s199
    %p211 = scmp.eq.s32.totalorder %s21, 3
    %p212 = por %p210, %p211
    %p214 = scmp.ne.s32.totalorder %s199, %s213
    %p215 = scmp.eq.s32.totalorder %s21, 0
    %p216 = por %p214, %p215
    %s217 = ssub.s32 %s15, %s22
    %p218 = scmp.eq.s32.totalorder %s217, 0
    %s220 = sadd.s32 %s219, 1
    %s221 = scalar_select %p218, %s219, %s220
    %p224 = pneg %p218
    %p225 = scmp.eq.s32.totalorder %s15, 3
    %p226 = por %p224, %p225
    %p227 = scmp.ne.s32.totalorder %s219, %s222
    %p228 = scmp.eq.s32.totalorder %s15, 0
    %p229 = por %p227, %p228
    %p230 = scmp.ne.s32.totalorder %s219, %s222
    %p231 = scmp.eq.s32.totalorder %s20, 3
    %p232 = por %p230, %p231
    %p233 = scmp.ne.s32.totalorder %s222, %s223
    %p234 = scmp.eq.s32.totalorder %s20, 0
    %p235 = por %p233, %p234
    %p236 = scmp.ne.s32.totalorder %s222, %s223
    %p237 = scmp.eq.s32.totalorder %s21, 3
    %p238 = por %p236, %p237
    %p240 = scmp.ne.s32.totalorder %s223, %s239
    %p241 = scmp.eq.s32.totalorder %s21, 0
    %p242 = por %p240, %p241
    %p243 = scmp.le.s32.totalorder 1, %s15
    %p244 = scmp.lt.s32.totalorder %s15, 5
    %p245 = pnand %p243, %p244
    %p246 = pneg %p245
    // Predicated region
    $region9: #{lenet_forward.1} parent=5 // pred_check
      _
    $region10: #{lenet_forward.1} parent=5 // pred_check_branch
      %248 = sbr.rel (%p245) target = $region12
    $region11: #{lenet_forward.1} parent=5 // pred_region
      %s249 = ssub.s32 %s15, 1
      // Predicated region
      $region13: #{lenet_forward.1} parent=11 // pred_check
        %p250 = pneg %p62
      $region14: #{lenet_forward.1} parent=11 // pred_check_branch
        %252 = sbr.rel (%p250) target = $region16
      $region15: #{lenet_forward.1} parent=11 // pred_region
        _
      $region16: #{lenet_forward.1} parent=11 // pred_fallthru
        _
      // Predicated region
      $region17: #{lenet_forward.1} parent=11 // pred_check
        %p253 = pneg %p83
      $region18: #{lenet_forward.1} parent=11 // pred_check_branch
        %255 = sbr.rel (%p253) target = $region20
      $region19: #{lenet_forward.1} parent=11 // pred_region
        _
      $region20: #{lenet_forward.1} parent=11 // pred_fallthru
        _
      // Predicated region
      $region21: #{lenet_forward.1} parent=11 // pred_check
        %p256 = pneg %p104
      $region22: #{lenet_forward.1} parent=11 // pred_check_branch
        %258 = sbr.rel (%p256) target = $region24
      $region23: #{lenet_forward.1} parent=11 // pred_region
        _
      $region24: #{lenet_forward.1} parent=11 // pred_fallthru
        _
      // Predicated region
      $region25: #{lenet_forward.1} parent=11 // pred_check
        %p259 = pneg %p125
      $region26: #{lenet_forward.1} parent=11 // pred_check_branch
        %261 = sbr.rel (%p259) target = $region28
      $region27: #{lenet_forward.1} parent=11 // pred_region
        _
      $region28: #{lenet_forward.1} parent=11 // pred_fallthru
        _
      // Predicated region
      $region29: #{lenet_forward.1} parent=11 // pred_check
        %p262 = pneg %p146
      $region30: #{lenet_forward.1} parent=11 // pred_check_branch
        %264 = sbr.rel (%p262) target = $region32
      $region31: #{lenet_forward.1} parent=11 // pred_region
        _
      $region32: #{lenet_forward.1} parent=11 // pred_fallthru
        _
      // Predicated region
      $region33: #{lenet_forward.1} parent=11 // pred_check
        %p265 = pneg %p167
      $region34: #{lenet_forward.1} parent=11 // pred_check_branch
        %267 = sbr.rel (%p265) target = $region36
      $region35: #{lenet_forward.1} parent=11 // pred_region
        _
      $region36: #{lenet_forward.1} parent=11 // pred_fallthru
        _
      // Predicated region
      $region37: #{lenet_forward.1} parent=11 // pred_check
        %p268 = pneg %p188
      $region38: #{lenet_forward.1} parent=11 // pred_check_branch
        %270 = sbr.rel (%p268) target = $region40
      $region39: #{lenet_forward.1} parent=11 // pred_region
        _
      $region40: #{lenet_forward.1} parent=11 // pred_fallthru
        _
      // Predicated region
      $region41: #{lenet_forward.1} parent=11 // pred_check
        %p271 = pneg %p209
      $region42: #{lenet_forward.1} parent=11 // pred_check_branch
        %273 = sbr.rel (%p271) target = $region44
      $region43: #{lenet_forward.1} parent=11 // pred_region
        _
      $region44: #{lenet_forward.1} parent=11 // pred_fallthru
        _
    $region12: #{lenet_forward.1} parent=5 // pred_fallthru
      _
    %p274 = scmp.lt.s32.totalorder %s15, 4
    // Predicated region
    $region45: #{lenet_forward.1} parent=5 // pred_check
      %p275 = pneg %p274
    $region46: #{lenet_forward.1} parent=5 // pred_check_branch
      %277 = sbr.rel (%p275) target = $region48
    $region47: #{lenet_forward.1} parent=5 // pred_region
      // Predicated region
      $region49: #{lenet_forward.1} parent=47 // pred_check
        %p278 = pneg %p35
      $region50: #{lenet_forward.1} parent=47 // pred_check_branch
        %280 = sbr.rel (%p278) target = $region52
      $region51: #{lenet_forward.1} parent=47 // pred_region
        %p281 = scmp.lt.s32.totalorder %s15, 3
        %s282 = scalar_select %p281, %s15, 3
        %s283 = smul.addr %s282, 18
        %s284 = smul.addr %s283, 8
        %s285 = scalar_lea.vmem %s0, %s284
      $region52: #{lenet_forward.1} parent=47 // pred_fallthru
        _
    $region48: #{lenet_forward.1} parent=5 // pred_fallthru
      _
    %p286 = scmp.le.s32.totalorder 1, %s15
    %p287 = scmp.lt.s32.totalorder %s15, 5
    %p288 = pnand %p286, %p287
    %p289 = pneg %p288
    // Predicated region
    $region53: #{lenet_forward.1} parent=5 // pred_check
      _
    $region54: #{lenet_forward.1} parent=5 // pred_check_branch
      %291 = sbr.rel (%p288) target = $region56
    $region55: #{lenet_forward.1} parent=5 // pred_region
      %s292 = ssub.s32 %s15, 1
      %p293 = scmp.lt.s32.totalorder %s20, 3
      %s294 = scalar_select %p293, %s20, 3
      %s295 = smul.addr %s294, 18
      %s296 = smul.addr %s295, 8
      %s297 = scalar_lea.vmem %s0, %s296
      %p298 = pneg %p41
      %p299 = pneg %p38
      %p300 = pneg %p62
      %p301 = pneg %p59
      %p302 = pneg %p83
      %p303 = pneg %p80
      %p304 = pneg %p104
      %p305 = pneg %p101
      %p306 = pneg %p125
      %p307 = pneg %p122
      %p308 = pneg %p146
      %p309 = pneg %p143
      %p310 = pneg %p167
      %p311 = pneg %p164
      %p312 = pneg %p188
      %p313 = pneg %p185
      %p314 = pneg %p209
      %p315 = pneg %p206
      %p316 = pneg %p235
      %p317 = pneg %p232
      %p318 = scmp.lt.s32.totalorder %s20, 3
      %s319 = scalar_select %p318, %s20, 3
      %s320 = smul.addr %s319, 8
      %s321 = scalar_lea.vmem %s9, %s320
      %p322 = scmp.lt.s32.totalorder %s20, 3
      %s323 = scalar_select %p322, %s20, 3
      %s324 = smul.addr %s323, 18
      %s325 = smul.addr %s324, 8
      %s326 = scalar_lea.vmem %s0, %s325
      %p327 = scmp.lt.s32.totalorder %s20, 3
      %s328 = scalar_select %p327, %s20, 3
      %s329 = smul.addr %s328, 8
      %s330 = scalar_lea.vmem %s9, %s329
      %v331 = vld [vmem:[%s326] sm:$0xff]
      %v332 = vld [vmem:[%s326 + $0x8] sm:$0xff]
      %v333 = vld [vmem:[%s326 + $0x10] sm:$0xff]
      %v334 = vld [vmem:[%s326 + $0x18] sm:$0xff]
      %v335 = vld [vmem:[%s326 + $0x20] sm:$0xff]
      %v336 = vld [vmem:[%s326 + $0x28] sm:$0xff]
      %v337 = vld [vmem:[%s326 + $0x30] sm:$0xff]
      %v338 = vld [vmem:[%s326 + $0x38] sm:$0xff]
      %v339 = vld [vmem:[%s326 + $0x40] sm:$0xff]
      %v340 = vld [vmem:[%s326 + $0x48] sm:$0xff]
      %v341 = vld [vmem:[%s326 + $0x50] sm:$0xff]
      %v342 = vld [vmem:[%s326 + $0x58] sm:$0xff]
      %v343 = vld [vmem:[%s326 + $0x60] sm:$0xff]
      %v344 = vld [vmem:[%s326 + $0x68] sm:$0xff]
      %v345 = vld [vmem:[%s326 + $0x70] sm:$0xff]
      %v346 = vld [vmem:[%s326 + $0x78] sm:$0xff]
      %v347 = vld [vmem:[%s326 + $0x80] sm:$0xff]
      %v348 = vld [vmem:[%s326 + $0x88] sm:$0xff]
      %v349 = vld [vmem:[%s1] sm:$0xff]
      %v350 = vld [vmem:[%s1 + $0x8] sm:$0xff]
      %v351 = vld [vmem:[%s1 + $0x10] sm:$0xff]
      %v352 = vld [vmem:[%s1 + $0x18] sm:$0xff]
      %v353 = vld [vmem:[%s1 + $0x20] sm:$0xff]
      %v354 = vld [vmem:[%s1 + $0x28] sm:$0xff]
      %v355 = vld [vmem:[%s1 + $0x30] sm:$0xff]
      %v356 = vld [vmem:[%s1 + $0x38] sm:$0xff]
      %v357 = vld [vmem:[%s1 + $0x40] sm:$0xff]
      %v358 = vld [vmem:[%s1 + $0x48] sm:$0xff]
      %v359 = vld [vmem:[%s1 + $0x50] sm:$0xff]
      %v360 = vld [vmem:[%s1 + $0x58] sm:$0xff]
      %v361 = vld [vmem:[%s1 + $0x60] sm:$0xff]
      %v362 = vld [vmem:[%s1 + $0x68] sm:$0xff]
      %v363 = vld [vmem:[%s1 + $0x70] sm:$0xff]
      %v364 = vld [vmem:[%s1 + $0x78] sm:$0xff]
      %v365 = vld [vmem:[%s2] sm:$0x1]
      %v367 = vlaneseq
      %v368 = vshrl.u32 %v367, 7
      %v369 = vsub.s32 0, %v368
      %v370 = vrot.slane %v365, %v369
      %372 = vmatprep.subr.mxu0 0.0
      %373 = vmatpush1.msra.mxu0 %v364
      %374 = vmatprep.subr.mxu0 0.0
      %375 = vmatpush1.msra.mxu0 %v363
      %376 = vmatprep.subr.mxu0 0.0
      %377 = vmatpush1.msra.mxu0 %v362
      %378 = vmatprep.subr.mxu0 0.0
      %379 = vmatpush1.msra.mxu0 %v361
      %380 = vmatprep.subr.mxu0 0.0
      %381 = vmatpush1.msra.mxu0 %v360
      %382 = vmatprep.subr.mxu0 0.0
      %383 = vmatpush1.msra.mxu0 %v359
      %384 = vmatprep.subr.mxu0 0.0
      %385 = vmatpush1.msra.mxu0 %v358
      %386 = vmatprep.subr.mxu0 0.0
      %387 = vmatpush1.msra.mxu0 %v357
      %388 = vmatprep.subr.mxu0 0.0
      %389 = vmatpush1.msra.mxu0 %v356
      %390 = vmatprep.subr.mxu0 0.0
      %391 = vmatpush1.msra.mxu0 %v355
      %392 = vmatprep.subr.mxu0 0.0
      %393 = vmatpush1.msra.mxu0 %v354
      %394 = vmatprep.subr.mxu0 0.0
      %395 = vmatpush1.msra.mxu0 %v353
      %396 = vmatprep.subr.mxu0 0.0
      %397 = vmatpush1.msra.mxu0 %v352
      %398 = vmatprep.subr.mxu0 0.0
      %399 = vmatpush1.msra.mxu0 %v351
      %400 = vmatprep.subr.mxu0 0.0
      %401 = vmatpush1.msra.mxu0 %v350
      %402 = vmatprep.subr.mxu0 0.0
      %403 = vmatpush1.msra.mxu0 %v349
      %404 = vmatprep.subr.mxu0 0.0
      %405 = vmatpush2.msra.mxu0 0.0
      %406 = vmatprep.subr.mxu0 0.0
      %407 = vmatpush2.msra.mxu0 0.0
      %408 = vmatprep.subr.mxu0 0.0
      %409 = vmatpush2.msra.mxu0 0.0
      %410 = vmatprep.subr.mxu0 0.0
      %411 = vmatpush2.msra.mxu0 0.0
      %412 = vmatprep.subr.mxu0 0.0
      %413 = vmatpush2.msra.mxu0 0.0
      %414 = vmatprep.subr.mxu0 0.0
      %415 = vmatpush2.msra.mxu0 0.0
      %416 = vmatprep.subr.mxu0 0.0
      %417 = vmatpush2.msra.mxu0 0.0
      %418 = vmatprep.subr.mxu0 0.0
      %419 = vmatpush2.msra.mxu0 0.0
      %420 = vmatprep.subr.mxu0 0.0
      %421 = vmatpush2.msra.mxu0 0.0
      %422 = vmatprep.subr.mxu0 0.0
      %423 = vmatpush2.msra.mxu0 0.0
      %424 = vmatprep.subr.mxu0 0.0
      %425 = vmatpush2.msra.mxu0 0.0
      %426 = vmatprep.subr.mxu0 0.0
      %427 = vmatpush2.msra.mxu0 0.0
      %428 = vmatprep.subr.mxu0 0.0
      %429 = vmatpush2.msra.mxu0 0.0
      %430 = vmatprep.subr.mxu0 0.0
      %431 = vmatpush2.msra.mxu0 0.0
      %432 = vmatprep.subr.mxu0 0.0
      %433 = vmatpush2.msra.mxu0 0.0
      %434 = vmatprep.subr.mxu0 0.0
      %435 = vmatpush2.msra.mxu0 0.0
      %436 = vmatprep.mubr.f32.mxu0 0.0
      %437 = vmatmul.mubr.f32.gmra.mxu0 %v331
      %v438 = vpop.f32.mrf.mxu0
      %v439 = vadd.f32 %v370, %v438
      %v440 = vpop.f32.mrf.mxu0
      %441 = vmatprep.mubr.f32.mxu0 0.0
      %442 = vmatmul.mubr.f32.gmra.mxu0 %v332
      %v443 = vpop.f32.mrf.mxu0
      %v444 = vadd.f32 %v370, %v443
      %v445 = vpop.f32.mrf.mxu0
      %446 = vmatprep.mubr.f32.mxu0 0.0
      %447 = vmatmul.mubr.f32.gmra.mxu0 %v333
      %v448 = vpop.f32.mrf.mxu0
      %v449 = vadd.f32 %v370, %v448
      %v450 = vpop.f32.mrf.mxu0
      %451 = vmatprep.mubr.f32.mxu0 0.0
      %452 = vmatmul.mubr.f32.gmra.mxu0 %v334
      %v453 = vpop.f32.mrf.mxu0
      %v454 = vadd.f32 %v370, %v453
      %v455 = vpop.f32.mrf.mxu0
      %456 = vmatprep.mubr.f32.mxu0 0.0
      %457 = vmatmul.mubr.f32.gmra.mxu0 %v335
      %v458 = vpop.f32.mrf.mxu0
      %v459 = vadd.f32 %v370, %v458
      %v460 = vpop.f32.mrf.mxu0
      %461 = vmatprep.mubr.f32.mxu0 0.0
      %462 = vmatmul.mubr.f32.gmra.mxu0 %v336
      %v463 = vpop.f32.mrf.mxu0
      %v464 = vadd.f32 %v370, %v463
      %v465 = vpop.f32.mrf.mxu0
      %466 = vmatprep.mubr.f32.mxu0 0.0
      %467 = vmatmul.mubr.f32.gmra.mxu0 %v337
      %v468 = vpop.f32.mrf.mxu0
      %v469 = vadd.f32 %v370, %v468
      %v470 = vpop.f32.mrf.mxu0
      %471 = vmatprep.mubr.f32.mxu0 0.0
      %472 = vmatmul.mubr.f32.gmra.mxu0 %v338
      %v473 = vpop.f32.mrf.mxu0
      %v474 = vadd.f32 %v370, %v473
      %v475 = vpop.f32.mrf.mxu0
      %476 = vmatprep.mubr.f32.mxu0 0.0
      %477 = vmatmul.mubr.f32.gmra.mxu0 %v339
      %v478 = vpop.f32.mrf.mxu0
      %v479 = vadd.f32 %v370, %v478
      %v480 = vpop.f32.mrf.mxu0
      %481 = vmatprep.mubr.f32.mxu0 0.0
      %482 = vmatmul.mubr.f32.gmra.mxu0 %v340
      %v483 = vpop.f32.mrf.mxu0
      %v484 = vadd.f32 %v370, %v483
      %v485 = vpop.f32.mrf.mxu0
      %486 = vmatprep.mubr.f32.mxu0 0.0
      %487 = vmatmul.mubr.f32.gmra.mxu0 %v341
      %v488 = vpop.f32.mrf.mxu0
      %v489 = vadd.f32 %v370, %v488
      %v490 = vpop.f32.mrf.mxu0
      %491 = vmatprep.mubr.f32.mxu0 0.0
      %492 = vmatmul.mubr.f32.gmra.mxu0 %v342
      %v493 = vpop.f32.mrf.mxu0
      %v494 = vadd.f32 %v370, %v493
      %v495 = vpop.f32.mrf.mxu0
      %496 = vmatprep.mubr.f32.mxu0 0.0
      %497 = vmatmul.mubr.f32.gmra.mxu0 %v343
      %v498 = vpop.f32.mrf.mxu0
      %v499 = vadd.f32 %v370, %v498
      %v500 = vpop.f32.mrf.mxu0
      %501 = vmatprep.mubr.f32.mxu0 0.0
      %502 = vmatmul.mubr.f32.gmra.mxu0 %v344
      %v503 = vpop.f32.mrf.mxu0
      %v504 = vadd.f32 %v370, %v503
      %v505 = vpop.f32.mrf.mxu0
      %506 = vmatprep.mubr.f32.mxu0 0.0
      %507 = vmatmul.mubr.f32.gmra.mxu0 %v345
      %v508 = vpop.f32.mrf.mxu0
      %v509 = vadd.f32 %v370, %v508
      %v510 = vpop.f32.mrf.mxu0
      %511 = vmatprep.mubr.f32.mxu0 0.0
      %512 = vmatmul.mubr.f32.gmra.mxu0 %v346
      %v513 = vpop.f32.mrf.mxu0
      %v514 = vadd.f32 %v370, %v513
      %v515 = vpop.f32.mrf.mxu0
      %516 = vmatprep.mubr.f32.mxu0 0.0
      %517 = vmatmul.mubr.f32.gmra.mxu0 %v347
      %v518 = vpop.f32.mrf.mxu0
      %v519 = vadd.f32 %v370, %v518
      %v520 = vpop.f32.mrf.mxu0
      %521 = vmatprep.mubr.f32.mxu0 0.0
      %522 = vmatmul.mubr.f32.gmra.mxu0 %v348
      %v523 = vpop.f32.mrf.mxu0
      %v524 = vadd.f32 %v370, %v523
      %v525 = vpop.f32.mrf.mxu0
      %526 = vdwg.mxu0
      %545 = vrot.lane.b32.xlu0 %v439, 96
      %v546 = vpop.permute.xlu0 %545
      %547 = vrot.lane.b32.xlu0 %v444, 96
      %v548 = vpop.permute.xlu0 %547
      %549 = vrot.lane.b32.xlu0 %v449, 96
      %v550 = vpop.permute.xlu0 %549
      %551 = vrot.lane.b32.xlu0 %v454, 96
      %v552 = vpop.permute.xlu0 %551
      %553 = vrot.lane.b32.xlu0 %v459, 96
      %v554 = vpop.permute.xlu0 %553
      %555 = vrot.lane.b32.xlu0 %v464, 96
      %v556 = vpop.permute.xlu0 %555
      %557 = vrot.lane.b32.xlu0 %v469, 96
      %v558 = vpop.permute.xlu0 %557
      %559 = vrot.lane.b32.xlu0 %v474, 96
      %v560 = vpop.permute.xlu0 %559
      %561 = vrot.lane.b32.xlu0 %v479, 96
      %v562 = vpop.permute.xlu0 %561
      %563 = vrot.lane.b32.xlu0 %v484, 96
      %v564 = vpop.permute.xlu0 %563
      %565 = vrot.lane.b32.xlu0 %v489, 96
      %v566 = vpop.permute.xlu0 %565
      %567 = vrot.lane.b32.xlu0 %v494, 96
      %v568 = vpop.permute.xlu0 %567
      %569 = vrot.lane.b32.xlu0 %v499, 96
      %v570 = vpop.permute.xlu0 %569
      %571 = vrot.lane.b32.xlu0 %v504, 96
      %v572 = vpop.permute.xlu0 %571
      %573 = vrot.lane.b32.xlu0 %v509, 96
      %v574 = vpop.permute.xlu0 %573
      %575 = vrot.lane.b32.xlu0 %v514, 96
      %v576 = vpop.permute.xlu0 %575
      %577 = vrot.lane.b32.xlu0 %v519, 96
      %v578 = vpop.permute.xlu0 %577
      %579 = vrot.lane.b32.xlu0 %v524, 96
      %v580 = vpop.permute.xlu0 %579
      %v599 = vmax.f32 %v439, %v546
      %v600 = vmax.f32 %v444, %v548
      %v601 = vmax.f32 %v449, %v550
      %v602 = vmax.f32 %v454, %v552
      %v603 = vmax.f32 %v459, %v554
      %v604 = vmax.f32 %v464, %v556
      %v605 = vmax.f32 %v469, %v558
      %v606 = vmax.f32 %v474, %v560
      %v607 = vmax.f32 %v479, %v562
      %v608 = vmax.f32 %v484, %v564
      %v609 = vmax.f32 %v489, %v566
      %v610 = vmax.f32 %v494, %v568
      %v611 = vmax.f32 %v499, %v570
      %v612 = vmax.f32 %v504, %v572
      %v613 = vmax.f32 %v509, %v574
      %v614 = vmax.f32 %v514, %v576
      %v615 = vmax.f32 %v519, %v578
      %v616 = vmax.f32 %v524, %v580
      %635 = vrot.lane.b32.xlu0 %v599, 64
      %v636 = vpop.permute.xlu0 %635
      %637 = vrot.lane.b32.xlu0 %v600, 64
      %v638 = vpop.permute.xlu0 %637
      %639 = vrot.lane.b32.xlu0 %v601, 64
      %v640 = vpop.permute.xlu0 %639
      %641 = vrot.lane.b32.xlu0 %v602, 64
      %v642 = vpop.permute.xlu0 %641
      %643 = vrot.lane.b32.xlu0 %v603, 64
      %v644 = vpop.permute.xlu0 %643
      %645 = vrot.lane.b32.xlu0 %v604, 64
      %v646 = vpop.permute.xlu0 %645
      %647 = vrot.lane.b32.xlu0 %v605, 64
      %v648 = vpop.permute.xlu0 %647
      %649 = vrot.lane.b32.xlu0 %v606, 64
      %v650 = vpop.permute.xlu0 %649
      %651 = vrot.lane.b32.xlu0 %v607, 64
      %v652 = vpop.permute.xlu0 %651
      %653 = vrot.lane.b32.xlu0 %v608, 64
      %v654 = vpop.permute.xlu0 %653
      %655 = vrot.lane.b32.xlu0 %v609, 64
      %v656 = vpop.permute.xlu0 %655
      %657 = vrot.lane.b32.xlu0 %v610, 64
      %v658 = vpop.permute.xlu0 %657
      %659 = vrot.lane.b32.xlu0 %v611, 64
      %v660 = vpop.permute.xlu0 %659
      %661 = vrot.lane.b32.xlu0 %v612, 64
      %v662 = vpop.permute.xlu0 %661
      %663 = vrot.lane.b32.xlu0 %v613, 64
      %v664 = vpop.permute.xlu0 %663
      %665 = vrot.lane.b32.xlu0 %v614, 64
      %v666 = vpop.permute.xlu0 %665
      %667 = vrot.lane.b32.xlu0 %v615, 64
      %v668 = vpop.permute.xlu0 %667
      %669 = vrot.lane.b32.xlu0 %v616, 64
      %v670 = vpop.permute.xlu0 %669
      %v689 = vmax.f32 %v599, %v636
      %v690 = vmax.f32 %v600, %v638
      %v691 = vmax.f32 %v601, %v640
      %v692 = vmax.f32 %v602, %v642
      %v693 = vmax.f32 %v603, %v644
      %v694 = vmax.f32 %v604, %v646
      %v695 = vmax.f32 %v605, %v648
      %v696 = vmax.f32 %v606, %v650
      %v697 = vmax.f32 %v607, %v652
      %v698 = vmax.f32 %v608, %v654
      %v699 = vmax.f32 %v609, %v656
      %v700 = vmax.f32 %v610, %v658
      %v701 = vmax.f32 %v611, %v660
      %v702 = vmax.f32 %v612, %v662
      %v703 = vmax.f32 %v613, %v664
      %v704 = vmax.f32 %v614, %v666
      %v705 = vmax.f32 %v615, %v668
      %v706 = vmax.f32 %v616, %v670
      %vm726 = vcmask 1046528
      %v727 = vrot.slane %v689, 1
      %v728 = vrot.slane %v690, 1
      %v729 = vsel %vm726, %v727, %v728
      %v730 = vrot.slane %v691, 1
      %v731 = vsel %vm726, %v728, %v730
      %v732 = vrot.slane %v692, 1
      %v733 = vsel %vm726, %v730, %v732
      %v734 = vrot.slane %v693, 1
      %v735 = vsel %vm726, %v732, %v734
      %v736 = vrot.slane %v694, 1
      %v737 = vsel %vm726, %v734, %v736
      %v738 = vrot.slane %v695, 1
      %v739 = vsel %vm726, %v736, %v738
      %v740 = vrot.slane %v696, 1
      %v741 = vsel %vm726, %v738, %v740
      %v742 = vrot.slane %v697, 1
      %v743 = vsel %vm726, %v740, %v742
      %v744 = vrot.slane %v698, 1
      %v745 = vsel %vm726, %v742, %v744
      %v746 = vrot.slane %v699, 1
      %v747 = vsel %vm726, %v744, %v746
      %v748 = vrot.slane %v700, 1
      %v749 = vsel %vm726, %v746, %v748
      %v750 = vrot.slane %v701, 1
      %v751 = vsel %vm726, %v748, %v750
      %v752 = vrot.slane %v702, 1
      %v753 = vsel %vm726, %v750, %v752
      %v754 = vrot.slane %v703, 1
      %v755 = vsel %vm726, %v752, %v754
      %v756 = vrot.slane %v704, 1
      %v757 = vsel %vm726, %v754, %v756
      %v758 = vrot.slane %v705, 1
      %v759 = vsel %vm726, %v756, %v758
      %v760 = vrot.slane %v706, 1
      %v761 = vsel %vm726, %v758, %v760
      %v762 = vrot.slane 0.0, 1
      %v763 = vsel %vm726, %v760, %v762
      %764 = vrot.lane.b32.xlu0 %v729, 32
      %v765 = vpop.permute.xlu0 %764
      %766 = vrot.lane.b32.xlu0 %v731, 32
      %v767 = vpop.permute.xlu0 %766
      %768 = vrot.lane.b32.xlu0 %v733, 32
      %v769 = vpop.permute.xlu0 %768
      %770 = vrot.lane.b32.xlu0 %v735, 32
      %v771 = vpop.permute.xlu0 %770
      %772 = vrot.lane.b32.xlu0 %v737, 32
      %v773 = vpop.permute.xlu0 %772
      %774 = vrot.lane.b32.xlu0 %v739, 32
      %v775 = vpop.permute.xlu0 %774
      %776 = vrot.lane.b32.xlu0 %v741, 32
      %v777 = vpop.permute.xlu0 %776
      %778 = vrot.lane.b32.xlu0 %v743, 32
      %v779 = vpop.permute.xlu0 %778
      %780 = vrot.lane.b32.xlu0 %v745, 32
      %v781 = vpop.permute.xlu0 %780
      %782 = vrot.lane.b32.xlu0 %v747, 32
      %v783 = vpop.permute.xlu0 %782
      %784 = vrot.lane.b32.xlu0 %v749, 32
      %v785 = vpop.permute.xlu0 %784
      %786 = vrot.lane.b32.xlu0 %v751, 32
      %v787 = vpop.permute.xlu0 %786
      %788 = vrot.lane.b32.xlu0 %v753, 32
      %v789 = vpop.permute.xlu0 %788
      %790 = vrot.lane.b32.xlu0 %v755, 32
      %v791 = vpop.permute.xlu0 %790
      %792 = vrot.lane.b32.xlu0 %v757, 32
      %v793 = vpop.permute.xlu0 %792
      %794 = vrot.lane.b32.xlu0 %v759, 32
      %v795 = vpop.permute.xlu0 %794
      %796 = vrot.lane.b32.xlu0 %v761, 32
      %v797 = vpop.permute.xlu0 %796
      %798 = vrot.lane.b32.xlu0 %v763, 32
      %v799 = vpop.permute.xlu0 %798
      %vm818 = vcmask 1045504
      %v819 = vrot.slane %v689, 2
      %v820 = vrot.slane %v690, 2
      %v821 = vsel %vm818, %v819, %v820
      %v822 = vrot.slane %v691, 2
      %v823 = vsel %vm818, %v820, %v822
      %v824 = vrot.slane %v692, 2
      %v825 = vsel %vm818, %v822, %v824
      %v826 = vrot.slane %v693, 2
      %v827 = vsel %vm818, %v824, %v826
      %v828 = vrot.slane %v694, 2
      %v829 = vsel %vm818, %v826, %v828
      %v830 = vrot.slane %v695, 2
      %v831 = vsel %vm818, %v828, %v830
      %v832 = vrot.slane %v696, 2
      %v833 = vsel %vm818, %v830, %v832
      %v834 = vrot.slane %v697, 2
      %v835 = vsel %vm818, %v832, %v834
      %v836 = vrot.slane %v698, 2
      %v837 = vsel %vm818, %v834, %v836
      %v838 = vrot.slane %v699, 2
      %v839 = vsel %vm818, %v836, %v838
      %v840 = vrot.slane %v700, 2
      %v841 = vsel %vm818, %v838, %v840
      %v842 = vrot.slane %v701, 2
      %v843 = vsel %vm818, %v840, %v842
      %v844 = vrot.slane %v702, 2
      %v845 = vsel %vm818, %v842, %v844
      %v846 = vrot.slane %v703, 2
      %v847 = vsel %vm818, %v844, %v846
      %v848 = vrot.slane %v704, 2
      %v849 = vsel %vm818, %v846, %v848
      %v850 = vrot.slane %v705, 2
      %v851 = vsel %vm818, %v848, %v850
      %v852 = vrot.slane %v706, 2
      %v853 = vsel %vm818, %v850, %v852
      %v854 = vrot.slane 0.0, 2
      %v855 = vsel %vm818, %v852, %v854
      %856 = vrot.lane.b32.xlu0 %v821, 64
      %v857 = vpop.permute.xlu0 %856
      %858 = vrot.lane.b32.xlu0 %v823, 64
      %v859 = vpop.permute.xlu0 %858
      %860 = vrot.lane.b32.xlu0 %v825, 64
      %v861 = vpop.permute.xlu0 %860
      %862 = vrot.lane.b32.xlu0 %v827, 64
      %v863 = vpop.permute.xlu0 %862
      %864 = vrot.lane.b32.xlu0 %v829, 64
      %v865 = vpop.permute.xlu0 %864
      %866 = vrot.lane.b32.xlu0 %v831, 64
      %v867 = vpop.permute.xlu0 %866
      %868 = vrot.lane.b32.xlu0 %v833, 64
      %v869 = vpop.permute.xlu0 %868
      %870 = vrot.lane.b32.xlu0 %v835, 64
      %v871 = vpop.permute.xlu0 %870
      %872 = vrot.lane.b32.xlu0 %v837, 64
      %v873 = vpop.permute.xlu0 %872
      %874 = vrot.lane.b32.xlu0 %v839, 64
      %v875 = vpop.permute.xlu0 %874
      %876 = vrot.lane.b32.xlu0 %v841, 64
      %v877 = vpop.permute.xlu0 %876
      %878 = vrot.lane.b32.xlu0 %v843, 64
      %v879 = vpop.permute.xlu0 %878
      %880 = vrot.lane.b32.xlu0 %v845, 64
      %v881 = vpop.permute.xlu0 %880
      %882 = vrot.lane.b32.xlu0 %v847, 64
      %v883 = vpop.permute.xlu0 %882
      %884 = vrot.lane.b32.xlu0 %v849, 64
      %v885 = vpop.permute.xlu0 %884
      %886 = vrot.lane.b32.xlu0 %v851, 64
      %v887 = vpop.permute.xlu0 %886
      %888 = vrot.lane.b32.xlu0 %v853, 64
      %v889 = vpop.permute.xlu0 %888
      %890 = vrot.lane.b32.xlu0 %v855, 64
      %v891 = vpop.permute.xlu0 %890
      %vm910 = vcmask 1044480
      %v911 = vrot.slane %v689, 3
      %v912 = vrot.slane %v690, 3
      %v913 = vsel %vm910, %v911, %v912
      %v914 = vrot.slane %v691, 3
      %v915 = vsel %vm910, %v912, %v914
      %v916 = vrot.slane %v692, 3
      %v917 = vsel %vm910, %v914, %v916
      %v918 = vrot.slane %v693, 3
      %v919 = vsel %vm910, %v916, %v918
      %v920 = vrot.slane %v694, 3
      %v921 = vsel %vm910, %v918, %v920
      %v922 = vrot.slane %v695, 3
      %v923 = vsel %vm910, %v920, %v922
      %v924 = vrot.slane %v696, 3
      %v925 = vsel %vm910, %v922, %v924
      %v926 = vrot.slane %v697, 3
      %v927 = vsel %vm910, %v924, %v926
      %v928 = vrot.slane %v698, 3
      %v929 = vsel %vm910, %v926, %v928
      %v930 = vrot.slane %v699, 3
      %v931 = vsel %vm910, %v928, %v930
      %v932 = vrot.slane %v700, 3
      %v933 = vsel %vm910, %v930, %v932
      %v934 = vrot.slane %v701, 3
      %v935 = vsel %vm910, %v932, %v934
      %v936 = vrot.slane %v702, 3
      %v937 = vsel %vm910, %v934, %v936
      %v938 = vrot.slane %v703, 3
      %v939 = vsel %vm910, %v936, %v938
      %v940 = vrot.slane %v704, 3
      %v941 = vsel %vm910, %v938, %v940
      %v942 = vrot.slane %v705, 3
      %v943 = vsel %vm910, %v940, %v942
      %v944 = vrot.slane %v706, 3
      %v945 = vsel %vm910, %v942, %v944
      %v946 = vrot.slane 0.0, 3
      %v947 = vsel %vm910, %v944, %v946
      %948 = vrot.lane.b32.xlu0 %v913, 96
      %v949 = vpop.permute.xlu0 %948
      %950 = vrot.lane.b32.xlu0 %v915, 96
      %v951 = vpop.permute.xlu0 %950
      %952 = vrot.lane.b32.xlu0 %v917, 96
      %v953 = vpop.permute.xlu0 %952
      %954 = vrot.lane.b32.xlu0 %v919, 96
      %v955 = vpop.permute.xlu0 %954
      %956 = vrot.lane.b32.xlu0 %v921, 96
      %v957 = vpop.permute.xlu0 %956
      %958 = vrot.lane.b32.xlu0 %v923, 96
      %v959 = vpop.permute.xlu0 %958
      %960 = vrot.lane.b32.xlu0 %v925, 96
      %v961 = vpop.permute.xlu0 %960
      %962 = vrot.lane.b32.xlu0 %v927, 96
      %v963 = vpop.permute.xlu0 %962
      %964 = vrot.lane.b32.xlu0 %v929, 96
      %v965 = vpop.permute.xlu0 %964
      %966 = vrot.lane.b32.xlu0 %v931, 96
      %v967 = vpop.permute.xlu0 %966
      %968 = vrot.lane.b32.xlu0 %v933, 96
      %v969 = vpop.permute.xlu0 %968
      %970 = vrot.lane.b32.xlu0 %v935, 96
      %v971 = vpop.permute.xlu0 %970
      %972 = vrot.lane.b32.xlu0 %v937, 96
      %v973 = vpop.permute.xlu0 %972
      %974 = vrot.lane.b32.xlu0 %v939, 96
      %v975 = vpop.permute.xlu0 %974
      %976 = vrot.lane.b32.xlu0 %v941, 96
      %v977 = vpop.permute.xlu0 %976
      %978 = vrot.lane.b32.xlu0 %v943, 96
      %v979 = vpop.permute.xlu0 %978
      %980 = vrot.lane.b32.xlu0 %v945, 96
      %v981 = vpop.permute.xlu0 %980
      %982 = vrot.lane.b32.xlu0 %v947, 96
      %v983 = vpop.permute.xlu0 %982
      %vm1002 = vcmask 1043456
      %v1003 = vrot.slane %v689, 4
      %v1004 = vrot.slane %v690, 4
      %v1005 = vsel %vm1002, %v1003, %v1004
      %v1006 = vrot.slane %v691, 4
      %v1007 = vsel %vm1002, %v1004, %v1006
      %v1008 = vrot.slane %v692, 4
      %v1009 = vsel %vm1002, %v1006, %v1008
      %v1010 = vrot.slane %v693, 4
      %v1011 = vsel %vm1002, %v1008, %v1010
      %v1012 = vrot.slane %v694, 4
      %v1013 = vsel %vm1002, %v1010, %v1012
      %v1014 = vrot.slane %v695, 4
      %v1015 = vsel %vm1002, %v1012, %v1014
      %v1016 = vrot.slane %v696, 4
      %v1017 = vsel %vm1002, %v1014, %v1016
      %v1018 = vrot.slane %v697, 4
      %v1019 = vsel %vm1002, %v1016, %v1018
      %v1020 = vrot.slane %v698, 4
      %v1021 = vsel %vm1002, %v1018, %v1020
      %v1022 = vrot.slane %v699, 4
      %v1023 = vsel %vm1002, %v1020, %v1022
      %v1024 = vrot.slane %v700, 4
      %v1025 = vsel %vm1002, %v1022, %v1024
      %v1026 = vrot.slane %v701, 4
      %v1027 = vsel %vm1002, %v1024, %v1026
      %v1028 = vrot.slane %v702, 4
      %v1029 = vsel %vm1002, %v1026, %v1028
      %v1030 = vrot.slane %v703, 4
      %v1031 = vsel %vm1002, %v1028, %v1030
      %v1032 = vrot.slane %v704, 4
      %v1033 = vsel %vm1002, %v1030, %v1032
      %v1034 = vrot.slane %v705, 4
      %v1035 = vsel %vm1002, %v1032, %v1034
      %v1036 = vrot.slane %v706, 4
      %v1037 = vsel %vm1002, %v1034, %v1036
      %v1038 = vrot.slane 0.0, 4
      %v1039 = vsel %vm1002, %v1036, %v1038
      %vm1052 = vcmask 261120
      %v1053 = vsel %vm1052, %v689, %v765
      %v1054 = vsel %vm1052, %v690, %v767
      %v1055 = vsel %vm1052, %v691, %v769
      %v1056 = vsel %vm1052, %v692, %v771
      %v1057 = vsel %vm1052, %v693, %v773
      %v1058 = vsel %vm1052, %v694, %v775
      %v1059 = vsel %vm1052, %v695, %v777
      %v1060 = vsel %vm1052, %v696, %v779
      %v1061 = vsel %vm1052, %v697, %v781
      %v1062 = vsel %vm1052, %v698, %v783
      %v1063 = vsel %vm1052, %v699, %v785
      %v1064 = vsel %vm1052, %v700, %v787
      %v1065 = vsel %vm1052, %v701, %v789
      %v1066 = vsel %vm1052, %v702, %v791
      %v1067 = vsel %vm1052, %v703, %v793
      %v1068 = vsel %vm1052, %v704, %v795
      %v1069 = vsel %vm1052, %v705, %v797
      %v1070 = vsel %vm1052, %v706, %v799
      %vm1071 = vcmask 523264
      %v1072 = vsel %vm1071, %v1053, %v857
      %v1073 = vsel %vm1071, %v1054, %v859
      %v1074 = vsel %vm1071, %v1055, %v861
      %v1075 = vsel %vm1071, %v1056, %v863
      %v1076 = vsel %vm1071, %v1057, %v865
      %v1077 = vsel %vm1071, %v1058, %v867
      %v1078 = vsel %vm1071, %v1059, %v869
      %v1079 = vsel %vm1071, %v1060, %v871
      %v1080 = vsel %vm1071, %v1061, %v873
      %v1081 = vsel %vm1071, %v1062, %v875
      %v1082 = vsel %vm1071, %v1063, %v877
      %v1083 = vsel %vm1071, %v1064, %v879
      %v1084 = vsel %vm1071, %v1065, %v881
      %v1085 = vsel %vm1071, %v1066, %v883
      %v1086 = vsel %vm1071, %v1067, %v885
      %v1087 = vsel %vm1071, %v1068, %v887
      %v1088 = vsel %vm1071, %v1069, %v889
      %v1089 = vsel %vm1071, %v1070, %v891
      %vm1090 = vcmask 785408
      %v1091 = vsel %vm1090, %v1072, %v949
      %v1092 = vsel %vm1090, %v1073, %v951
      %v1093 = vsel %vm1090, %v1074, %v953
      %v1094 = vsel %vm1090, %v1075, %v955
      %v1095 = vsel %vm1090, %v1076, %v957
      %v1096 = vsel %vm1090, %v1077, %v959
      %v1097 = vsel %vm1090, %v1078, %v961
      %v1098 = vsel %vm1090, %v1079, %v963
      %v1099 = vsel %vm1090, %v1080, %v965
      %v1100 = vsel %vm1090, %v1081, %v967
      %v1101 = vsel %vm1090, %v1082, %v969
      %v1102 = vsel %vm1090, %v1083, %v971
      %v1103 = vsel %vm1090, %v1084, %v973
      %v1104 = vsel %vm1090, %v1085, %v975
      %v1105 = vsel %vm1090, %v1086, %v977
      %v1106 = vsel %vm1090, %v1087, %v979
      %v1107 = vsel %vm1090, %v1088, %v981
      %v1108 = vsel %vm1090, %v1089, %v983
      %v1122 = vrot.slane %v1092, 4
      %v1123 = vrot.slane %v1093, 4
      %v1124 = vsel %vm1002, %v1122, %v1123
      %v1125 = vrot.slane %v1007, 4
      %v1126 = vrot.slane %v1009, 4
      %v1127 = vsel %vm1002, %v1125, %v1126
      %v1128 = vrot.slane %v1094, 4
      %v1129 = vsel %vm1002, %v1123, %v1128
      %v1130 = vrot.slane %v1011, 4
      %v1131 = vsel %vm1002, %v1126, %v1130
      %v1132 = vrot.slane %v1095, 4
      %v1133 = vsel %vm1002, %v1128, %v1132
      %v1134 = vrot.slane %v1013, 4
      %v1135 = vsel %vm1002, %v1130, %v1134
      %v1136 = vrot.slane %v1096, 4
      %v1137 = vsel %vm1002, %v1132, %v1136
      %v1138 = vrot.slane %v1015, 4
      %v1139 = vsel %vm1002, %v1134, %v1138
      %v1140 = vrot.slane %v1097, 4
      %v1141 = vsel %vm1002, %v1136, %v1140
      %v1142 = vrot.slane %v1017, 4
      %v1143 = vsel %vm1002, %v1138, %v1142
      %v1144 = vrot.slane %v1098, 4
      %v1145 = vsel %vm1002, %v1140, %v1144
      %v1146 = vrot.slane %v1019, 4
      %v1147 = vsel %vm1002, %v1142, %v1146
      %v1148 = vrot.slane %v1099, 4
      %v1149 = vsel %vm1002, %v1144, %v1148
      %v1150 = vrot.slane %v1021, 4
      %v1151 = vsel %vm1002, %v1146, %v1150
      %v1152 = vrot.slane %v1100, 4
      %v1153 = vsel %vm1002, %v1148, %v1152
      %v1154 = vrot.slane %v1023, 4
      %v1155 = vsel %vm1002, %v1150, %v1154
      %v1156 = vrot.slane %v1101, 4
      %v1157 = vsel %vm1002, %v1152, %v1156
      %v1158 = vrot.slane %v1025, 4
      %v1159 = vsel %vm1002, %v1154, %v1158
      %v1160 = vrot.slane %v1102, 4
      %v1161 = vsel %vm1002, %v1156, %v1160
      %v1162 = vrot.slane %v1027, 4
      %v1163 = vsel %vm1002, %v1158, %v1162
      %v1164 = vrot.slane %v1103, 4
      %v1165 = vsel %vm1002, %v1160, %v1164
      %v1166 = vrot.slane %v1029, 4
      %v1167 = vsel %vm1002, %v1162, %v1166
      %v1168 = vrot.slane %v1104, 4
      %v1169 = vsel %vm1002, %v1164, %v1168
      %v1170 = vrot.slane %v1031, 4
      %v1171 = vsel %vm1002, %v1166, %v1170
      %1172 = vrot.lane.b32.xlu0 %v1124, 32
      %v1173 = vpop.permute.xlu0 %1172
      %1174 = vrot.lane.b32.xlu0 %v1127, 32
      %v1175 = vpop.permute.xlu0 %1174
      %1176 = vrot.lane.b32.xlu0 %v1129, 32
      %v1177 = vpop.permute.xlu0 %1176
      %1178 = vrot.lane.b32.xlu0 %v1131, 32
      %v1179 = vpop.permute.xlu0 %1178
      %1180 = vrot.lane.b32.xlu0 %v1133, 32
      %v1181 = vpop.permute.xlu0 %1180
      %1182 = vrot.lane.b32.xlu0 %v1135, 32
      %v1183 = vpop.permute.xlu0 %1182
      %1184 = vrot.lane.b32.xlu0 %v1137, 32
      %v1185 = vpop.permute.xlu0 %1184
      %1186 = vrot.lane.b32.xlu0 %v1139, 32
      %v1187 = vpop.permute.xlu0 %1186
      %1188 = vrot.lane.b32.xlu0 %v1141, 32
      %v1189 = vpop.permute.xlu0 %1188
      %1190 = vrot.lane.b32.xlu0 %v1143, 32
      %v1191 = vpop.permute.xlu0 %1190
      %1192 = vrot.lane.b32.xlu0 %v1145, 32
      %v1193 = vpop.permute.xlu0 %1192
      %1194 = vrot.lane.b32.xlu0 %v1147, 32
      %v1195 = vpop.permute.xlu0 %1194
      %1196 = vrot.lane.b32.xlu0 %v1149, 32
      %v1197 = vpop.permute.xlu0 %1196
      %1198 = vrot.lane.b32.xlu0 %v1151, 32
      %v1199 = vpop.permute.xlu0 %1198
      %1200 = vrot.lane.b32.xlu0 %v1153, 32
      %v1201 = vpop.permute.xlu0 %1200
      %1202 = vrot.lane.b32.xlu0 %v1155, 32
      %v1203 = vpop.permute.xlu0 %1202
      %1204 = vrot.lane.b32.xlu0 %v1157, 32
      %v1205 = vpop.permute.xlu0 %1204
      %1206 = vrot.lane.b32.xlu0 %v1159, 32
      %v1207 = vpop.permute.xlu0 %1206
      %1208 = vrot.lane.b32.xlu0 %v1161, 32
      %v1209 = vpop.permute.xlu0 %1208
      %1210 = vrot.lane.b32.xlu0 %v1163, 32
      %v1211 = vpop.permute.xlu0 %1210
      %1212 = vrot.lane.b32.xlu0 %v1165, 32
      %v1213 = vpop.permute.xlu0 %1212
      %1214 = vrot.lane.b32.xlu0 %v1167, 32
      %v1215 = vpop.permute.xlu0 %1214
      %1216 = vrot.lane.b32.xlu0 %v1169, 32
      %v1217 = vpop.permute.xlu0 %1216
      %1218 = vrot.lane.b32.xlu0 %v1171, 32
      %v1219 = vpop.permute.xlu0 %1218
      %v1220 = vsel %vm1052, %v1173, %v1175
      %v1221 = vsel %vm1052, %v1177, %v1179
      %v1222 = vsel %vm1052, %v1181, %v1183
      %v1223 = vsel %vm1052, %v1185, %v1187
      %v1224 = vsel %vm1052, %v1189, %v1191
      %v1225 = vsel %vm1052, %v1193, %v1195
      %v1226 = vsel %vm1052, %v1197, %v1199
      %v1227 = vsel %vm1052, %v1201, %v1203
      %v1228 = vsel %vm1052, %v1205, %v1207
      %v1229 = vsel %vm1052, %v1209, %v1211
      %v1230 = vsel %vm1052, %v1213, %v1215
      %v1231 = vsel %vm1052, %v1217, %v1219
      %1257 = vrot.lane.b32.xlu0 %v1094, 64
      %v1258 = vpop.permute.xlu0 %1257
      %1259 = vrot.lane.b32.xlu0 %v1011, 64
      %v1260 = vpop.permute.xlu0 %1259
      %1261 = vrot.lane.b32.xlu0 %v1095, 64
      %v1262 = vpop.permute.xlu0 %1261
      %1263 = vrot.lane.b32.xlu0 %v1013, 64
      %v1264 = vpop.permute.xlu0 %1263
      %1265 = vrot.lane.b32.xlu0 %v1096, 64
      %v1266 = vpop.permute.xlu0 %1265
      %1267 = vrot.lane.b32.xlu0 %v1015, 64
      %v1268 = vpop.permute.xlu0 %1267
      %1269 = vrot.lane.b32.xlu0 %v1097, 64
      %v1270 = vpop.permute.xlu0 %1269
      %1271 = vrot.lane.b32.xlu0 %v1017, 64
      %v1272 = vpop.permute.xlu0 %1271
      %1273 = vrot.lane.b32.xlu0 %v1098, 64
      %v1274 = vpop.permute.xlu0 %1273
      %1275 = vrot.lane.b32.xlu0 %v1019, 64
      %v1276 = vpop.permute.xlu0 %1275
      %1277 = vrot.lane.b32.xlu0 %v1099, 64
      %v1278 = vpop.permute.xlu0 %1277
      %1279 = vrot.lane.b32.xlu0 %v1021, 64
      %v1280 = vpop.permute.xlu0 %1279
      %1281 = vrot.lane.b32.xlu0 %v1100, 64
      %v1282 = vpop.permute.xlu0 %1281
      %1283 = vrot.lane.b32.xlu0 %v1023, 64
      %v1284 = vpop.permute.xlu0 %1283
      %1285 = vrot.lane.b32.xlu0 %v1101, 64
      %v1286 = vpop.permute.xlu0 %1285
      %1287 = vrot.lane.b32.xlu0 %v1025, 64
      %v1288 = vpop.permute.xlu0 %1287
      %1289 = vrot.lane.b32.xlu0 %v1102, 64
      %v1290 = vpop.permute.xlu0 %1289
      %1291 = vrot.lane.b32.xlu0 %v1027, 64
      %v1292 = vpop.permute.xlu0 %1291
      %1293 = vrot.lane.b32.xlu0 %v1103, 64
      %v1294 = vpop.permute.xlu0 %1293
      %1295 = vrot.lane.b32.xlu0 %v1029, 64
      %v1296 = vpop.permute.xlu0 %1295
      %1297 = vrot.lane.b32.xlu0 %v1104, 64
      %v1298 = vpop.permute.xlu0 %1297
      %1299 = vrot.lane.b32.xlu0 %v1031, 64
      %v1300 = vpop.permute.xlu0 %1299
      %1301 = vrot.lane.b32.xlu0 %v1105, 64
      %v1302 = vpop.permute.xlu0 %1301
      %1303 = vrot.lane.b32.xlu0 %v1033, 64
      %v1304 = vpop.permute.xlu0 %1303
      %v1305 = vsel %vm1071, %v1258, %v1260
      %v1306 = vsel %vm1071, %v1262, %v1264
      %v1307 = vsel %vm1071, %v1266, %v1268
      %v1308 = vsel %vm1071, %v1270, %v1272
      %v1309 = vsel %vm1071, %v1274, %v1276
      %v1310 = vsel %vm1071, %v1278, %v1280
      %v1311 = vsel %vm1071, %v1282, %v1284
      %v1312 = vsel %vm1071, %v1286, %v1288
      %v1313 = vsel %vm1071, %v1290, %v1292
      %v1314 = vsel %vm1071, %v1294, %v1296
      %v1315 = vsel %vm1071, %v1298, %v1300
      %v1316 = vsel %vm1071, %v1302, %v1304
      %v1343 = vrot.slane %v1105, 4
      %v1344 = vsel %vm1002, %v1168, %v1343
      %v1345 = vrot.slane %v1033, 4
      %v1346 = vsel %vm1002, %v1170, %v1345
      %v1347 = vrot.slane %v1106, 4
      %v1348 = vsel %vm1002, %v1343, %v1347
      %v1349 = vrot.slane %v1035, 4
      %v1350 = vsel %vm1002, %v1345, %v1349
      %v1351 = vrot.slane %v1107, 4
      %v1352 = vsel %vm1002, %v1347, %v1351
      %v1353 = vrot.slane %v1037, 4
      %v1354 = vsel %vm1002, %v1349, %v1353
      %1355 = vrot.lane.b32.xlu0 %v1137, 96
      %v1356 = vpop.permute.xlu0 %1355
      %1357 = vrot.lane.b32.xlu0 %v1139, 96
      %v1358 = vpop.permute.xlu0 %1357
      %1359 = vrot.lane.b32.xlu0 %v1141, 96
      %v1360 = vpop.permute.xlu0 %1359
      %1361 = vrot.lane.b32.xlu0 %v1143, 96
      %v1362 = vpop.permute.xlu0 %1361
      %1363 = vrot.lane.b32.xlu0 %v1145, 96
      %v1364 = vpop.permute.xlu0 %1363
      %1365 = vrot.lane.b32.xlu0 %v1147, 96
      %v1366 = vpop.permute.xlu0 %1365
      %1367 = vrot.lane.b32.xlu0 %v1149, 96
      %v1368 = vpop.permute.xlu0 %1367
      %1369 = vrot.lane.b32.xlu0 %v1151, 96
      %v1370 = vpop.permute.xlu0 %1369
      %1371 = vrot.lane.b32.xlu0 %v1153, 96
      %v1372 = vpop.permute.xlu0 %1371
      %1373 = vrot.lane.b32.xlu0 %v1155, 96
      %v1374 = vpop.permute.xlu0 %1373
      %1375 = vrot.lane.b32.xlu0 %v1157, 96
      %v1376 = vpop.permute.xlu0 %1375
      %1377 = vrot.lane.b32.xlu0 %v1159, 96
      %v1378 = vpop.permute.xlu0 %1377
      %1379 = vrot.lane.b32.xlu0 %v1161, 96
      %v1380 = vpop.permute.xlu0 %1379
      %1381 = vrot.lane.b32.xlu0 %v1163, 96
      %v1382 = vpop.permute.xlu0 %1381
      %1383 = vrot.lane.b32.xlu0 %v1165, 96
      %v1384 = vpop.permute.xlu0 %1383
      %1385 = vrot.lane.b32.xlu0 %v1167, 96
      %v1386 = vpop.permute.xlu0 %1385
      %1387 = vrot.lane.b32.xlu0 %v1169, 96
      %v1388 = vpop.permute.xlu0 %1387
      %1389 = vrot.lane.b32.xlu0 %v1171, 96
      %v1390 = vpop.permute.xlu0 %1389
      %1391 = vrot.lane.b32.xlu0 %v1344, 96
      %v1392 = vpop.permute.xlu0 %1391
      %1393 = vrot.lane.b32.xlu0 %v1346, 96
      %v1394 = vpop.permute.xlu0 %1393
      %1395 = vrot.lane.b32.xlu0 %v1348, 96
      %v1396 = vpop.permute.xlu0 %1395
      %1397 = vrot.lane.b32.xlu0 %v1350, 96
      %v1398 = vpop.permute.xlu0 %1397
      %1399 = vrot.lane.b32.xlu0 %v1352, 96
      %v1400 = vpop.permute.xlu0 %1399
      %1401 = vrot.lane.b32.xlu0 %v1354, 96
      %v1402 = vpop.permute.xlu0 %1401
      %v1403 = vsel %vm1090, %v1356, %v1358
      %v1404 = vsel %vm1090, %v1360, %v1362
      %v1405 = vsel %vm1090, %v1364, %v1366
      %v1406 = vsel %vm1090, %v1368, %v1370
      %v1407 = vsel %vm1090, %v1372, %v1374
      %v1408 = vsel %vm1090, %v1376, %v1378
      %v1409 = vsel %vm1090, %v1380, %v1382
      %v1410 = vsel %vm1090, %v1384, %v1386
      %v1411 = vsel %vm1090, %v1388, %v1390
      %v1412 = vsel %vm1090, %v1392, %v1394
      %v1413 = vsel %vm1090, %v1396, %v1398
      %v1414 = vsel %vm1090, %v1400, %v1402
      %v1439 = vsel %vm1052, %v1005, %v1173
      %v1440 = vsel %vm1052, %v1007, %v1177
      %v1441 = vsel %vm1052, %v1009, %v1181
      %v1442 = vsel %vm1052, %v1011, %v1185
      %v1443 = vsel %vm1052, %v1013, %v1189
      %v1444 = vsel %vm1052, %v1015, %v1193
      %v1445 = vsel %vm1052, %v1017, %v1197
      %v1446 = vsel %vm1052, %v1019, %v1201
      %v1447 = vsel %vm1052, %v1021, %v1205
      %v1448 = vsel %vm1052, %v1023, %v1209
      %v1449 = vsel %vm1052, %v1025, %v1213
      %v1450 = vsel %vm1052, %v1027, %v1217
      %v1451 = vsel %vm1071, %v1220, %v1258
      %v1452 = vsel %vm1071, %v1221, %v1262
      %v1453 = vsel %vm1071, %v1222, %v1266
      %v1454 = vsel %vm1071, %v1223, %v1270
      %v1455 = vsel %vm1071, %v1224, %v1274
      %v1456 = vsel %vm1071, %v1225, %v1278
      %v1457 = vsel %vm1071, %v1226, %v1282
      %v1458 = vsel %vm1071, %v1227, %v1286
      %v1459 = vsel %vm1071, %v1228, %v1290
      %v1460 = vsel %vm1071, %v1229, %v1294
      %v1461 = vsel %vm1071, %v1230, %v1298
      %v1462 = vsel %vm1071, %v1231, %v1302
      %v1463 = vsel %vm1090, %v1305, %v1356
      %v1464 = vsel %vm1090, %v1306, %v1360
      %v1465 = vsel %vm1090, %v1307, %v1364
      %v1466 = vsel %vm1090, %v1308, %v1368
      %v1467 = vsel %vm1090, %v1309, %v1372
      %v1468 = vsel %vm1090, %v1310, %v1376
      %v1469 = vsel %vm1090, %v1311, %v1380
      %v1470 = vsel %vm1090, %v1312, %v1384
      %v1471 = vsel %vm1090, %v1313, %v1388
      %v1472 = vsel %vm1090, %v1314, %v1392
      %v1473 = vsel %vm1090, %v1315, %v1396
      %v1474 = vsel %vm1090, %v1316, %v1400
      %v1475 = vld [vmem:[%s3] sm:$0xff]
      %v1476 = vld [vmem:[%s3 + $0x8] sm:$0xff]
      %v1477 = vld [vmem:[%s3 + $0x10] sm:$0xff]
      %v1478 = vld [vmem:[%s3 + $0x18] sm:$0xff]
      %v1479 = vld [vmem:[%s3 + $0x20] sm:$0xff]
      %v1480 = vld [vmem:[%s3 + $0x28] sm:$0xff]
      %v1481 = vld [vmem:[%s3 + $0x30] sm:$0xff]
      %v1482 = vld [vmem:[%s3 + $0x38] sm:$0xff]
      %v1483 = vld [vmem:[%s3 + $0x40] sm:$0xff]
      %v1484 = vld [vmem:[%s3 + $0x48] sm:$0xff]
      %v1485 = vld [vmem:[%s3 + $0x50] sm:$0xff]
      %v1486 = vld [vmem:[%s3 + $0x58] sm:$0xff]
      %v1487 = vld [vmem:[%s3 + $0x60] sm:$0xff]
      %v1488 = vld [vmem:[%s3 + $0x68] sm:$0xff]
      %v1489 = vld [vmem:[%s3 + $0x70] sm:$0xff]
      %v1490 = vld [vmem:[%s3 + $0x78] sm:$0xff]
      %v1491 = vld [vmem:[%s3 + $0x80] sm:$0xff]
      %v1492 = vld [vmem:[%s3 + $0x88] sm:$0xff]
      %v1493 = vld [vmem:[%s3 + $0x90] sm:$0xff]
      %v1494 = vld [vmem:[%s3 + $0x98] sm:$0xff]
      %v1495 = vld [vmem:[%s3 + $0xa0] sm:$0xff]
      %v1496 = vld [vmem:[%s3 + $0xa8] sm:$0xff]
      %v1497 = vld [vmem:[%s3 + $0xb0] sm:$0xff]
      %v1498 = vld [vmem:[%s3 + $0xb8] sm:$0xff]
      %v1499 = vld [vmem:[%s3 + $0xc0] sm:$0xff]
      %v1500 = vld [vmem:[%s3 + $0xc8] sm:$0xff]
      %v1501 = vld [vmem:[%s3 + $0xd0] sm:$0xff]
      %v1502 = vld [vmem:[%s3 + $0xd8] sm:$0xff]
      %v1503 = vld [vmem:[%s3 + $0xe0] sm:$0xff]
      %v1504 = vld [vmem:[%s3 + $0xe8] sm:$0xff]
      %v1505 = vld [vmem:[%s3 + $0xf0] sm:$0xff]
      %v1506 = vld [vmem:[%s3 + $0xf8] sm:$0xff]
      %v1507 = vld [vmem:[%s3 + $0x100] sm:$0xff]
      %v1508 = vld [vmem:[%s3 + $0x108] sm:$0xff]
      %v1509 = vld [vmem:[%s3 + $0x110] sm:$0xff]
      %v1510 = vld [vmem:[%s3 + $0x118] sm:$0xff]
      %v1511 = vld [vmem:[%s3 + $0x120] sm:$0xff]
      %v1512 = vld [vmem:[%s3 + $0x128] sm:$0xff]
      %v1513 = vld [vmem:[%s3 + $0x130] sm:$0xff]
      %v1514 = vld [vmem:[%s3 + $0x138] sm:$0xff]
      %v1515 = vld [vmem:[%s3 + $0x140] sm:$0xff]
      %v1516 = vld [vmem:[%s3 + $0x148] sm:$0xff]
      %v1517 = vld [vmem:[%s3 + $0x150] sm:$0xff]
      %v1518 = vld [vmem:[%s3 + $0x158] sm:$0xff]
      %v1519 = vld [vmem:[%s3 + $0x160] sm:$0xff]
      %v1520 = vld [vmem:[%s3 + $0x168] sm:$0xff]
      %v1521 = vld [vmem:[%s3 + $0x170] sm:$0xff]
      %v1522 = vld [vmem:[%s3 + $0x178] sm:$0xff]
      %v1523 = vld [vmem:[%s3 + $0x180] sm:$0xff]
      %v1524 = vld [vmem:[%s3 + $0x188] sm:$0xff]
      %v1525 = vld [vmem:[%s3 + $0x190] sm:$0xff]
      %v1526 = vld [vmem:[%s3 + $0x198] sm:$0xff]
      %v1527 = vld [vmem:[%s3 + $0x1a0] sm:$0xff]
      %v1528 = vld [vmem:[%s3 + $0x1a8] sm:$0xff]
      %v1529 = vld [vmem:[%s3 + $0x1b0] sm:$0xff]
      %v1530 = vld [vmem:[%s3 + $0x1b8] sm:$0xff]
      %v1531 = vld [vmem:[%s3 + $0x1c0] sm:$0xff]
      %v1532 = vld [vmem:[%s3 + $0x1c8] sm:$0xff]
      %v1533 = vld [vmem:[%s3 + $0x1d0] sm:$0xff]
      %v1534 = vld [vmem:[%s3 + $0x1d8] sm:$0xff]
      %v1535 = vld [vmem:[%s3 + $0x1e0] sm:$0xff]
      %v1536 = vld [vmem:[%s3 + $0x1e8] sm:$0xff]
      %v1537 = vld [vmem:[%s3 + $0x1f0] sm:$0xff]
      %v1538 = vld [vmem:[%s3 + $0x1f8] sm:$0xff]
      %v1539 = vld [vmem:[%s3 + $0x200] sm:$0xff]
      %v1540 = vld [vmem:[%s3 + $0x208] sm:$0xff]
      %v1541 = vld [vmem:[%s3 + $0x210] sm:$0xff]
      %v1542 = vld [vmem:[%s3 + $0x218] sm:$0xff]
      %v1543 = vld [vmem:[%s3 + $0x220] sm:$0xff]
      %v1544 = vld [vmem:[%s3 + $0x228] sm:$0xff]
      %v1545 = vld [vmem:[%s3 + $0x230] sm:$0xff]
      %v1546 = vld [vmem:[%s3 + $0x238] sm:$0xff]
      %v1547 = vld [vmem:[%s3 + $0x240] sm:$0xff]
      %v1548 = vld [vmem:[%s3 + $0x248] sm:$0xff]
      %v1549 = vld [vmem:[%s3 + $0x250] sm:$0xff]
      %v1550 = vld [vmem:[%s3 + $0x258] sm:$0xff]
      %v1551 = vld [vmem:[%s3 + $0x260] sm:$0xff]
      %v1552 = vld [vmem:[%s3 + $0x268] sm:$0xff]
      %v1553 = vld [vmem:[%s3 + $0x270] sm:$0xff]
      %v1554 = vld [vmem:[%s3 + $0x278] sm:$0xff]
      %v1555 = vld [vmem:[%s3 + $0x280] sm:$0xff]
      %v1556 = vld [vmem:[%s3 + $0x288] sm:$0xff]
      %v1557 = vld [vmem:[%s3 + $0x290] sm:$0xff]
      %v1558 = vld [vmem:[%s3 + $0x298] sm:$0xff]
      %v1559 = vld [vmem:[%s3 + $0x2a0] sm:$0xff]
      %v1560 = vld [vmem:[%s3 + $0x2a8] sm:$0xff]
      %v1561 = vld [vmem:[%s3 + $0x2b0] sm:$0xff]
      %v1562 = vld [vmem:[%s3 + $0x2b8] sm:$0xff]
      %v1563 = vld [vmem:[%s3 + $0x2c0] sm:$0xff]
      %v1564 = vld [vmem:[%s3 + $0x2c8] sm:$0xff]
      %v1565 = vld [vmem:[%s3 + $0x2d0] sm:$0xff]
      %v1566 = vld [vmem:[%s3 + $0x2d8] sm:$0xff]
      %v1567 = vld [vmem:[%s3 + $0x2e0] sm:$0xff]
      %v1568 = vld [vmem:[%s3 + $0x2e8] sm:$0xff]
      %v1569 = vld [vmem:[%s3 + $0x2f0] sm:$0xff]
      %v1570 = vld [vmem:[%s3 + $0x2f8] sm:$0xff]
      %v1571 = vld [vmem:[%s3 + $0x300] sm:$0xff]
      %v1572 = vld [vmem:[%s3 + $0x308] sm:$0xff]
      %v1573 = vld [vmem:[%s3 + $0x310] sm:$0xff]
      %v1574 = vld [vmem:[%s3 + $0x318] sm:$0xff]
      %v1575 = vld [vmem:[%s4] sm:$0x1]
      %v1577 = vlaneseq
      %v1578 = vshrl.u32 %v1577, 7
      %v1579 = vsub.s32 0, %v1578
      %v1580 = vrot.slane %v1575, %v1579
      %v1582 = vsel %vm1052, %v1017, 0
      %v1584 = vsel %vm1052, %v1019, 0
      %v1586 = vsel %vm1052, %v1021, 0
      %v1588 = vsel %vm1052, %v1023, 0
      %v1590 = vsel %vm1052, %v1025, 0
      %v1592 = vsel %vm1052, %v1027, 0
      %v1594 = vsel %vm1052, %v1029, 0
      %v1596 = vsel %vm1052, %v1031, 0
      %v1598 = vsel %vm1052, %v1033, 0
      %v1600 = vsel %vm1052, %v1035, 0
      %v1602 = vsel %vm1052, %v1037, 0
      %v1604 = vsel %vm1052, %v1039, 0
      %1606 = vmatprep.subr.mxu0 0.0
      %1607 = vmatpush1.msra.mxu0 %v1490
      %1608 = vmatprep.subr.mxu0 0.0
      %1609 = vmatpush1.msra.mxu0 %v1489
      %1610 = vmatprep.subr.mxu0 0.0
      %1611 = vmatpush1.msra.mxu0 %v1488
      %1612 = vmatprep.subr.mxu0 0.0
      %1613 = vmatpush1.msra.mxu0 %v1487
      %1614 = vmatprep.subr.mxu0 0.0
      %1615 = vmatpush1.msra.mxu0 %v1486
      %1616 = vmatprep.subr.mxu0 0.0
      %1617 = vmatpush1.msra.mxu0 %v1485
      %1618 = vmatprep.subr.mxu0 0.0
      %1619 = vmatpush1.msra.mxu0 %v1484
      %1620 = vmatprep.subr.mxu0 0.0
      %1621 = vmatpush1.msra.mxu0 %v1483
      %1622 = vmatprep.subr.mxu0 0.0
      %1623 = vmatpush1.msra.mxu0 %v1482
      %1624 = vmatprep.subr.mxu0 0.0
      %1625 = vmatpush1.msra.mxu0 %v1481
      %1626 = vmatprep.subr.mxu0 0.0
      %1627 = vmatpush1.msra.mxu0 %v1480
      %1628 = vmatprep.subr.mxu0 0.0
      %1629 = vmatpush1.msra.mxu0 %v1479
      %1630 = vmatprep.subr.mxu0 0.0
      %1631 = vmatpush1.msra.mxu0 %v1478
      %1632 = vmatprep.subr.mxu0 0.0
      %1633 = vmatpush1.msra.mxu0 %v1477
      %1634 = vmatprep.subr.mxu0 0.0
      %1635 = vmatpush1.msra.mxu0 %v1476
      %1636 = vmatprep.subr.mxu0 0.0
      %1637 = vmatpush1.msra.mxu0 %v1475
      %1638 = vmatprep.subr.mxu0 0.0
      %1639 = vmatpush2.msra.mxu0 %v1506
      %1640 = vmatprep.subr.mxu0 0.0
      %1641 = vmatpush2.msra.mxu0 %v1505
      %1642 = vmatprep.subr.mxu0 0.0
      %1643 = vmatpush2.msra.mxu0 %v1504
      %1644 = vmatprep.subr.mxu0 0.0
      %1645 = vmatpush2.msra.mxu0 %v1503
      %1646 = vmatprep.subr.mxu0 0.0
      %1647 = vmatpush2.msra.mxu0 %v1502
      %1648 = vmatprep.subr.mxu0 0.0
      %1649 = vmatpush2.msra.mxu0 %v1501
      %1650 = vmatprep.subr.mxu0 0.0
      %1651 = vmatpush2.msra.mxu0 %v1500
      %1652 = vmatprep.subr.mxu0 0.0
      %1653 = vmatpush2.msra.mxu0 %v1499
      %1654 = vmatprep.subr.mxu0 0.0
      %1655 = vmatpush2.msra.mxu0 %v1498
      %1656 = vmatprep.subr.mxu0 0.0
      %1657 = vmatpush2.msra.mxu0 %v1497
      %1658 = vmatprep.subr.mxu0 0.0
      %1659 = vmatpush2.msra.mxu0 %v1496
      %1660 = vmatprep.subr.mxu0 0.0
      %1661 = vmatpush2.msra.mxu0 %v1495
      %1662 = vmatprep.subr.mxu0 0.0
      %1663 = vmatpush2.msra.mxu0 %v1494
      %1664 = vmatprep.subr.mxu0 0.0
      %1665 = vmatpush2.msra.mxu0 %v1493
      %1666 = vmatprep.subr.mxu0 0.0
      %1667 = vmatpush2.msra.mxu0 %v1492
      %1668 = vmatprep.subr.mxu0 0.0
      %1669 = vmatpush2.msra.mxu0 %v1491
      %1670 = vmatprep.mubr.f32.mxu0 %v1439
      %1671 = vmatmul.mubr.f32.gmra.mxu0 %v1091
      %v1672 = vpop.f32.mrf.mxu0
      %v1673 = vadd.f32 %v1580, %v1672
      %v1674 = vpop.f32.mrf.mxu0
      %1675 = vmatprep.mubr.f32.mxu0 %v1440
      %1676 = vmatmul.mubr.f32.gmra.mxu0 %v1092
      %v1677 = vpop.f32.mrf.mxu0
      %v1678 = vadd.f32 %v1580, %v1677
      %v1679 = vpop.f32.mrf.mxu0
      %1680 = vmatprep.mubr.f32.mxu0 %v1441
      %1681 = vmatmul.mubr.f32.gmra.mxu0 %v1093
      %v1682 = vpop.f32.mrf.mxu0
      %v1683 = vadd.f32 %v1580, %v1682
      %v1684 = vpop.f32.mrf.mxu0
      %1685 = vmatprep.mubr.f32.mxu0 %v1442
      %1686 = vmatmul.mubr.f32.gmra.mxu0 %v1094
      %v1687 = vpop.f32.mrf.mxu0
      %v1688 = vadd.f32 %v1580, %v1687
      %v1689 = vpop.f32.mrf.mxu0
      %1690 = vmatprep.mubr.f32.mxu0 %v1443
      %1691 = vmatmul.mubr.f32.gmra.mxu0 %v1095
      %v1692 = vpop.f32.mrf.mxu0
      %v1693 = vadd.f32 %v1580, %v1692
      %v1694 = vpop.f32.mrf.mxu0
      %1695 = vmatprep.mubr.f32.mxu0 %v1444
      %1696 = vmatmul.mubr.f32.gmra.mxu0 %v1096
      %v1697 = vpop.f32.mrf.mxu0
      %v1698 = vadd.f32 %v1580, %v1697
      %v1699 = vpop.f32.mrf.mxu0
      %1700 = vmatprep.mubr.f32.mxu0 %v1445
      %1701 = vmatmul.mubr.f32.gmra.mxu0 %v1097
      %v1702 = vpop.f32.mrf.mxu0
      %v1703 = vadd.f32 %v1580, %v1702
      %v1704 = vpop.f32.mrf.mxu0
      %1705 = vmatprep.mubr.f32.mxu0 %v1446
      %1706 = vmatmul.mubr.f32.gmra.mxu0 %v1098
      %v1707 = vpop.f32.mrf.mxu0
      %v1708 = vadd.f32 %v1580, %v1707
      %v1709 = vpop.f32.mrf.mxu0
      %1710 = vmatprep.mubr.f32.mxu0 %v1447
      %1711 = vmatmul.mubr.f32.gmra.mxu0 %v1099
      %v1712 = vpop.f32.mrf.mxu0
      %v1713 = vadd.f32 %v1580, %v1712
      %v1714 = vpop.f32.mrf.mxu0
      %1715 = vmatprep.mubr.f32.mxu0 %v1448
      %1716 = vmatmul.mubr.f32.gmra.mxu0 %v1100
      %v1717 = vpop.f32.mrf.mxu0
      %v1718 = vadd.f32 %v1580, %v1717
      %v1719 = vpop.f32.mrf.mxu0
      %1720 = vmatprep.mubr.f32.mxu0 %v1449
      %1721 = vmatmul.mubr.f32.gmra.mxu0 %v1101
      %v1722 = vpop.f32.mrf.mxu0
      %v1723 = vadd.f32 %v1580, %v1722
      %v1724 = vpop.f32.mrf.mxu0
      %1725 = vmatprep.mubr.f32.mxu0 %v1450
      %1726 = vmatmul.mubr.f32.gmra.mxu0 %v1102
      %v1727 = vpop.f32.mrf.mxu0
      %v1728 = vadd.f32 %v1580, %v1727
      %v1729 = vpop.f32.mrf.mxu0
      %1730 = vdwg.mxu0
      %1731 = vmatprep.subr.mxu0 0.0
      %1732 = vmatpush1.msra.mxu0 %v1522
      %1733 = vmatprep.subr.mxu0 0.0
      %1734 = vmatpush1.msra.mxu0 %v1521
      %1735 = vmatprep.subr.mxu0 0.0
      %1736 = vmatpush1.msra.mxu0 %v1520
      %1737 = vmatprep.subr.mxu0 0.0
      %1738 = vmatpush1.msra.mxu0 %v1519
      %1739 = vmatprep.subr.mxu0 0.0
      %1740 = vmatpush1.msra.mxu0 %v1518
      %1741 = vmatprep.subr.mxu0 0.0
      %1742 = vmatpush1.msra.mxu0 %v1517
      %1743 = vmatprep.subr.mxu0 0.0
      %1744 = vmatpush1.msra.mxu0 %v1516
      %1745 = vmatprep.subr.mxu0 0.0
      %1746 = vmatpush1.msra.mxu0 %v1515
      %1747 = vmatprep.subr.mxu0 0.0
      %1748 = vmatpush1.msra.mxu0 %v1514
      %1749 = vmatprep.subr.mxu0 0.0
      %1750 = vmatpush1.msra.mxu0 %v1513
      %1751 = vmatprep.subr.mxu0 0.0
      %1752 = vmatpush1.msra.mxu0 %v1512
      %1753 = vmatprep.subr.mxu0 0.0
      %1754 = vmatpush1.msra.mxu0 %v1511
      %1755 = vmatprep.subr.mxu0 0.0
      %1756 = vmatpush1.msra.mxu0 %v1510
      %1757 = vmatprep.subr.mxu0 0.0
      %1758 = vmatpush1.msra.mxu0 %v1509
      %1759 = vmatprep.subr.mxu0 0.0
      %1760 = vmatpush1.msra.mxu0 %v1508
      %1761 = vmatprep.subr.mxu0 0.0
      %1762 = vmatpush1.msra.mxu0 %v1507
      %1763 = vmatprep.subr.mxu0 0.0
      %1764 = vmatpush2.msra.mxu0 %v1538
      %1765 = vmatprep.subr.mxu0 0.0
      %1766 = vmatpush2.msra.mxu0 %v1537
      %1767 = vmatprep.subr.mxu0 0.0
      %1768 = vmatpush2.msra.mxu0 %v1536
      %1769 = vmatprep.subr.mxu0 0.0
      %1770 = vmatpush2.msra.mxu0 %v1535
      %1771 = vmatprep.subr.mxu0 0.0
      %1772 = vmatpush2.msra.mxu0 %v1534
      %1773 = vmatprep.subr.mxu0 0.0
      %1774 = vmatpush2.msra.mxu0 %v1533
      %1775 = vmatprep.subr.mxu0 0.0
      %1776 = vmatpush2.msra.mxu0 %v1532
      %1777 = vmatprep.subr.mxu0 0.0
      %1778 = vmatpush2.msra.mxu0 %v1531
      %1779 = vmatprep.subr.mxu0 0.0
      %1780 = vmatpush2.msra.mxu0 %v1530
      %1781 = vmatprep.subr.mxu0 0.0
      %1782 = vmatpush2.msra.mxu0 %v1529
      %1783 = vmatprep.subr.mxu0 0.0
      %1784 = vmatpush2.msra.mxu0 %v1528
      %1785 = vmatprep.subr.mxu0 0.0
      %1786 = vmatpush2.msra.mxu0 %v1527
      %1787 = vmatprep.subr.mxu0 0.0
      %1788 = vmatpush2.msra.mxu0 %v1526
      %1789 = vmatprep.subr.mxu0 0.0
      %1790 = vmatpush2.msra.mxu0 %v1525
      %1791 = vmatprep.subr.mxu0 0.0
      %1792 = vmatpush2.msra.mxu0 %v1524
      %1793 = vmatprep.subr.mxu0 0.0
      %1794 = vmatpush2.msra.mxu0 %v1523
      %1795 = vmatprep.mubr.f32.mxu0 %v1463
      %1796 = vmatmul.mubr.f32.gmra.mxu0 %v1451
      %v1797 = vpop.f32.mrf.mxu0
      %v1798 = vadd.f32 %v1673, %v1797
      %v1799 = vpop.f32.mrf.mxu0
      %1800 = vmatprep.mubr.f32.mxu0 %v1464
      %1801 = vmatmul.mubr.f32.gmra.mxu0 %v1452
      %v1802 = vpop.f32.mrf.mxu0
      %v1803 = vadd.f32 %v1678, %v1802
      %v1804 = vpop.f32.mrf.mxu0
      %1805 = vmatprep.mubr.f32.mxu0 %v1465
      %1806 = vmatmul.mubr.f32.gmra.mxu0 %v1453
      %v1807 = vpop.f32.mrf.mxu0
      %v1808 = vadd.f32 %v1683, %v1807
      %v1809 = vpop.f32.mrf.mxu0
      %1810 = vmatprep.mubr.f32.mxu0 %v1466
      %1811 = vmatmul.mubr.f32.gmra.mxu0 %v1454
      %v1812 = vpop.f32.mrf.mxu0
      %v1813 = vadd.f32 %v1688, %v1812
      %v1814 = vpop.f32.mrf.mxu0
      %1815 = vmatprep.mubr.f32.mxu0 %v1467
      %1816 = vmatmul.mubr.f32.gmra.mxu0 %v1455
      %v1817 = vpop.f32.mrf.mxu0
      %v1818 = vadd.f32 %v1693, %v1817
      %v1819 = vpop.f32.mrf.mxu0
      %1820 = vmatprep.mubr.f32.mxu0 %v1468
      %1821 = vmatmul.mubr.f32.gmra.mxu0 %v1456
      %v1822 = vpop.f32.mrf.mxu0
      %v1823 = vadd.f32 %v1698, %v1822
      %v1824 = vpop.f32.mrf.mxu0
      %1825 = vmatprep.mubr.f32.mxu0 %v1469
      %1826 = vmatmul.mubr.f32.gmra.mxu0 %v1457
      %v1827 = vpop.f32.mrf.mxu0
      %v1828 = vadd.f32 %v1703, %v1827
      %v1829 = vpop.f32.mrf.mxu0
      %1830 = vmatprep.mubr.f32.mxu0 %v1470
      %1831 = vmatmul.mubr.f32.gmra.mxu0 %v1458
      %v1832 = vpop.f32.mrf.mxu0
      %v1833 = vadd.f32 %v1708, %v1832
      %v1834 = vpop.f32.mrf.mxu0
      %1835 = vmatprep.mubr.f32.mxu0 %v1471
      %1836 = vmatmul.mubr.f32.gmra.mxu0 %v1459
      %v1837 = vpop.f32.mrf.mxu0
      %v1838 = vadd.f32 %v1713, %v1837
      %v1839 = vpop.f32.mrf.mxu0
      %1840 = vmatprep.mubr.f32.mxu0 %v1472
      %1841 = vmatmul.mubr.f32.gmra.mxu0 %v1460
      %v1842 = vpop.f32.mrf.mxu0
      %v1843 = vadd.f32 %v1718, %v1842
      %v1844 = vpop.f32.mrf.mxu0
      %1845 = vmatprep.mubr.f32.mxu0 %v1473
      %1846 = vmatmul.mubr.f32.gmra.mxu0 %v1461
      %v1847 = vpop.f32.mrf.mxu0
      %v1848 = vadd.f32 %v1723, %v1847
      %v1849 = vpop.f32.mrf.mxu0
      %1850 = vmatprep.mubr.f32.mxu0 %v1474
      %1851 = vmatmul.mubr.f32.gmra.mxu0 %v1462
      %v1852 = vpop.f32.mrf.mxu0
      %v1853 = vadd.f32 %v1728, %v1852
      %v1854 = vpop.f32.mrf.mxu0
      %1855 = vdwg.mxu0
      %1856 = vmatprep.subr.mxu0 0.0
      %1857 = vmatpush1.msra.mxu0 %v1554
      %1858 = vmatprep.subr.mxu0 0.0
      %1859 = vmatpush1.msra.mxu0 %v1553
      %1860 = vmatprep.subr.mxu0 0.0
      %1861 = vmatpush1.msra.mxu0 %v1552
      %1862 = vmatprep.subr.mxu0 0.0
      %1863 = vmatpush1.msra.mxu0 %v1551
      %1864 = vmatprep.subr.mxu0 0.0
      %1865 = vmatpush1.msra.mxu0 %v1550
      %1866 = vmatprep.subr.mxu0 0.0
      %1867 = vmatpush1.msra.mxu0 %v1549
      %1868 = vmatprep.subr.mxu0 0.0
      %1869 = vmatpush1.msra.mxu0 %v1548
      %1870 = vmatprep.subr.mxu0 0.0
      %1871 = vmatpush1.msra.mxu0 %v1547
      %1872 = vmatprep.subr.mxu0 0.0
      %1873 = vmatpush1.msra.mxu0 %v1546
      %1874 = vmatprep.subr.mxu0 0.0
      %1875 = vmatpush1.msra.mxu0 %v1545
      %1876 = vmatprep.subr.mxu0 0.0
      %1877 = vmatpush1.msra.mxu0 %v1544
      %1878 = vmatprep.subr.mxu0 0.0
      %1879 = vmatpush1.msra.mxu0 %v1543
      %1880 = vmatprep.subr.mxu0 0.0
      %1881 = vmatpush1.msra.mxu0 %v1542
      %1882 = vmatprep.subr.mxu0 0.0
      %1883 = vmatpush1.msra.mxu0 %v1541
      %1884 = vmatprep.subr.mxu0 0.0
      %1885 = vmatpush1.msra.mxu0 %v1540
      %1886 = vmatprep.subr.mxu0 0.0
      %1887 = vmatpush1.msra.mxu0 %v1539
      %1888 = vmatprep.subr.mxu0 0.0
      %1889 = vmatpush2.msra.mxu0 %v1570
      %1890 = vmatprep.subr.mxu0 0.0
      %1891 = vmatpush2.msra.mxu0 %v1569
      %1892 = vmatprep.subr.mxu0 0.0
      %1893 = vmatpush2.msra.mxu0 %v1568
      %1894 = vmatprep.subr.mxu0 0.0
      %1895 = vmatpush2.msra.mxu0 %v1567
      %1896 = vmatprep.subr.mxu0 0.0
      %1897 = vmatpush2.msra.mxu0 %v1566
      %1898 = vmatprep.subr.mxu0 0.0
      %1899 = vmatpush2.msra.mxu0 %v1565
      %1900 = vmatprep.subr.mxu0 0.0
      %1901 = vmatpush2.msra.mxu0 %v1564
      %1902 = vmatprep.subr.mxu0 0.0
      %1903 = vmatpush2.msra.mxu0 %v1563
      %1904 = vmatprep.subr.mxu0 0.0
      %1905 = vmatpush2.msra.mxu0 %v1562
      %1906 = vmatprep.subr.mxu0 0.0
      %1907 = vmatpush2.msra.mxu0 %v1561
      %1908 = vmatprep.subr.mxu0 0.0
      %1909 = vmatpush2.msra.mxu0 %v1560
      %1910 = vmatprep.subr.mxu0 0.0
      %1911 = vmatpush2.msra.mxu0 %v1559
      %1912 = vmatprep.subr.mxu0 0.0
      %1913 = vmatpush2.msra.mxu0 %v1558
      %1914 = vmatprep.subr.mxu0 0.0
      %1915 = vmatpush2.msra.mxu0 %v1557
      %1916 = vmatprep.subr.mxu0 0.0
      %1917 = vmatpush2.msra.mxu0 %v1556
      %1918 = vmatprep.subr.mxu0 0.0
      %1919 = vmatpush2.msra.mxu0 %v1555
      %1920 = vmatprep.mubr.f32.mxu0 %v1097
      %1921 = vmatmul.mubr.f32.gmra.mxu0 %v1403
      %v1922 = vpop.f32.mrf.mxu0
      %v1923 = vadd.f32 %v1798, %v1922
      %v1924 = vpop.f32.mrf.mxu0
      %1925 = vmatprep.mubr.f32.mxu0 %v1098
      %1926 = vmatmul.mubr.f32.gmra.mxu0 %v1404
      %v1927 = vpop.f32.mrf.mxu0
      %v1928 = vadd.f32 %v1803, %v1927
      %v1929 = vpop.f32.mrf.mxu0
      %1930 = vmatprep.mubr.f32.mxu0 %v1099
      %1931 = vmatmul.mubr.f32.gmra.mxu0 %v1405
      %v1932 = vpop.f32.mrf.mxu0
      %v1933 = vadd.f32 %v1808, %v1932
      %v1934 = vpop.f32.mrf.mxu0
      %1935 = vmatprep.mubr.f32.mxu0 %v1100
      %1936 = vmatmul.mubr.f32.gmra.mxu0 %v1406
      %v1937 = vpop.f32.mrf.mxu0
      %v1938 = vadd.f32 %v1813, %v1937
      %v1939 = vpop.f32.mrf.mxu0
      %1940 = vmatprep.mubr.f32.mxu0 %v1101
      %1941 = vmatmul.mubr.f32.gmra.mxu0 %v1407
      %v1942 = vpop.f32.mrf.mxu0
      %v1943 = vadd.f32 %v1818, %v1942
      %v1944 = vpop.f32.mrf.mxu0
      %1945 = vmatprep.mubr.f32.mxu0 %v1102
      %1946 = vmatmul.mubr.f32.gmra.mxu0 %v1408
      %v1947 = vpop.f32.mrf.mxu0
      %v1948 = vadd.f32 %v1823, %v1947
      %v1949 = vpop.f32.mrf.mxu0
      %1950 = vmatprep.mubr.f32.mxu0 %v1103
      %1951 = vmatmul.mubr.f32.gmra.mxu0 %v1409
      %v1952 = vpop.f32.mrf.mxu0
      %v1953 = vadd.f32 %v1828, %v1952
      %v1954 = vpop.f32.mrf.mxu0
      %1955 = vmatprep.mubr.f32.mxu0 %v1104
      %1956 = vmatmul.mubr.f32.gmra.mxu0 %v1410
      %v1957 = vpop.f32.mrf.mxu0
      %v1958 = vadd.f32 %v1833, %v1957
      %v1959 = vpop.f32.mrf.mxu0
      %1960 = vmatprep.mubr.f32.mxu0 %v1105
      %1961 = vmatmul.mubr.f32.gmra.mxu0 %v1411
      %v1962 = vpop.f32.mrf.mxu0
      %v1963 = vadd.f32 %v1838, %v1962
      %v1964 = vpop.f32.mrf.mxu0
      %1965 = vmatprep.mubr.f32.mxu0 %v1106
      %1966 = vmatmul.mubr.f32.gmra.mxu0 %v1412
      %v1967 = vpop.f32.mrf.mxu0
      %v1968 = vadd.f32 %v1843, %v1967
      %v1969 = vpop.f32.mrf.mxu0
      %1970 = vmatprep.mubr.f32.mxu0 %v1107
      %1971 = vmatmul.mubr.f32.gmra.mxu0 %v1413
      %v1972 = vpop.f32.mrf.mxu0
      %v1973 = vadd.f32 %v1848, %v1972
      %v1974 = vpop.f32.mrf.mxu0
      %1975 = vmatprep.mubr.f32.mxu0 %v1108
      %1976 = vmatmul.mubr.f32.gmra.mxu0 %v1414
      %v1977 = vpop.f32.mrf.mxu0
      %v1978 = vadd.f32 %v1853, %v1977
      %v1979 = vpop.f32.mrf.mxu0
      %1980 = vdwg.mxu0
      %1981 = vmatprep.subr.mxu0 0.0
      %1982 = vmatpush1.msra.mxu0 0.0
      %1983 = vmatprep.subr.mxu0 0.0
      %1984 = vmatpush1.msra.mxu0 0.0
      %1985 = vmatprep.subr.mxu0 0.0
      %1986 = vmatpush1.msra.mxu0 0.0
      %1987 = vmatprep.subr.mxu0 0.0
      %1988 = vmatpush1.msra.mxu0 0.0
      %1989 = vmatprep.subr.mxu0 0.0
      %1990 = vmatpush1.msra.mxu0 0.0
      %1991 = vmatprep.subr.mxu0 0.0
      %1992 = vmatpush1.msra.mxu0 0.0
      %1993 = vmatprep.subr.mxu0 0.0
      %1994 = vmatpush1.msra.mxu0 0.0
      %1995 = vmatprep.subr.mxu0 0.0
      %1996 = vmatpush1.msra.mxu0 0.0
      %1997 = vmatprep.subr.mxu0 0.0
      %1998 = vmatpush1.msra.mxu0 0.0
      %1999 = vmatprep.subr.mxu0 0.0
      %2000 = vmatpush1.msra.mxu0 0.0
      %2001 = vmatprep.subr.mxu0 0.0
      %2002 = vmatpush1.msra.mxu0 0.0
      %2003 = vmatprep.subr.mxu0 0.0
      %2004 = vmatpush1.msra.mxu0 0.0
      %2005 = vmatprep.subr.mxu0 0.0
      %2006 = vmatpush1.msra.mxu0 %v1574
      %2007 = vmatprep.subr.mxu0 0.0
      %2008 = vmatpush1.msra.mxu0 %v1573
      %2009 = vmatprep.subr.mxu0 0.0
      %2010 = vmatpush1.msra.mxu0 %v1572
      %2011 = vmatprep.subr.mxu0 0.0
      %2012 = vmatpush1.msra.mxu0 %v1571
      %2013 = vmatprep.subr.mxu0 0.0
      %2014 = vmatpush2.msra.mxu0 0.0
      %2015 = vmatprep.subr.mxu0 0.0
      %2016 = vmatpush2.msra.mxu0 0.0
      %2017 = vmatprep.subr.mxu0 0.0
      %2018 = vmatpush2.msra.mxu0 0.0
      %2019 = vmatprep.subr.mxu0 0.0
      %2020 = vmatpush2.msra.mxu0 0.0
      %2021 = vmatprep.subr.mxu0 0.0
      %2022 = vmatpush2.msra.mxu0 0.0
      %2023 = vmatprep.subr.mxu0 0.0
      %2024 = vmatpush2.msra.mxu0 0.0
      %2025 = vmatprep.subr.mxu0 0.0
      %2026 = vmatpush2.msra.mxu0 0.0
      %2027 = vmatprep.subr.mxu0 0.0
      %2028 = vmatpush2.msra.mxu0 0.0
      %2029 = vmatprep.subr.mxu0 0.0
      %2030 = vmatpush2.msra.mxu0 0.0
      %2031 = vmatprep.subr.mxu0 0.0
      %2032 = vmatpush2.msra.mxu0 0.0
      %2033 = vmatprep.subr.mxu0 0.0
      %2034 = vmatpush2.msra.mxu0 0.0
      %2035 = vmatprep.subr.mxu0 0.0
      %2036 = vmatpush2.msra.mxu0 0.0
      %2037 = vmatprep.subr.mxu0 0.0
      %2038 = vmatpush2.msra.mxu0 0.0
      %2039 = vmatprep.subr.mxu0 0.0
      %2040 = vmatpush2.msra.mxu0 0.0
      %2041 = vmatprep.subr.mxu0 0.0
      %2042 = vmatpush2.msra.mxu0 0.0
      %2043 = vmatprep.subr.mxu0 0.0
      %2044 = vmatpush2.msra.mxu0 0.0
      %2045 = vmatprep.mubr.f32.mxu0 0.0
      %2046 = vmatmul.mubr.f32.gmra.mxu0 %v1582
      %v2047 = vpop.f32.mrf.mxu0
      %v2048 = vadd.f32 %v1923, %v2047
      %v2049 = vpop.f32.mrf.mxu0
      %2050 = vmatprep.mubr.f32.mxu0 0.0
      %2051 = vmatmul.mubr.f32.gmra.mxu0 %v1584
      %v2052 = vpop.f32.mrf.mxu0
      %v2053 = vadd.f32 %v1928, %v2052
      %v2054 = vpop.f32.mrf.mxu0
      %2055 = vmatprep.mubr.f32.mxu0 0.0
      %2056 = vmatmul.mubr.f32.gmra.mxu0 %v1586
      %v2057 = vpop.f32.mrf.mxu0
      %v2058 = vadd.f32 %v1933, %v2057
      %v2059 = vpop.f32.mrf.mxu0
      %2060 = vmatprep.mubr.f32.mxu0 0.0
      %2061 = vmatmul.mubr.f32.gmra.mxu0 %v1588
      %v2062 = vpop.f32.mrf.mxu0
      %v2063 = vadd.f32 %v1938, %v2062
      %v2064 = vpop.f32.mrf.mxu0
      %2065 = vmatprep.mubr.f32.mxu0 0.0
      %2066 = vmatmul.mubr.f32.gmra.mxu0 %v1590
      %v2067 = vpop.f32.mrf.mxu0
      %v2068 = vadd.f32 %v1943, %v2067
      %v2069 = vpop.f32.mrf.mxu0
      %2070 = vmatprep.mubr.f32.mxu0 0.0
      %2071 = vmatmul.mubr.f32.gmra.mxu0 %v1592
      %v2072 = vpop.f32.mrf.mxu0
      %v2073 = vadd.f32 %v1948, %v2072
      %v2074 = vpop.f32.mrf.mxu0
      %2075 = vmatprep.mubr.f32.mxu0 0.0
      %2076 = vmatmul.mubr.f32.gmra.mxu0 %v1594
      %v2077 = vpop.f32.mrf.mxu0
      %v2078 = vadd.f32 %v1953, %v2077
      %v2079 = vpop.f32.mrf.mxu0
      %2080 = vmatprep.mubr.f32.mxu0 0.0
      %2081 = vmatmul.mubr.f32.gmra.mxu0 %v1596
      %v2082 = vpop.f32.mrf.mxu0
      %v2083 = vadd.f32 %v1958, %v2082
      %v2084 = vpop.f32.mrf.mxu0
      %2085 = vmatprep.mubr.f32.mxu0 0.0
      %2086 = vmatmul.mubr.f32.gmra.mxu0 %v1598
      %v2087 = vpop.f32.mrf.mxu0
      %v2088 = vadd.f32 %v1963, %v2087
      %v2089 = vpop.f32.mrf.mxu0
      %2090 = vmatprep.mubr.f32.mxu0 0.0
      %2091 = vmatmul.mubr.f32.gmra.mxu0 %v1600
      %v2092 = vpop.f32.mrf.mxu0
      %v2093 = vadd.f32 %v1968, %v2092
      %v2094 = vpop.f32.mrf.mxu0
      %2095 = vmatprep.mubr.f32.mxu0 0.0
      %2096 = vmatmul.mubr.f32.gmra.mxu0 %v1602
      %v2097 = vpop.f32.mrf.mxu0
      %v2098 = vadd.f32 %v1973, %v2097
      %v2099 = vpop.f32.mrf.mxu0
      %2100 = vmatprep.mubr.f32.mxu0 0.0
      %2101 = vmatmul.mubr.f32.gmra.mxu0 %v1604
      %v2102 = vpop.f32.mrf.mxu0
      %v2103 = vadd.f32 %v1978, %v2102
      %v2104 = vpop.f32.mrf.mxu0
      %2105 = vdwg.mxu0
      %v2118 = vrot.slane %v2048, 1
      %v2119 = vrot.slane %v2053, 1
      %v2120 = vsel %vm726, %v2118, %v2119
      %v2121 = vrot.slane %v2058, 1
      %v2122 = vsel %vm726, %v2119, %v2121
      %v2123 = vrot.slane %v2063, 1
      %v2124 = vsel %vm726, %v2121, %v2123
      %v2125 = vrot.slane %v2068, 1
      %v2126 = vsel %vm726, %v2123, %v2125
      %v2127 = vrot.slane %v2073, 1
      %v2128 = vsel %vm726, %v2125, %v2127
      %v2129 = vrot.slane %v2078, 1
      %v2130 = vsel %vm726, %v2127, %v2129
      %v2131 = vrot.slane %v2083, 1
      %v2132 = vsel %vm726, %v2129, %v2131
      %v2133 = vrot.slane %v2088, 1
      %v2134 = vsel %vm726, %v2131, %v2133
      %v2135 = vrot.slane %v2093, 1
      %v2136 = vsel %vm726, %v2133, %v2135
      %v2137 = vrot.slane %v2098, 1
      %v2138 = vsel %vm726, %v2135, %v2137
      %v2139 = vrot.slane %v2103, 1
      %v2140 = vsel %vm726, %v2137, %v2139
      %v2153 = vmax.f32 %v2048, %v2120
      %v2154 = vmax.f32 %v2053, %v2122
      %v2155 = vmax.f32 %v2058, %v2124
      %v2156 = vmax.f32 %v2063, %v2126
      %v2157 = vmax.f32 %v2068, %v2128
      %v2158 = vmax.f32 %v2073, %v2130
      %v2159 = vmax.f32 %v2078, %v2132
      %v2160 = vmax.f32 %v2083, %v2134
      %v2161 = vmax.f32 %v2088, %v2136
      %v2162 = vmax.f32 %v2093, %v2138
      %v2163 = vmax.f32 %v2098, %v2140
      %v2164 = vmax.f32 %v2103, %v2139
      %v2173 = vrot.slane %v2154, 4
      %v2174 = vrot.slane %v2155, 4
      %v2175 = vsel %vm1002, %v2173, %v2174
      %v2176 = vrot.slane %v2157, 4
      %v2177 = vrot.slane %v2158, 4
      %v2178 = vsel %vm1002, %v2176, %v2177
      %v2179 = vrot.slane %v2160, 4
      %v2180 = vrot.slane %v2161, 4
      %v2181 = vsel %vm1002, %v2179, %v2180
      %v2182 = vrot.slane %v2163, 4
      %v2183 = vrot.slane %v2164, 4
      %v2184 = vsel %vm1002, %v2182, %v2183
      %v2189 = vmax.f32 %v2153, %v2175
      %v2190 = vmax.f32 %v2156, %v2178
      %v2191 = vmax.f32 %v2159, %v2181
      %v2192 = vmax.f32 %v2162, %v2184
      %v2194 = vrot.slane %v2189, 2
      %2195 = vrot.lane.b32.xlu0 %v2194, 64
      %v2196 = vpop.permute.xlu0 %2195
      %v2198 = vrot.slane %v2189, 4
      %v2200 = vrot.slane %v2189, 6
      %2201 = vrot.lane.b32.xlu0 %v2200, 64
      %v2202 = vpop.permute.xlu0 %2201
      %v2205 = vrot.slane %v2190, 2
      %2206 = vrot.lane.b32.xlu0 %v2205, 64
      %v2207 = vpop.permute.xlu0 %2206
      %v2209 = vrot.slane %v2190, 4
      %v2211 = vrot.slane %v2190, 6
      %2212 = vrot.lane.b32.xlu0 %v2211, 64
      %v2213 = vpop.permute.xlu0 %2212
      %v2216 = vrot.slane %v2191, 2
      %2217 = vrot.lane.b32.xlu0 %v2216, 64
      %v2218 = vpop.permute.xlu0 %2217
      %v2220 = vrot.slane %v2191, 4
      %v2222 = vrot.slane %v2191, 6
      %2223 = vrot.lane.b32.xlu0 %v2222, 64
      %v2224 = vpop.permute.xlu0 %2223
      %v2227 = vrot.slane %v2192, 2
      %2228 = vrot.lane.b32.xlu0 %v2227, 64
      %v2229 = vpop.permute.xlu0 %2228
      %v2231 = vrot.slane %v2192, 4
      %v2233 = vrot.slane %v2192, 6
      %2234 = vrot.lane.b32.xlu0 %v2233, 64
      %v2235 = vpop.permute.xlu0 %2234
      %v2237 = vsel %vm1071, %v2189, %v2196
      %v2238 = vsel %vm1071, %v2198, %v2202
      %v2239 = vsel %vm1071, %v2190, %v2207
      %v2240 = vsel %vm1071, %v2209, %v2213
      %v2241 = vsel %vm1071, %v2191, %v2218
      %v2242 = vsel %vm1071, %v2220, %v2224
      %v2243 = vsel %vm1071, %v2192, %v2229
      %v2244 = vsel %vm1071, %v2231, %v2235
      %v2245 = vld [vmem:[%s5] sm:$0xff]
      %v2246 = vld [vmem:[%s5 + $0x8] sm:$0xff]
      %v2247 = vld [vmem:[%s5 + $0x10] sm:$0xff]
      %v2248 = vld [vmem:[%s5 + $0x18] sm:$0xff]
      %v2249 = vld [vmem:[%s5 + $0x20] sm:$0xff]
      %v2250 = vld [vmem:[%s5 + $0x28] sm:$0xff]
      %v2251 = vld [vmem:[%s5 + $0x30] sm:$0xff]
      %v2252 = vld [vmem:[%s5 + $0x38] sm:$0xff]
      %v2253 = vld [vmem:[%s5 + $0x40] sm:$0xff]
      %v2254 = vld [vmem:[%s5 + $0x48] sm:$0xff]
      %v2255 = vld [vmem:[%s5 + $0x50] sm:$0xff]
      %v2256 = vld [vmem:[%s5 + $0x58] sm:$0xff]
      %v2257 = vld [vmem:[%s5 + $0x60] sm:$0xff]
      %v2258 = vld [vmem:[%s5 + $0x68] sm:$0xff]
      %v2259 = vld [vmem:[%s5 + $0x70] sm:$0xff]
      %v2260 = vld [vmem:[%s5 + $0x78] sm:$0xff]
      %v2261 = vld [vmem:[%s5 + $0x80] sm:$0xff]
      %v2262 = vld [vmem:[%s5 + $0x88] sm:$0xff]
      %v2263 = vld [vmem:[%s5 + $0x90] sm:$0xff]
      %v2264 = vld [vmem:[%s5 + $0x98] sm:$0xff]
      %v2265 = vld [vmem:[%s5 + $0xa0] sm:$0xff]
      %v2266 = vld [vmem:[%s5 + $0xa8] sm:$0xff]
      %v2267 = vld [vmem:[%s5 + $0xb0] sm:$0xff]
      %v2268 = vld [vmem:[%s5 + $0xb8] sm:$0xff]
      %v2269 = vld [vmem:[%s5 + $0xc0] sm:$0xff]
      %v2270 = vld [vmem:[%s5 + $0xc8] sm:$0xff]
      %v2271 = vld [vmem:[%s5 + $0xd0] sm:$0xff]
      %v2272 = vld [vmem:[%s5 + $0xd8] sm:$0xff]
      %v2273 = vld [vmem:[%s5 + $0xe0] sm:$0xff]
      %v2274 = vld [vmem:[%s5 + $0xe8] sm:$0xff]
      %v2275 = vld [vmem:[%s5 + $0xf0] sm:$0xff]
      %v2276 = vld [vmem:[%s5 + $0xf8] sm:$0xff]
      %v2277 = vld [vmem:[%s5 + $0x100] sm:$0xff]
      %v2278 = vld [vmem:[%s5 + $0x108] sm:$0xff]
      %v2279 = vld [vmem:[%s5 + $0x110] sm:$0xff]
      %v2280 = vld [vmem:[%s5 + $0x118] sm:$0xff]
      %v2281 = vld [vmem:[%s5 + $0x120] sm:$0xff]
      %v2282 = vld [vmem:[%s5 + $0x128] sm:$0xff]
      %v2283 = vld [vmem:[%s5 + $0x130] sm:$0xff]
      %v2284 = vld [vmem:[%s5 + $0x138] sm:$0xff]
      %v2285 = vld [vmem:[%s5 + $0x140] sm:$0xff]
      %v2286 = vld [vmem:[%s5 + $0x148] sm:$0xff]
      %v2287 = vld [vmem:[%s5 + $0x150] sm:$0xff]
      %v2288 = vld [vmem:[%s5 + $0x158] sm:$0xff]
      %v2289 = vld [vmem:[%s5 + $0x160] sm:$0xff]
      %v2290 = vld [vmem:[%s5 + $0x168] sm:$0xff]
      %v2291 = vld [vmem:[%s5 + $0x170] sm:$0xff]
      %v2292 = vld [vmem:[%s5 + $0x178] sm:$0xff]
      %v2293 = vld [vmem:[%s5 + $0x180] sm:$0xff]
      %v2294 = vld [vmem:[%s5 + $0x188] sm:$0xff]
      %v2295 = vld [vmem:[%s5 + $0x190] sm:$0xff]
      %v2296 = vld [vmem:[%s5 + $0x198] sm:$0xff]
      %v2297 = vld [vmem:[%s5 + $0x1a0] sm:$0xff]
      %v2298 = vld [vmem:[%s5 + $0x1a8] sm:$0xff]
      %v2299 = vld [vmem:[%s5 + $0x1b0] sm:$0xff]
      %v2300 = vld [vmem:[%s5 + $0x1b8] sm:$0xff]
      %v2301 = vld [vmem:[%s5 + $0x1c0] sm:$0xff]
      %v2302 = vld [vmem:[%s5 + $0x1c8] sm:$0xff]
      %v2303 = vld [vmem:[%s5 + $0x1d0] sm:$0xff]
      %v2304 = vld [vmem:[%s5 + $0x1d8] sm:$0xff]
      %v2305 = vld [vmem:[%s5 + $0x1e0] sm:$0xff]
      %v2306 = vld [vmem:[%s5 + $0x1e8] sm:$0xff]
      %v2307 = vld [vmem:[%s5 + $0x1f0] sm:$0xff]
      %v2308 = vld [vmem:[%s5 + $0x1f8] sm:$0xff]
      %v2309 = vld [vmem:[%s5 + $0x200] sm:$0xff]
      %v2310 = vld [vmem:[%s5 + $0x208] sm:$0xff]
      %v2311 = vld [vmem:[%s5 + $0x210] sm:$0xff]
      %v2312 = vld [vmem:[%s5 + $0x218] sm:$0xff]
      %v2313 = vld [vmem:[%s5 + $0x220] sm:$0xff]
      %v2314 = vld [vmem:[%s5 + $0x228] sm:$0xff]
      %v2315 = vld [vmem:[%s5 + $0x230] sm:$0xff]
      %v2316 = vld [vmem:[%s5 + $0x238] sm:$0xff]
      %v2317 = vld [vmem:[%s5 + $0x240] sm:$0xff]
      %v2318 = vld [vmem:[%s5 + $0x248] sm:$0xff]
      %v2319 = vld [vmem:[%s5 + $0x250] sm:$0xff]
      %v2320 = vld [vmem:[%s5 + $0x258] sm:$0xff]
      %v2321 = vld [vmem:[%s5 + $0x260] sm:$0xff]
      %v2322 = vld [vmem:[%s5 + $0x268] sm:$0xff]
      %v2323 = vld [vmem:[%s5 + $0x270] sm:$0xff]
      %v2324 = vld [vmem:[%s5 + $0x278] sm:$0xff]
      %v2325 = vld [vmem:[%s5 + $0x280] sm:$0xff]
      %v2326 = vld [vmem:[%s5 + $0x288] sm:$0xff]
      %v2327 = vld [vmem:[%s5 + $0x290] sm:$0xff]
      %v2328 = vld [vmem:[%s5 + $0x298] sm:$0xff]
      %v2329 = vld [vmem:[%s5 + $0x2a0] sm:$0xff]
      %v2330 = vld [vmem:[%s5 + $0x2a8] sm:$0xff]
      %v2331 = vld [vmem:[%s5 + $0x2b0] sm:$0xff]
      %v2332 = vld [vmem:[%s5 + $0x2b8] sm:$0xff]
      %v2333 = vld [vmem:[%s5 + $0x2c0] sm:$0xff]
      %v2334 = vld [vmem:[%s5 + $0x2c8] sm:$0xff]
      %v2335 = vld [vmem:[%s5 + $0x2d0] sm:$0xff]
      %v2336 = vld [vmem:[%s5 + $0x2d8] sm:$0xff]
      %v2337 = vld [vmem:[%s5 + $0x2e0] sm:$0xff]
      %v2338 = vld [vmem:[%s5 + $0x2e8] sm:$0xff]
      %v2339 = vld [vmem:[%s5 + $0x2f0] sm:$0xff]
      %v2340 = vld [vmem:[%s5 + $0x2f8] sm:$0xff]
      %v2341 = vld [vmem:[%s5 + $0x300] sm:$0xff]
      %v2342 = vld [vmem:[%s5 + $0x308] sm:$0xff]
      %v2343 = vld [vmem:[%s5 + $0x310] sm:$0xff]
      %v2344 = vld [vmem:[%s5 + $0x318] sm:$0xff]
      %v2345 = vld [vmem:[%s5 + $0x320] sm:$0xff]
      %v2346 = vld [vmem:[%s5 + $0x328] sm:$0xff]
      %v2347 = vld [vmem:[%s5 + $0x330] sm:$0xff]
      %v2348 = vld [vmem:[%s5 + $0x338] sm:$0xff]
      %v2349 = vld [vmem:[%s5 + $0x340] sm:$0xff]
      %v2350 = vld [vmem:[%s5 + $0x348] sm:$0xff]
      %v2351 = vld [vmem:[%s5 + $0x350] sm:$0xff]
      %v2352 = vld [vmem:[%s5 + $0x358] sm:$0xff]
      %v2353 = vld [vmem:[%s5 + $0x360] sm:$0xff]
      %v2354 = vld [vmem:[%s5 + $0x368] sm:$0xff]
      %v2355 = vld [vmem:[%s5 + $0x370] sm:$0xff]
      %v2356 = vld [vmem:[%s5 + $0x378] sm:$0xff]
      %v2357 = vld [vmem:[%s5 + $0x380] sm:$0xff]
      %v2358 = vld [vmem:[%s5 + $0x388] sm:$0xff]
      %v2359 = vld [vmem:[%s5 + $0x390] sm:$0xff]
      %v2360 = vld [vmem:[%s5 + $0x398] sm:$0xff]
      %v2361 = vld [vmem:[%s5 + $0x3a0] sm:$0xff]
      %v2362 = vld [vmem:[%s5 + $0x3a8] sm:$0xff]
      %v2363 = vld [vmem:[%s5 + $0x3b0] sm:$0xff]
      %v2364 = vld [vmem:[%s5 + $0x3b8] sm:$0xff]
      %v2365 = vld [vmem:[%s5 + $0x3c0] sm:$0xff]
      %v2366 = vld [vmem:[%s5 + $0x3c8] sm:$0xff]
      %v2367 = vld [vmem:[%s5 + $0x3d0] sm:$0xff]
      %v2368 = vld [vmem:[%s5 + $0x3d8] sm:$0xff]
      %v2369 = vld [vmem:[%s5 + $0x3e0] sm:$0xff]
      %v2370 = vld [vmem:[%s5 + $0x3e8] sm:$0xff]
      %v2371 = vld [vmem:[%s5 + $0x3f0] sm:$0xff]
      %v2372 = vld [vmem:[%s5 + $0x3f8] sm:$0xff]
      %v2373 = vld [vmem:[%s5 + $0x400] sm:$0xff]
      %v2374 = vld [vmem:[%s5 + $0x408] sm:$0xff]
      %v2375 = vld [vmem:[%s5 + $0x410] sm:$0xff]
      %v2376 = vld [vmem:[%s5 + $0x418] sm:$0xff]
      %v2377 = vld [vmem:[%s5 + $0x420] sm:$0xff]
      %v2378 = vld [vmem:[%s5 + $0x428] sm:$0xff]
      %v2379 = vld [vmem:[%s5 + $0x430] sm:$0xff]
      %v2380 = vld [vmem:[%s5 + $0x438] sm:$0xff]
      %v2381 = vld [vmem:[%s5 + $0x440] sm:$0xff]
      %v2382 = vld [vmem:[%s5 + $0x448] sm:$0xff]
      %v2383 = vld [vmem:[%s5 + $0x450] sm:$0xff]
      %v2384 = vld [vmem:[%s5 + $0x458] sm:$0xff]
      %v2385 = vld [vmem:[%s5 + $0x460] sm:$0xff]
      %v2386 = vld [vmem:[%s5 + $0x468] sm:$0xff]
      %v2387 = vld [vmem:[%s5 + $0x470] sm:$0xff]
      %v2388 = vld [vmem:[%s5 + $0x478] sm:$0xff]
      %v2389 = vld [vmem:[%s5 + $0x480] sm:$0xff]
      %v2390 = vld [vmem:[%s5 + $0x488] sm:$0xff]
      %v2391 = vld [vmem:[%s5 + $0x490] sm:$0xff]
      %v2392 = vld [vmem:[%s5 + $0x498] sm:$0xff]
      %v2393 = vld [vmem:[%s5 + $0x4a0] sm:$0xff]
      %v2394 = vld [vmem:[%s5 + $0x4a8] sm:$0xff]
      %v2395 = vld [vmem:[%s5 + $0x4b0] sm:$0xff]
      %v2396 = vld [vmem:[%s5 + $0x4b8] sm:$0xff]
      %v2397 = vld [vmem:[%s5 + $0x4c0] sm:$0xff]
      %v2398 = vld [vmem:[%s5 + $0x4c8] sm:$0xff]
      %v2399 = vld [vmem:[%s5 + $0x4d0] sm:$0xff]
      %v2400 = vld [vmem:[%s5 + $0x4d8] sm:$0xff]
      %v2401 = vld [vmem:[%s5 + $0x4e0] sm:$0xff]
      %v2402 = vld [vmem:[%s5 + $0x4e8] sm:$0xff]
      %v2403 = vld [vmem:[%s5 + $0x4f0] sm:$0xff]
      %v2404 = vld [vmem:[%s5 + $0x4f8] sm:$0xff]
      %v2405 = vld [vmem:[%s5 + $0x500] sm:$0xff]
      %v2406 = vld [vmem:[%s5 + $0x508] sm:$0xff]
      %v2407 = vld [vmem:[%s5 + $0x510] sm:$0xff]
      %v2408 = vld [vmem:[%s5 + $0x518] sm:$0xff]
      %v2409 = vld [vmem:[%s5 + $0x520] sm:$0xff]
      %v2410 = vld [vmem:[%s5 + $0x528] sm:$0xff]
      %v2411 = vld [vmem:[%s5 + $0x530] sm:$0xff]
      %v2412 = vld [vmem:[%s5 + $0x538] sm:$0xff]
      %v2413 = vld [vmem:[%s5 + $0x540] sm:$0xff]
      %v2414 = vld [vmem:[%s5 + $0x548] sm:$0xff]
      %v2415 = vld [vmem:[%s5 + $0x550] sm:$0xff]
      %v2416 = vld [vmem:[%s5 + $0x558] sm:$0xff]
      %v2417 = vld [vmem:[%s5 + $0x560] sm:$0xff]
      %v2418 = vld [vmem:[%s5 + $0x568] sm:$0xff]
      %v2419 = vld [vmem:[%s5 + $0x570] sm:$0xff]
      %v2420 = vld [vmem:[%s5 + $0x578] sm:$0xff]
      %v2421 = vld [vmem:[%s5 + $0x580] sm:$0xff]
      %v2422 = vld [vmem:[%s5 + $0x588] sm:$0xff]
      %v2423 = vld [vmem:[%s5 + $0x590] sm:$0xff]
      %v2424 = vld [vmem:[%s5 + $0x598] sm:$0xff]
      %v2425 = vld [vmem:[%s5 + $0x5a0] sm:$0xff]
      %v2426 = vld [vmem:[%s5 + $0x5a8] sm:$0xff]
      %v2427 = vld [vmem:[%s5 + $0x5b0] sm:$0xff]
      %v2428 = vld [vmem:[%s5 + $0x5b8] sm:$0xff]
      %v2429 = vld [vmem:[%s5 + $0x5c0] sm:$0xff]
      %v2430 = vld [vmem:[%s5 + $0x5c8] sm:$0xff]
      %v2431 = vld [vmem:[%s5 + $0x5d0] sm:$0xff]
      %v2432 = vld [vmem:[%s5 + $0x5d8] sm:$0xff]
      %v2433 = vld [vmem:[%s5 + $0x5e0] sm:$0xff]
      %v2434 = vld [vmem:[%s5 + $0x5e8] sm:$0xff]
      %v2435 = vld [vmem:[%s5 + $0x5f0] sm:$0xff]
      %v2436 = vld [vmem:[%s5 + $0x5f8] sm:$0xff]
      %v2437 = vld [vmem:[%s5 + $0x600] sm:$0xff]
      %v2438 = vld [vmem:[%s5 + $0x608] sm:$0xff]
      %v2439 = vld [vmem:[%s5 + $0x610] sm:$0xff]
      %v2440 = vld [vmem:[%s5 + $0x618] sm:$0xff]
      %v2441 = vld [vmem:[%s5 + $0x620] sm:$0xff]
      %v2442 = vld [vmem:[%s5 + $0x628] sm:$0xff]
      %v2443 = vld [vmem:[%s5 + $0x630] sm:$0xff]
      %v2444 = vld [vmem:[%s5 + $0x638] sm:$0xff]
      %v2445 = vld [vmem:[%s5 + $0x640] sm:$0xff]
      %v2446 = vld [vmem:[%s5 + $0x648] sm:$0xff]
      %v2447 = vld [vmem:[%s5 + $0x650] sm:$0xff]
      %v2448 = vld [vmem:[%s5 + $0x658] sm:$0xff]
      %v2449 = vld [vmem:[%s5 + $0x660] sm:$0xff]
      %v2450 = vld [vmem:[%s5 + $0x668] sm:$0xff]
      %v2451 = vld [vmem:[%s5 + $0x670] sm:$0xff]
      %v2452 = vld [vmem:[%s5 + $0x678] sm:$0xff]
      %v2453 = vld [vmem:[%s5 + $0x680] sm:$0xff]
      %v2454 = vld [vmem:[%s5 + $0x688] sm:$0xff]
      %v2455 = vld [vmem:[%s5 + $0x690] sm:$0xff]
      %v2456 = vld [vmem:[%s5 + $0x698] sm:$0xff]
      %v2457 = vld [vmem:[%s5 + $0x6a0] sm:$0xff]
      %v2458 = vld [vmem:[%s5 + $0x6a8] sm:$0xff]
      %v2459 = vld [vmem:[%s5 + $0x6b0] sm:$0xff]
      %v2460 = vld [vmem:[%s5 + $0x6b8] sm:$0xff]
      %v2461 = vld [vmem:[%s5 + $0x6c0] sm:$0xff]
      %v2462 = vld [vmem:[%s5 + $0x6c8] sm:$0xff]
      %v2463 = vld [vmem:[%s5 + $0x6d0] sm:$0xff]
      %v2464 = vld [vmem:[%s5 + $0x6d8] sm:$0xff]
      %v2465 = vld [vmem:[%s5 + $0x6e0] sm:$0xff]
      %v2466 = vld [vmem:[%s5 + $0x6e8] sm:$0xff]
      %v2467 = vld [vmem:[%s5 + $0x6f0] sm:$0xff]
      %v2468 = vld [vmem:[%s5 + $0x6f8] sm:$0xff]
      %v2469 = vld [vmem:[%s5 + $0x700] sm:$0xff]
      %v2470 = vld [vmem:[%s5 + $0x708] sm:$0xff]
      %v2471 = vld [vmem:[%s5 + $0x710] sm:$0xff]
      %v2472 = vld [vmem:[%s5 + $0x718] sm:$0xff]
      %v2473 = vld [vmem:[%s5 + $0x720] sm:$0xff]
      %v2474 = vld [vmem:[%s5 + $0x728] sm:$0xff]
      %v2475 = vld [vmem:[%s5 + $0x730] sm:$0xff]
      %v2476 = vld [vmem:[%s5 + $0x738] sm:$0xff]
      %v2477 = vld [vmem:[%s5 + $0x740] sm:$0xff]
      %v2478 = vld [vmem:[%s5 + $0x748] sm:$0xff]
      %v2479 = vld [vmem:[%s5 + $0x750] sm:$0xff]
      %v2480 = vld [vmem:[%s5 + $0x758] sm:$0xff]
      %v2481 = vld [vmem:[%s5 + $0x760] sm:$0xff]
      %v2482 = vld [vmem:[%s5 + $0x768] sm:$0xff]
      %v2483 = vld [vmem:[%s5 + $0x770] sm:$0xff]
      %v2484 = vld [vmem:[%s5 + $0x778] sm:$0xff]
      %v2485 = vld [vmem:[%s5 + $0x780] sm:$0xff]
      %v2486 = vld [vmem:[%s5 + $0x788] sm:$0xff]
      %v2487 = vld [vmem:[%s5 + $0x790] sm:$0xff]
      %v2488 = vld [vmem:[%s5 + $0x798] sm:$0xff]
      %v2489 = vld [vmem:[%s5 + $0x7a0] sm:$0xff]
      %v2490 = vld [vmem:[%s5 + $0x7a8] sm:$0xff]
      %v2491 = vld [vmem:[%s5 + $0x7b0] sm:$0xff]
      %v2492 = vld [vmem:[%s5 + $0x7b8] sm:$0xff]
      %v2493 = vld [vmem:[%s5 + $0x7c0] sm:$0xff]
      %v2494 = vld [vmem:[%s5 + $0x7c8] sm:$0xff]
      %v2495 = vld [vmem:[%s5 + $0x7d0] sm:$0xff]
      %v2496 = vld [vmem:[%s5 + $0x7d8] sm:$0xff]
      %v2497 = vld [vmem:[%s5 + $0x7e0] sm:$0xff]
      %v2498 = vld [vmem:[%s5 + $0x7e8] sm:$0xff]
      %v2499 = vld [vmem:[%s5 + $0x7f0] sm:$0xff]
      %v2500 = vld [vmem:[%s5 + $0x7f8] sm:$0xff]
      %v2501 = vld [vmem:[%s5 + $0x800] sm:$0xff]
      %v2502 = vld [vmem:[%s5 + $0x808] sm:$0xff]
      %v2503 = vld [vmem:[%s5 + $0x810] sm:$0xff]
      %v2504 = vld [vmem:[%s5 + $0x818] sm:$0xff]
      %v2505 = vld [vmem:[%s5 + $0x820] sm:$0xff]
      %v2506 = vld [vmem:[%s5 + $0x828] sm:$0xff]
      %v2507 = vld [vmem:[%s5 + $0x830] sm:$0xff]
      %v2508 = vld [vmem:[%s5 + $0x838] sm:$0xff]
      %v2509 = vld [vmem:[%s5 + $0x840] sm:$0xff]
      %v2510 = vld [vmem:[%s5 + $0x848] sm:$0xff]
      %v2511 = vld [vmem:[%s5 + $0x850] sm:$0xff]
      %v2512 = vld [vmem:[%s5 + $0x858] sm:$0xff]
      %v2513 = vld [vmem:[%s5 + $0x860] sm:$0xff]
      %v2514 = vld [vmem:[%s5 + $0x868] sm:$0xff]
      %v2515 = vld [vmem:[%s5 + $0x870] sm:$0xff]
      %v2516 = vld [vmem:[%s5 + $0x878] sm:$0xff]
      %v2517 = vld [vmem:[%s5 + $0x880] sm:$0xff]
      %v2518 = vld [vmem:[%s5 + $0x888] sm:$0xff]
      %v2519 = vld [vmem:[%s5 + $0x890] sm:$0xff]
      %v2520 = vld [vmem:[%s5 + $0x898] sm:$0xff]
      %v2521 = vld [vmem:[%s5 + $0x8a0] sm:$0xff]
      %v2522 = vld [vmem:[%s5 + $0x8a8] sm:$0xff]
      %v2523 = vld [vmem:[%s5 + $0x8b0] sm:$0xff]
      %v2524 = vld [vmem:[%s5 + $0x8b8] sm:$0xff]
      %v2525 = vld [vmem:[%s5 + $0x8c0] sm:$0xff]
      %v2526 = vld [vmem:[%s5 + $0x8c8] sm:$0xff]
      %v2527 = vld [vmem:[%s5 + $0x8d0] sm:$0xff]
      %v2528 = vld [vmem:[%s5 + $0x8d8] sm:$0xff]
      %v2529 = vld [vmem:[%s5 + $0x8e0] sm:$0xff]
      %v2530 = vld [vmem:[%s5 + $0x8e8] sm:$0xff]
      %v2531 = vld [vmem:[%s5 + $0x8f0] sm:$0xff]
      %v2532 = vld [vmem:[%s5 + $0x8f8] sm:$0xff]
      %v2533 = vld [vmem:[%s5 + $0x900] sm:$0xff]
      %v2534 = vld [vmem:[%s5 + $0x908] sm:$0xff]
      %v2535 = vld [vmem:[%s5 + $0x910] sm:$0xff]
      %v2536 = vld [vmem:[%s5 + $0x918] sm:$0xff]
      %v2537 = vld [vmem:[%s5 + $0x920] sm:$0xff]
      %v2538 = vld [vmem:[%s5 + $0x928] sm:$0xff]
      %v2539 = vld [vmem:[%s5 + $0x930] sm:$0xff]
      %v2540 = vld [vmem:[%s5 + $0x938] sm:$0xff]
      %v2541 = vld [vmem:[%s5 + $0x940] sm:$0xff]
      %v2542 = vld [vmem:[%s5 + $0x948] sm:$0xff]
      %v2543 = vld [vmem:[%s5 + $0x950] sm:$0xff]
      %v2544 = vld [vmem:[%s5 + $0x958] sm:$0xff]
      %v2545 = vld [vmem:[%s5 + $0x960] sm:$0xff]
      %v2546 = vld [vmem:[%s5 + $0x968] sm:$0xff]
      %v2547 = vld [vmem:[%s5 + $0x970] sm:$0xff]
      %v2548 = vld [vmem:[%s5 + $0x978] sm:$0xff]
      %v2549 = vld [vmem:[%s5 + $0x980] sm:$0xff]
      %v2550 = vld [vmem:[%s5 + $0x988] sm:$0xff]
      %v2551 = vld [vmem:[%s5 + $0x990] sm:$0xff]
      %v2552 = vld [vmem:[%s5 + $0x998] sm:$0xff]
      %v2553 = vld [vmem:[%s5 + $0x9a0] sm:$0xff]
      %v2554 = vld [vmem:[%s5 + $0x9a8] sm:$0xff]
      %v2555 = vld [vmem:[%s5 + $0x9b0] sm:$0xff]
      %v2556 = vld [vmem:[%s5 + $0x9b8] sm:$0xff]
      %v2557 = vld [vmem:[%s5 + $0x9c0] sm:$0xff]
      %v2558 = vld [vmem:[%s5 + $0x9c8] sm:$0xff]
      %v2559 = vld [vmem:[%s5 + $0x9d0] sm:$0xff]
      %v2560 = vld [vmem:[%s5 + $0x9d8] sm:$0xff]
      %v2561 = vld [vmem:[%s5 + $0x9e0] sm:$0xff]
      %v2562 = vld [vmem:[%s5 + $0x9e8] sm:$0xff]
      %v2563 = vld [vmem:[%s5 + $0x9f0] sm:$0xff]
      %v2564 = vld [vmem:[%s5 + $0x9f8] sm:$0xff]
      %v2565 = vld [vmem:[%s5 + $0xa00] sm:$0xff]
      %v2566 = vld [vmem:[%s5 + $0xa08] sm:$0xff]
      %v2567 = vld [vmem:[%s5 + $0xa10] sm:$0xff]
      %v2568 = vld [vmem:[%s5 + $0xa18] sm:$0xff]
      %v2569 = vld [vmem:[%s5 + $0xa20] sm:$0xff]
      %v2570 = vld [vmem:[%s5 + $0xa28] sm:$0xff]
      %v2571 = vld [vmem:[%s5 + $0xa30] sm:$0xff]
      %v2572 = vld [vmem:[%s5 + $0xa38] sm:$0xff]
      %v2573 = vld [vmem:[%s5 + $0xa40] sm:$0xff]
      %v2574 = vld [vmem:[%s5 + $0xa48] sm:$0xff]
      %v2575 = vld [vmem:[%s5 + $0xa50] sm:$0xff]
      %v2576 = vld [vmem:[%s5 + $0xa58] sm:$0xff]
      %v2577 = vld [vmem:[%s5 + $0xa60] sm:$0xff]
      %v2578 = vld [vmem:[%s5 + $0xa68] sm:$0xff]
      %v2579 = vld [vmem:[%s5 + $0xa70] sm:$0xff]
      %v2580 = vld [vmem:[%s5 + $0xa78] sm:$0xff]
      %v2581 = vld [vmem:[%s5 + $0xa80] sm:$0xff]
      %v2582 = vld [vmem:[%s5 + $0xa88] sm:$0xff]
      %v2583 = vld [vmem:[%s5 + $0xa90] sm:$0xff]
      %v2584 = vld [vmem:[%s5 + $0xa98] sm:$0xff]
      %v2585 = vld [vmem:[%s5 + $0xaa0] sm:$0xff]
      %v2586 = vld [vmem:[%s5 + $0xaa8] sm:$0xff]
      %v2587 = vld [vmem:[%s5 + $0xab0] sm:$0xff]
      %v2588 = vld [vmem:[%s5 + $0xab8] sm:$0xff]
      %v2589 = vld [vmem:[%s5 + $0xac0] sm:$0xff]
      %v2590 = vld [vmem:[%s5 + $0xac8] sm:$0xff]
      %v2591 = vld [vmem:[%s5 + $0xad0] sm:$0xff]
      %v2592 = vld [vmem:[%s5 + $0xad8] sm:$0xff]
      %v2593 = vld [vmem:[%s5 + $0xae0] sm:$0xff]
      %v2594 = vld [vmem:[%s5 + $0xae8] sm:$0xff]
      %v2595 = vld [vmem:[%s5 + $0xaf0] sm:$0xff]
      %v2596 = vld [vmem:[%s5 + $0xaf8] sm:$0xff]
      %v2597 = vld [vmem:[%s5 + $0xb00] sm:$0xff]
      %v2598 = vld [vmem:[%s5 + $0xb08] sm:$0xff]
      %v2599 = vld [vmem:[%s5 + $0xb10] sm:$0xff]
      %v2600 = vld [vmem:[%s5 + $0xb18] sm:$0xff]
      %v2601 = vld [vmem:[%s5 + $0xb20] sm:$0xff]
      %v2602 = vld [vmem:[%s5 + $0xb28] sm:$0xff]
      %v2603 = vld [vmem:[%s5 + $0xb30] sm:$0xff]
      %v2604 = vld [vmem:[%s5 + $0xb38] sm:$0xff]
      %v2605 = vld [vmem:[%s5 + $0xb40] sm:$0xff]
      %v2606 = vld [vmem:[%s5 + $0xb48] sm:$0xff]
      %v2607 = vld [vmem:[%s5 + $0xb50] sm:$0xff]
      %v2608 = vld [vmem:[%s5 + $0xb58] sm:$0xff]
      %v2609 = vld [vmem:[%s5 + $0xb60] sm:$0xff]
      %v2610 = vld [vmem:[%s5 + $0xb68] sm:$0xff]
      %v2611 = vld [vmem:[%s5 + $0xb70] sm:$0xff]
      %v2612 = vld [vmem:[%s5 + $0xb78] sm:$0xff]
      %v2613 = vld [vmem:[%s5 + $0xb80] sm:$0xff]
      %v2614 = vld [vmem:[%s5 + $0xb88] sm:$0xff]
      %v2615 = vld [vmem:[%s5 + $0xb90] sm:$0xff]
      %v2616 = vld [vmem:[%s5 + $0xb98] sm:$0xff]
      %v2617 = vld [vmem:[%s5 + $0xba0] sm:$0xff]
      %v2618 = vld [vmem:[%s5 + $0xba8] sm:$0xff]
      %v2619 = vld [vmem:[%s5 + $0xbb0] sm:$0xff]
      %v2620 = vld [vmem:[%s5 + $0xbb8] sm:$0xff]
      %v2621 = vld [vmem:[%s5 + $0xbc0] sm:$0xff]
      %v2622 = vld [vmem:[%s5 + $0xbc8] sm:$0xff]
      %v2623 = vld [vmem:[%s5 + $0xbd0] sm:$0xff]
      %v2624 = vld [vmem:[%s5 + $0xbd8] sm:$0xff]
      %v2625 = vld [vmem:[%s5 + $0xbe0] sm:$0xff]
      %v2626 = vld [vmem:[%s5 + $0xbe8] sm:$0xff]
      %v2627 = vld [vmem:[%s5 + $0xbf0] sm:$0xff]
      %v2628 = vld [vmem:[%s5 + $0xbf8] sm:$0xff]
      %v2629 = vld [vmem:[%s5 + $0xc00] sm:$0xff]
      %v2630 = vld [vmem:[%s5 + $0xc08] sm:$0xff]
      %v2631 = vld [vmem:[%s5 + $0xc10] sm:$0xff]
      %v2632 = vld [vmem:[%s5 + $0xc18] sm:$0xff]
      %v2633 = vld [vmem:[%s5 + $0xc20] sm:$0xff]
      %v2634 = vld [vmem:[%s5 + $0xc28] sm:$0xff]
      %v2635 = vld [vmem:[%s5 + $0xc30] sm:$0xff]
      %v2636 = vld [vmem:[%s5 + $0xc38] sm:$0xff]
      %v2637 = vld [vmem:[%s5 + $0xc40] sm:$0xff]
      %v2638 = vld [vmem:[%s5 + $0xc48] sm:$0xff]
      %v2639 = vld [vmem:[%s5 + $0xc50] sm:$0xff]
      %v2640 = vld [vmem:[%s5 + $0xc58] sm:$0xff]
      %v2641 = vld [vmem:[%s5 + $0xc60] sm:$0xff]
      %v2642 = vld [vmem:[%s5 + $0xc68] sm:$0xff]
      %v2643 = vld [vmem:[%s5 + $0xc70] sm:$0xff]
      %v2644 = vld [vmem:[%s5 + $0xc78] sm:$0xff]
      %v2645 = vld [vmem:[%s5 + $0xc80] sm:$0xff]
      %v2646 = vld [vmem:[%s5 + $0xc88] sm:$0xff]
      %v2647 = vld [vmem:[%s5 + $0xc90] sm:$0xff]
      %v2648 = vld [vmem:[%s5 + $0xc98] sm:$0xff]
      %v2649 = vld [vmem:[%s5 + $0xca0] sm:$0xff]
      %v2650 = vld [vmem:[%s5 + $0xca8] sm:$0xff]
      %v2651 = vld [vmem:[%s5 + $0xcb0] sm:$0xff]
      %v2652 = vld [vmem:[%s5 + $0xcb8] sm:$0xff]
      %v2653 = vld [vmem:[%s5 + $0xcc0] sm:$0xff]
      %v2654 = vld [vmem:[%s5 + $0xcc8] sm:$0xff]
      %v2655 = vld [vmem:[%s5 + $0xcd0] sm:$0xff]
      %v2656 = vld [vmem:[%s5 + $0xcd8] sm:$0xff]
      %v2657 = vld [vmem:[%s5 + $0xce0] sm:$0xff]
      %v2658 = vld [vmem:[%s5 + $0xce8] sm:$0xff]
      %v2659 = vld [vmem:[%s5 + $0xcf0] sm:$0xff]
      %v2660 = vld [vmem:[%s5 + $0xcf8] sm:$0xff]
      %v2661 = vld [vmem:[%s5 + $0xd00] sm:$0xff]
      %v2662 = vld [vmem:[%s5 + $0xd08] sm:$0xff]
      %v2663 = vld [vmem:[%s5 + $0xd10] sm:$0xff]
      %v2664 = vld [vmem:[%s5 + $0xd18] sm:$0xff]
      %v2665 = vld [vmem:[%s5 + $0xd20] sm:$0xff]
      %v2666 = vld [vmem:[%s5 + $0xd28] sm:$0xff]
      %v2667 = vld [vmem:[%s5 + $0xd30] sm:$0xff]
      %v2668 = vld [vmem:[%s5 + $0xd38] sm:$0xff]
      %v2669 = vld [vmem:[%s5 + $0xd40] sm:$0xff]
      %v2670 = vld [vmem:[%s5 + $0xd48] sm:$0xff]
      %v2671 = vld [vmem:[%s5 + $0xd50] sm:$0xff]
      %v2672 = vld [vmem:[%s5 + $0xd58] sm:$0xff]
      %v2673 = vld [vmem:[%s5 + $0xd60] sm:$0xff]
      %v2674 = vld [vmem:[%s5 + $0xd68] sm:$0xff]
      %v2675 = vld [vmem:[%s5 + $0xd70] sm:$0xff]
      %v2676 = vld [vmem:[%s5 + $0xd78] sm:$0xff]
      %v2677 = vld [vmem:[%s5 + $0xd80] sm:$0xff]
      %v2678 = vld [vmem:[%s5 + $0xd88] sm:$0xff]
      %v2679 = vld [vmem:[%s5 + $0xd90] sm:$0xff]
      %v2680 = vld [vmem:[%s5 + $0xd98] sm:$0xff]
      %v2681 = vld [vmem:[%s5 + $0xda0] sm:$0xff]
      %v2682 = vld [vmem:[%s5 + $0xda8] sm:$0xff]
      %v2683 = vld [vmem:[%s5 + $0xdb0] sm:$0xff]
      %v2684 = vld [vmem:[%s5 + $0xdb8] sm:$0xff]
      %v2685 = vld [vmem:[%s5 + $0xdc0] sm:$0xff]
      %v2686 = vld [vmem:[%s5 + $0xdc8] sm:$0xff]
      %v2687 = vld [vmem:[%s5 + $0xdd0] sm:$0xff]
      %v2688 = vld [vmem:[%s5 + $0xdd8] sm:$0xff]
      %v2689 = vld [vmem:[%s5 + $0xde0] sm:$0xff]
      %v2690 = vld [vmem:[%s5 + $0xde8] sm:$0xff]
      %v2691 = vld [vmem:[%s5 + $0xdf0] sm:$0xff]
      %v2692 = vld [vmem:[%s5 + $0xdf8] sm:$0xff]
      %v2693 = vld [vmem:[%s5 + $0xe00] sm:$0xff]
      %v2694 = vld [vmem:[%s5 + $0xe08] sm:$0xff]
      %v2695 = vld [vmem:[%s5 + $0xe10] sm:$0xff]
      %v2696 = vld [vmem:[%s5 + $0xe18] sm:$0xff]
      %v2697 = vld [vmem:[%s5 + $0xe20] sm:$0xff]
      %v2698 = vld [vmem:[%s5 + $0xe28] sm:$0xff]
      %v2699 = vld [vmem:[%s5 + $0xe30] sm:$0xff]
      %v2700 = vld [vmem:[%s5 + $0xe38] sm:$0xff]
      %v2701 = vld [vmem:[%s5 + $0xe40] sm:$0xff]
      %v2702 = vld [vmem:[%s5 + $0xe48] sm:$0xff]
      %v2703 = vld [vmem:[%s5 + $0xe50] sm:$0xff]
      %v2704 = vld [vmem:[%s5 + $0xe58] sm:$0xff]
      %v2705 = vld [vmem:[%s5 + $0xe60] sm:$0xff]
      %v2706 = vld [vmem:[%s5 + $0xe68] sm:$0xff]
      %v2707 = vld [vmem:[%s5 + $0xe70] sm:$0xff]
      %v2708 = vld [vmem:[%s5 + $0xe78] sm:$0xff]
      %v2709 = vld [vmem:[%s5 + $0xe80] sm:$0xff]
      %v2710 = vld [vmem:[%s5 + $0xe88] sm:$0xff]
      %v2711 = vld [vmem:[%s5 + $0xe90] sm:$0xff]
      %v2712 = vld [vmem:[%s5 + $0xe98] sm:$0xff]
      %v2713 = vld [vmem:[%s5 + $0xea0] sm:$0xff]
      %v2714 = vld [vmem:[%s5 + $0xea8] sm:$0xff]
      %v2715 = vld [vmem:[%s5 + $0xeb0] sm:$0xff]
      %v2716 = vld [vmem:[%s5 + $0xeb8] sm:$0xff]
      %v2717 = vld [vmem:[%s5 + $0xec0] sm:$0xff]
      %v2718 = vld [vmem:[%s5 + $0xec8] sm:$0xff]
      %v2719 = vld [vmem:[%s5 + $0xed0] sm:$0xff]
      %v2720 = vld [vmem:[%s5 + $0xed8] sm:$0xff]
      %v2721 = vld [vmem:[%s5 + $0xee0] sm:$0xff]
      %v2722 = vld [vmem:[%s5 + $0xee8] sm:$0xff]
      %v2723 = vld [vmem:[%s5 + $0xef0] sm:$0xff]
      %v2724 = vld [vmem:[%s5 + $0xef8] sm:$0xff]
      %v2725 = vld [vmem:[%s5 + $0xf00] sm:$0xff]
      %v2726 = vld [vmem:[%s5 + $0xf08] sm:$0xff]
      %v2727 = vld [vmem:[%s5 + $0xf10] sm:$0xff]
      %v2728 = vld [vmem:[%s5 + $0xf18] sm:$0xff]
      %v2729 = vld [vmem:[%s5 + $0xf20] sm:$0xff]
      %v2730 = vld [vmem:[%s5 + $0xf28] sm:$0xff]
      %v2731 = vld [vmem:[%s5 + $0xf30] sm:$0xff]
      %v2732 = vld [vmem:[%s5 + $0xf38] sm:$0xff]
      %v2733 = vld [vmem:[%s5 + $0xf40] sm:$0xff]
      %v2734 = vld [vmem:[%s5 + $0xf48] sm:$0xff]
      %v2735 = vld [vmem:[%s5 + $0xf50] sm:$0xff]
      %v2736 = vld [vmem:[%s5 + $0xf58] sm:$0xff]
      %v2737 = vld [vmem:[%s5 + $0xf60] sm:$0xff]
      %v2738 = vld [vmem:[%s5 + $0xf68] sm:$0xff]
      %v2739 = vld [vmem:[%s5 + $0xf70] sm:$0xff]
      %v2740 = vld [vmem:[%s5 + $0xf78] sm:$0xff]
      %v2741 = vld [vmem:[%s5 + $0xf80] sm:$0xff]
      %v2742 = vld [vmem:[%s5 + $0xf88] sm:$0xff]
      %v2743 = vld [vmem:[%s5 + $0xf90] sm:$0xff]
      %v2744 = vld [vmem:[%s5 + $0xf98] sm:$0xff]
      %v2745 = vld [vmem:[%s5 + $0xfa0] sm:$0xff]
      %v2746 = vld [vmem:[%s5 + $0xfa8] sm:$0xff]
      %v2747 = vld [vmem:[%s5 + $0xfb0] sm:$0xff]
      %v2748 = vld [vmem:[%s5 + $0xfb8] sm:$0xff]
      %v2749 = vld [vmem:[%s5 + $0xfc0] sm:$0xff]
      %v2750 = vld [vmem:[%s5 + $0xfc8] sm:$0xff]
      %v2751 = vld [vmem:[%s5 + $0xfd0] sm:$0xff]
      %v2752 = vld [vmem:[%s5 + $0xfd8] sm:$0xff]
      %v2753 = vld [vmem:[%s5 + $0xfe0] sm:$0xff]
      %v2754 = vld [vmem:[%s5 + $0xfe8] sm:$0xff]
      %v2755 = vld [vmem:[%s5 + $0xff0] sm:$0xff]
      %v2756 = vld [vmem:[%s5 + $0xff8] sm:$0xff]
      %v2757 = vld [vmem:[%s6] sm:$0xf]
      %v2759 = vlaneseq
      %v2760 = vshrl.u32 %v2759, 7
      %v2761 = vsub.s32 0, %v2760
      %v2762 = vrot.slane %v2757, %v2761
      %v2763 = vlaneseq
      %v2764 = vshrl.u32 %v2763, 7
      %v2765 = vsub.s32 1, %v2764
      %v2766 = vrot.slane %v2757, %v2765
      %v2767 = vlaneseq
      %v2768 = vshrl.u32 %v2767, 7
      %v2769 = vsub.s32 2, %v2768
      %v2770 = vrot.slane %v2757, %v2769
      %v2771 = vlaneseq
      %v2772 = vshrl.u32 %v2771, 7
      %v2773 = vsub.s32 3, %v2772
      %v2774 = vrot.slane %v2757, %v2773
      %2779 = vmatprep.subr.mxu0 %v2306
      %2780 = vmatpush1.msra.mxu0 %v2305
      %2781 = vmatprep.subr.mxu0 %v2302
      %2782 = vmatpush1.msra.mxu0 %v2301
      %2783 = vmatprep.subr.mxu0 %v2298
      %2784 = vmatpush1.msra.mxu0 %v2297
      %2785 = vmatprep.subr.mxu0 %v2294
      %2786 = vmatpush1.msra.mxu0 %v2293
      %2787 = vmatprep.subr.mxu0 %v2290
      %2788 = vmatpush1.msra.mxu0 %v2289
      %2789 = vmatprep.subr.mxu0 %v2286
      %2790 = vmatpush1.msra.mxu0 %v2285
      %2791 = vmatprep.subr.mxu0 %v2282
      %2792 = vmatpush1.msra.mxu0 %v2281
      %2793 = vmatprep.subr.mxu0 %v2278
      %2794 = vmatpush1.msra.mxu0 %v2277
      %2795 = vmatprep.subr.mxu0 %v2274
      %2796 = vmatpush1.msra.mxu0 %v2273
      %2797 = vmatprep.subr.mxu0 %v2270
      %2798 = vmatpush1.msra.mxu0 %v2269
      %2799 = vmatprep.subr.mxu0 %v2266
      %2800 = vmatpush1.msra.mxu0 %v2265
      %2801 = vmatprep.subr.mxu0 %v2262
      %2802 = vmatpush1.msra.mxu0 %v2261
      %2803 = vmatprep.subr.mxu0 %v2258
      %2804 = vmatpush1.msra.mxu0 %v2257
      %2805 = vmatprep.subr.mxu0 %v2254
      %2806 = vmatpush1.msra.mxu0 %v2253
      %2807 = vmatprep.subr.mxu0 %v2250
      %2808 = vmatpush1.msra.mxu0 %v2249
      %2809 = vmatprep.subr.mxu0 %v2246
      %2810 = vmatpush1.msra.mxu0 %v2245
      %2811 = vmatprep.subr.mxu0 %v2370
      %2812 = vmatpush2.msra.mxu0 %v2369
      %2813 = vmatprep.subr.mxu0 %v2366
      %2814 = vmatpush2.msra.mxu0 %v2365
      %2815 = vmatprep.subr.mxu0 %v2362
      %2816 = vmatpush2.msra.mxu0 %v2361
      %2817 = vmatprep.subr.mxu0 %v2358
      %2818 = vmatpush2.msra.mxu0 %v2357
      %2819 = vmatprep.subr.mxu0 %v2354
      %2820 = vmatpush2.msra.mxu0 %v2353
      %2821 = vmatprep.subr.mxu0 %v2350
      %2822 = vmatpush2.msra.mxu0 %v2349
      %2823 = vmatprep.subr.mxu0 %v2346
      %2824 = vmatpush2.msra.mxu0 %v2345
      %2825 = vmatprep.subr.mxu0 %v2342
      %2826 = vmatpush2.msra.mxu0 %v2341
      %2827 = vmatprep.subr.mxu0 %v2338
      %2828 = vmatpush2.msra.mxu0 %v2337
      %2829 = vmatprep.subr.mxu0 %v2334
      %2830 = vmatpush2.msra.mxu0 %v2333
      %2831 = vmatprep.subr.mxu0 %v2330
      %2832 = vmatpush2.msra.mxu0 %v2329
      %2833 = vmatprep.subr.mxu0 %v2326
      %2834 = vmatpush2.msra.mxu0 %v2325
      %2835 = vmatprep.subr.mxu0 %v2322
      %2836 = vmatpush2.msra.mxu0 %v2321
      %2837 = vmatprep.subr.mxu0 %v2318
      %2838 = vmatpush2.msra.mxu0 %v2317
      %2839 = vmatprep.subr.mxu0 %v2314
      %2840 = vmatpush2.msra.mxu0 %v2313
      %2841 = vmatprep.subr.mxu0 %v2310
      %2842 = vmatpush2.msra.mxu0 %v2309
      %2843 = vmatprep.mubr.f32.mxu0 %v2238
      %2844 = vmatmul.mubr.f32.gmra.mxu0 %v2237
      %v2845 = vpop.f32.mrf.mxu0
      %v2846 = vadd.f32 %v2762, %v2845
      %v2847 = vpop.f32.mrf.mxu0
      %v2848 = vadd.f32 %v2766, %v2847
      %2849 = vdwg.mxu0
      %2850 = vmatprep.subr.mxu0 %v2434
      %2851 = vmatpush1.msra.mxu0 %v2433
      %2852 = vmatprep.subr.mxu0 %v2430
      %2853 = vmatpush1.msra.mxu0 %v2429
      %2854 = vmatprep.subr.mxu0 %v2426
      %2855 = vmatpush1.msra.mxu0 %v2425
      %2856 = vmatprep.subr.mxu0 %v2422
      %2857 = vmatpush1.msra.mxu0 %v2421
      %2858 = vmatprep.subr.mxu0 %v2418
      %2859 = vmatpush1.msra.mxu0 %v2417
      %2860 = vmatprep.subr.mxu0 %v2414
      %2861 = vmatpush1.msra.mxu0 %v2413
      %2862 = vmatprep.subr.mxu0 %v2410
      %2863 = vmatpush1.msra.mxu0 %v2409
      %2864 = vmatprep.subr.mxu0 %v2406
      %2865 = vmatpush1.msra.mxu0 %v2405
      %2866 = vmatprep.subr.mxu0 %v2402
      %2867 = vmatpush1.msra.mxu0 %v2401
      %2868 = vmatprep.subr.mxu0 %v2398
      %2869 = vmatpush1.msra.mxu0 %v2397
      %2870 = vmatprep.subr.mxu0 %v2394
      %2871 = vmatpush1.msra.mxu0 %v2393
      %2872 = vmatprep.subr.mxu0 %v2390
      %2873 = vmatpush1.msra.mxu0 %v2389
      %2874 = vmatprep.subr.mxu0 %v2386
      %2875 = vmatpush1.msra.mxu0 %v2385
      %2876 = vmatprep.subr.mxu0 %v2382
      %2877 = vmatpush1.msra.mxu0 %v2381
      %2878 = vmatprep.subr.mxu0 %v2378
      %2879 = vmatpush1.msra.mxu0 %v2377
      %2880 = vmatprep.subr.mxu0 %v2374
      %2881 = vmatpush1.msra.mxu0 %v2373
      %2882 = vmatprep.subr.mxu0 %v2498
      %2883 = vmatpush2.msra.mxu0 %v2497
      %2884 = vmatprep.subr.mxu0 %v2494
      %2885 = vmatpush2.msra.mxu0 %v2493
      %2886 = vmatprep.subr.mxu0 %v2490
      %2887 = vmatpush2.msra.mxu0 %v2489
      %2888 = vmatprep.subr.mxu0 %v2486
      %2889 = vmatpush2.msra.mxu0 %v2485
      %2890 = vmatprep.subr.mxu0 %v2482
      %2891 = vmatpush2.msra.mxu0 %v2481
      %2892 = vmatprep.subr.mxu0 %v2478
      %2893 = vmatpush2.msra.mxu0 %v2477
      %2894 = vmatprep.subr.mxu0 %v2474
      %2895 = vmatpush2.msra.mxu0 %v2473
      %2896 = vmatprep.subr.mxu0 %v2470
      %2897 = vmatpush2.msra.mxu0 %v2469
      %2898 = vmatprep.subr.mxu0 %v2466
      %2899 = vmatpush2.msra.mxu0 %v2465
      %2900 = vmatprep.subr.mxu0 %v2462
      %2901 = vmatpush2.msra.mxu0 %v2461
      %2902 = vmatprep.subr.mxu0 %v2458
      %2903 = vmatpush2.msra.mxu0 %v2457
      %2904 = vmatprep.subr.mxu0 %v2454
      %2905 = vmatpush2.msra.mxu0 %v2453
      %2906 = vmatprep.subr.mxu0 %v2450
      %2907 = vmatpush2.msra.mxu0 %v2449
      %2908 = vmatprep.subr.mxu0 %v2446
      %2909 = vmatpush2.msra.mxu0 %v2445
      %2910 = vmatprep.subr.mxu0 %v2442
      %2911 = vmatpush2.msra.mxu0 %v2441
      %2912 = vmatprep.subr.mxu0 %v2438
      %2913 = vmatpush2.msra.mxu0 %v2437
      %2914 = vmatprep.mubr.f32.mxu0 %v2240
      %2915 = vmatmul.mubr.f32.gmra.mxu0 %v2239
      %v2916 = vpop.f32.mrf.mxu0
      %v2917 = vadd.f32 %v2846, %v2916
      %v2918 = vpop.f32.mrf.mxu0
      %v2919 = vadd.f32 %v2848, %v2918
      %2920 = vdwg.mxu0
      %2921 = vmatprep.subr.mxu0 %v2562
      %2922 = vmatpush1.msra.mxu0 %v2561
      %2923 = vmatprep.subr.mxu0 %v2558
      %2924 = vmatpush1.msra.mxu0 %v2557
      %2925 = vmatprep.subr.mxu0 %v2554
      %2926 = vmatpush1.msra.mxu0 %v2553
      %2927 = vmatprep.subr.mxu0 %v2550
      %2928 = vmatpush1.msra.mxu0 %v2549
      %2929 = vmatprep.subr.mxu0 %v2546
      %2930 = vmatpush1.msra.mxu0 %v2545
      %2931 = vmatprep.subr.mxu0 %v2542
      %2932 = vmatpush1.msra.mxu0 %v2541
      %2933 = vmatprep.subr.mxu0 %v2538
      %2934 = vmatpush1.msra.mxu0 %v2537
      %2935 = vmatprep.subr.mxu0 %v2534
      %2936 = vmatpush1.msra.mxu0 %v2533
      %2937 = vmatprep.subr.mxu0 %v2530
      %2938 = vmatpush1.msra.mxu0 %v2529
      %2939 = vmatprep.subr.mxu0 %v2526
      %2940 = vmatpush1.msra.mxu0 %v2525
      %2941 = vmatprep.subr.mxu0 %v2522
      %2942 = vmatpush1.msra.mxu0 %v2521
      %2943 = vmatprep.subr.mxu0 %v2518
      %2944 = vmatpush1.msra.mxu0 %v2517
      %2945 = vmatprep.subr.mxu0 %v2514
      %2946 = vmatpush1.msra.mxu0 %v2513
      %2947 = vmatprep.subr.mxu0 %v2510
      %2948 = vmatpush1.msra.mxu0 %v2509
      %2949 = vmatprep.subr.mxu0 %v2506
      %2950 = vmatpush1.msra.mxu0 %v2505
      %2951 = vmatprep.subr.mxu0 %v2502
      %2952 = vmatpush1.msra.mxu0 %v2501
      %2953 = vmatprep.subr.mxu0 %v2626
      %2954 = vmatpush2.msra.mxu0 %v2625
      %2955 = vmatprep.subr.mxu0 %v2622
      %2956 = vmatpush2.msra.mxu0 %v2621
      %2957 = vmatprep.subr.mxu0 %v2618
      %2958 = vmatpush2.msra.mxu0 %v2617
      %2959 = vmatprep.subr.mxu0 %v2614
      %2960 = vmatpush2.msra.mxu0 %v2613
      %2961 = vmatprep.subr.mxu0 %v2610
      %2962 = vmatpush2.msra.mxu0 %v2609
      %2963 = vmatprep.subr.mxu0 %v2606
      %2964 = vmatpush2.msra.mxu0 %v2605
      %2965 = vmatprep.subr.mxu0 %v2602
      %2966 = vmatpush2.msra.mxu0 %v2601
      %2967 = vmatprep.subr.mxu0 %v2598
      %2968 = vmatpush2.msra.mxu0 %v2597
      %2969 = vmatprep.subr.mxu0 %v2594
      %2970 = vmatpush2.msra.mxu0 %v2593
      %2971 = vmatprep.subr.mxu0 %v2590
      %2972 = vmatpush2.msra.mxu0 %v2589
      %2973 = vmatprep.subr.mxu0 %v2586
      %2974 = vmatpush2.msra.mxu0 %v2585
      %2975 = vmatprep.subr.mxu0 %v2582
      %2976 = vmatpush2.msra.mxu0 %v2581
      %2977 = vmatprep.subr.mxu0 %v2578
      %2978 = vmatpush2.msra.mxu0 %v2577
      %2979 = vmatprep.subr.mxu0 %v2574
      %2980 = vmatpush2.msra.mxu0 %v2573
      %2981 = vmatprep.subr.mxu0 %v2570
      %2982 = vmatpush2.msra.mxu0 %v2569
      %2983 = vmatprep.subr.mxu0 %v2566
      %2984 = vmatpush2.msra.mxu0 %v2565
      %2985 = vmatprep.mubr.f32.mxu0 %v2242
      %2986 = vmatmul.mubr.f32.gmra.mxu0 %v2241
      %v2987 = vpop.f32.mrf.mxu0
      %v2988 = vadd.f32 %v2917, %v2987
      %v2989 = vpop.f32.mrf.mxu0
      %v2990 = vadd.f32 %v2919, %v2989
      %2991 = vdwg.mxu0
      %2992 = vmatprep.subr.mxu0 %v2690
      %2993 = vmatpush1.msra.mxu0 %v2689
      %2994 = vmatprep.subr.mxu0 %v2686
      %2995 = vmatpush1.msra.mxu0 %v2685
      %2996 = vmatprep.subr.mxu0 %v2682
      %2997 = vmatpush1.msra.mxu0 %v2681
      %2998 = vmatprep.subr.mxu0 %v2678
      %2999 = vmatpush1.msra.mxu0 %v2677
      %3000 = vmatprep.subr.mxu0 %v2674
      %3001 = vmatpush1.msra.mxu0 %v2673
      %3002 = vmatprep.subr.mxu0 %v2670
      %3003 = vmatpush1.msra.mxu0 %v2669
      %3004 = vmatprep.subr.mxu0 %v2666
      %3005 = vmatpush1.msra.mxu0 %v2665
      %3006 = vmatprep.subr.mxu0 %v2662
      %3007 = vmatpush1.msra.mxu0 %v2661
      %3008 = vmatprep.subr.mxu0 %v2658
      %3009 = vmatpush1.msra.mxu0 %v2657
      %3010 = vmatprep.subr.mxu0 %v2654
      %3011 = vmatpush1.msra.mxu0 %v2653
      %3012 = vmatprep.subr.mxu0 %v2650
      %3013 = vmatpush1.msra.mxu0 %v2649
      %3014 = vmatprep.subr.mxu0 %v2646
      %3015 = vmatpush1.msra.mxu0 %v2645
      %3016 = vmatprep.subr.mxu0 %v2642
      %3017 = vmatpush1.msra.mxu0 %v2641
      %3018 = vmatprep.subr.mxu0 %v2638
      %3019 = vmatpush1.msra.mxu0 %v2637
      %3020 = vmatprep.subr.mxu0 %v2634
      %3021 = vmatpush1.msra.mxu0 %v2633
      %3022 = vmatprep.subr.mxu0 %v2630
      %3023 = vmatpush1.msra.mxu0 %v2629
      %3024 = vmatprep.subr.mxu0 %v2754
      %3025 = vmatpush2.msra.mxu0 %v2753
      %3026 = vmatprep.subr.mxu0 %v2750
      %3027 = vmatpush2.msra.mxu0 %v2749
      %3028 = vmatprep.subr.mxu0 %v2746
      %3029 = vmatpush2.msra.mxu0 %v2745
      %3030 = vmatprep.subr.mxu0 %v2742
      %3031 = vmatpush2.msra.mxu0 %v2741
      %3032 = vmatprep.subr.mxu0 %v2738
      %3033 = vmatpush2.msra.mxu0 %v2737
      %3034 = vmatprep.subr.mxu0 %v2734
      %3035 = vmatpush2.msra.mxu0 %v2733
      %3036 = vmatprep.subr.mxu0 %v2730
      %3037 = vmatpush2.msra.mxu0 %v2729
      %3038 = vmatprep.subr.mxu0 %v2726
      %3039 = vmatpush2.msra.mxu0 %v2725
      %3040 = vmatprep.subr.mxu0 %v2722
      %3041 = vmatpush2.msra.mxu0 %v2721
      %3042 = vmatprep.subr.mxu0 %v2718
      %3043 = vmatpush2.msra.mxu0 %v2717
      %3044 = vmatprep.subr.mxu0 %v2714
      %3045 = vmatpush2.msra.mxu0 %v2713
      %3046 = vmatprep.subr.mxu0 %v2710
      %3047 = vmatpush2.msra.mxu0 %v2709
      %3048 = vmatprep.subr.mxu0 %v2706
      %3049 = vmatpush2.msra.mxu0 %v2705
      %3050 = vmatprep.subr.mxu0 %v2702
      %3051 = vmatpush2.msra.mxu0 %v2701
      %3052 = vmatprep.subr.mxu0 %v2698
      %3053 = vmatpush2.msra.mxu0 %v2697
      %3054 = vmatprep.subr.mxu0 %v2694
      %3055 = vmatpush2.msra.mxu0 %v2693
      %3056 = vmatprep.mubr.f32.mxu0 %v2244
      %3057 = vmatmul.mubr.f32.gmra.mxu0 %v2243
      %v3058 = vpop.f32.mrf.mxu0
      %v3059 = vadd.f32 %v2988, %v3058
      %v3060 = vpop.f32.mrf.mxu0
      %v3061 = vadd.f32 %v2990, %v3060
      %3062 = vdwg.mxu0
      %3063 = vmatprep.subr.mxu0 %v2308
      %3064 = vmatpush1.msra.mxu0 %v2307
      %3065 = vmatprep.subr.mxu0 %v2304
      %3066 = vmatpush1.msra.mxu0 %v2303
      %3067 = vmatprep.subr.mxu0 %v2300
      %3068 = vmatpush1.msra.mxu0 %v2299
      %3069 = vmatprep.subr.mxu0 %v2296
      %3070 = vmatpush1.msra.mxu0 %v2295
      %3071 = vmatprep.subr.mxu0 %v2292
      %3072 = vmatpush1.msra.mxu0 %v2291
      %3073 = vmatprep.subr.mxu0 %v2288
      %3074 = vmatpush1.msra.mxu0 %v2287
      %3075 = vmatprep.subr.mxu0 %v2284
      %3076 = vmatpush1.msra.mxu0 %v2283
      %3077 = vmatprep.subr.mxu0 %v2280
      %3078 = vmatpush1.msra.mxu0 %v2279
      %3079 = vmatprep.subr.mxu0 %v2276
      %3080 = vmatpush1.msra.mxu0 %v2275
      %3081 = vmatprep.subr.mxu0 %v2272
      %3082 = vmatpush1.msra.mxu0 %v2271
      %3083 = vmatprep.subr.mxu0 %v2268
      %3084 = vmatpush1.msra.mxu0 %v2267
      %3085 = vmatprep.subr.mxu0 %v2264
      %3086 = vmatpush1.msra.mxu0 %v2263
      %3087 = vmatprep.subr.mxu0 %v2260
      %3088 = vmatpush1.msra.mxu0 %v2259
      %3089 = vmatprep.subr.mxu0 %v2256
      %3090 = vmatpush1.msra.mxu0 %v2255
      %3091 = vmatprep.subr.mxu0 %v2252
      %3092 = vmatpush1.msra.mxu0 %v2251
      %3093 = vmatprep.subr.mxu0 %v2248
      %3094 = vmatpush1.msra.mxu0 %v2247
      %3095 = vmatprep.subr.mxu0 %v2372
      %3096 = vmatpush2.msra.mxu0 %v2371
      %3097 = vmatprep.subr.mxu0 %v2368
      %3098 = vmatpush2.msra.mxu0 %v2367
      %3099 = vmatprep.subr.mxu0 %v2364
      %3100 = vmatpush2.msra.mxu0 %v2363
      %3101 = vmatprep.subr.mxu0 %v2360
      %3102 = vmatpush2.msra.mxu0 %v2359
      %3103 = vmatprep.subr.mxu0 %v2356
      %3104 = vmatpush2.msra.mxu0 %v2355
      %3105 = vmatprep.subr.mxu0 %v2352
      %3106 = vmatpush2.msra.mxu0 %v2351
      %3107 = vmatprep.subr.mxu0 %v2348
      %3108 = vmatpush2.msra.mxu0 %v2347
      %3109 = vmatprep.subr.mxu0 %v2344
      %3110 = vmatpush2.msra.mxu0 %v2343
      %3111 = vmatprep.subr.mxu0 %v2340
      %3112 = vmatpush2.msra.mxu0 %v2339
      %3113 = vmatprep.subr.mxu0 %v2336
      %3114 = vmatpush2.msra.mxu0 %v2335
      %3115 = vmatprep.subr.mxu0 %v2332
      %3116 = vmatpush2.msra.mxu0 %v2331
      %3117 = vmatprep.subr.mxu0 %v2328
      %3118 = vmatpush2.msra.mxu0 %v2327
      %3119 = vmatprep.subr.mxu0 %v2324
      %3120 = vmatpush2.msra.mxu0 %v2323
      %3121 = vmatprep.subr.mxu0 %v2320
      %3122 = vmatpush2.msra.mxu0 %v2319
      %3123 = vmatprep.subr.mxu0 %v2316
      %3124 = vmatpush2.msra.mxu0 %v2315
      %3125 = vmatprep.subr.mxu0 %v2312
      %3126 = vmatpush2.msra.mxu0 %v2311
      %3127 = vmatprep.mubr.f32.mxu0 %v2238
      %3128 = vmatmul.mubr.f32.gmra.mxu0 %v2237
      %v3129 = vpop.f32.mrf.mxu0
      %v3130 = vadd.f32 %v2770, %v3129
      %v3131 = vpop.f32.mrf.mxu0
      %v3132 = vadd.f32 %v2774, %v3131
      %3133 = vdwg.mxu0
      %3134 = vmatprep.subr.mxu0 %v2436
      %3135 = vmatpush1.msra.mxu0 %v2435
      %3136 = vmatprep.subr.mxu0 %v2432
      %3137 = vmatpush1.msra.mxu0 %v2431
      %3138 = vmatprep.subr.mxu0 %v2428
      %3139 = vmatpush1.msra.mxu0 %v2427
      %3140 = vmatprep.subr.mxu0 %v2424
      %3141 = vmatpush1.msra.mxu0 %v2423
      %3142 = vmatprep.subr.mxu0 %v2420
      %3143 = vmatpush1.msra.mxu0 %v2419
      %3144 = vmatprep.subr.mxu0 %v2416
      %3145 = vmatpush1.msra.mxu0 %v2415
      %3146 = vmatprep.subr.mxu0 %v2412
      %3147 = vmatpush1.msra.mxu0 %v2411
      %3148 = vmatprep.subr.mxu0 %v2408
      %3149 = vmatpush1.msra.mxu0 %v2407
      %3150 = vmatprep.subr.mxu0 %v2404
      %3151 = vmatpush1.msra.mxu0 %v2403
      %3152 = vmatprep.subr.mxu0 %v2400
      %3153 = vmatpush1.msra.mxu0 %v2399
      %3154 = vmatprep.subr.mxu0 %v2396
      %3155 = vmatpush1.msra.mxu0 %v2395
      %3156 = vmatprep.subr.mxu0 %v2392
      %3157 = vmatpush1.msra.mxu0 %v2391
      %3158 = vmatprep.subr.mxu0 %v2388
      %3159 = vmatpush1.msra.mxu0 %v2387
      %3160 = vmatprep.subr.mxu0 %v2384
      %3161 = vmatpush1.msra.mxu0 %v2383
      %3162 = vmatprep.subr.mxu0 %v2380
      %3163 = vmatpush1.msra.mxu0 %v2379
      %3164 = vmatprep.subr.mxu0 %v2376
      %3165 = vmatpush1.msra.mxu0 %v2375
      %3166 = vmatprep.subr.mxu0 %v2500
      %3167 = vmatpush2.msra.mxu0 %v2499
      %3168 = vmatprep.subr.mxu0 %v2496
      %3169 = vmatpush2.msra.mxu0 %v2495
      %3170 = vmatprep.subr.mxu0 %v2492
      %3171 = vmatpush2.msra.mxu0 %v2491
      %3172 = vmatprep.subr.mxu0 %v2488
      %3173 = vmatpush2.msra.mxu0 %v2487
      %3174 = vmatprep.subr.mxu0 %v2484
      %3175 = vmatpush2.msra.mxu0 %v2483
      %3176 = vmatprep.subr.mxu0 %v2480
      %3177 = vmatpush2.msra.mxu0 %v2479
      %3178 = vmatprep.subr.mxu0 %v2476
      %3179 = vmatpush2.msra.mxu0 %v2475
      %3180 = vmatprep.subr.mxu0 %v2472
      %3181 = vmatpush2.msra.mxu0 %v2471
      %3182 = vmatprep.subr.mxu0 %v2468
      %3183 = vmatpush2.msra.mxu0 %v2467
      %3184 = vmatprep.subr.mxu0 %v2464
      %3185 = vmatpush2.msra.mxu0 %v2463
      %3186 = vmatprep.subr.mxu0 %v2460
      %3187 = vmatpush2.msra.mxu0 %v2459
      %3188 = vmatprep.subr.mxu0 %v2456
      %3189 = vmatpush2.msra.mxu0 %v2455
      %3190 = vmatprep.subr.mxu0 %v2452
      %3191 = vmatpush2.msra.mxu0 %v2451
      %3192 = vmatprep.subr.mxu0 %v2448
      %3193 = vmatpush2.msra.mxu0 %v2447
      %3194 = vmatprep.subr.mxu0 %v2444
      %3195 = vmatpush2.msra.mxu0 %v2443
      %3196 = vmatprep.subr.mxu0 %v2440
      %3197 = vmatpush2.msra.mxu0 %v2439
      %3198 = vmatprep.mubr.f32.mxu0 %v2240
      %3199 = vmatmul.mubr.f32.gmra.mxu0 %v2239
      %v3200 = vpop.f32.mrf.mxu0
      %v3201 = vadd.f32 %v3130, %v3200
      %v3202 = vpop.f32.mrf.mxu0
      %v3203 = vadd.f32 %v3132, %v3202
      %3204 = vdwg.mxu0
      %3205 = vmatprep.subr.mxu0 %v2564
      %3206 = vmatpush1.msra.mxu0 %v2563
      %3207 = vmatprep.subr.mxu0 %v2560
      %3208 = vmatpush1.msra.mxu0 %v2559
      %3209 = vmatprep.subr.mxu0 %v2556
      %3210 = vmatpush1.msra.mxu0 %v2555
      %3211 = vmatprep.subr.mxu0 %v2552
      %3212 = vmatpush1.msra.mxu0 %v2551
      %3213 = vmatprep.subr.mxu0 %v2548
      %3214 = vmatpush1.msra.mxu0 %v2547
      %3215 = vmatprep.subr.mxu0 %v2544
      %3216 = vmatpush1.msra.mxu0 %v2543
      %3217 = vmatprep.subr.mxu0 %v2540
      %3218 = vmatpush1.msra.mxu0 %v2539
      %3219 = vmatprep.subr.mxu0 %v2536
      %3220 = vmatpush1.msra.mxu0 %v2535
      %3221 = vmatprep.subr.mxu0 %v2532
      %3222 = vmatpush1.msra.mxu0 %v2531
      %3223 = vmatprep.subr.mxu0 %v2528
      %3224 = vmatpush1.msra.mxu0 %v2527
      %3225 = vmatprep.subr.mxu0 %v2524
      %3226 = vmatpush1.msra.mxu0 %v2523
      %3227 = vmatprep.subr.mxu0 %v2520
      %3228 = vmatpush1.msra.mxu0 %v2519
      %3229 = vmatprep.subr.mxu0 %v2516
      %3230 = vmatpush1.msra.mxu0 %v2515
      %3231 = vmatprep.subr.mxu0 %v2512
      %3232 = vmatpush1.msra.mxu0 %v2511
      %3233 = vmatprep.subr.mxu0 %v2508
      %3234 = vmatpush1.msra.mxu0 %v2507
      %3235 = vmatprep.subr.mxu0 %v2504
      %3236 = vmatpush1.msra.mxu0 %v2503
      %3237 = vmatprep.subr.mxu0 %v2628
      %3238 = vmatpush2.msra.mxu0 %v2627
      %3239 = vmatprep.subr.mxu0 %v2624
      %3240 = vmatpush2.msra.mxu0 %v2623
      %3241 = vmatprep.subr.mxu0 %v2620
      %3242 = vmatpush2.msra.mxu0 %v2619
      %3243 = vmatprep.subr.mxu0 %v2616
      %3244 = vmatpush2.msra.mxu0 %v2615
      %3245 = vmatprep.subr.mxu0 %v2612
      %3246 = vmatpush2.msra.mxu0 %v2611
      %3247 = vmatprep.subr.mxu0 %v2608
      %3248 = vmatpush2.msra.mxu0 %v2607
      %3249 = vmatprep.subr.mxu0 %v2604
      %3250 = vmatpush2.msra.mxu0 %v2603
      %3251 = vmatprep.subr.mxu0 %v2600
      %3252 = vmatpush2.msra.mxu0 %v2599
      %3253 = vmatprep.subr.mxu0 %v2596
      %3254 = vmatpush2.msra.mxu0 %v2595
      %3255 = vmatprep.subr.mxu0 %v2592
      %3256 = vmatpush2.msra.mxu0 %v2591
      %3257 = vmatprep.subr.mxu0 %v2588
      %3258 = vmatpush2.msra.mxu0 %v2587
      %3259 = vmatprep.subr.mxu0 %v2584
      %3260 = vmatpush2.msra.mxu0 %v2583
      %3261 = vmatprep.subr.mxu0 %v2580
      %3262 = vmatpush2.msra.mxu0 %v2579
      %3263 = vmatprep.subr.mxu0 %v2576
      %3264 = vmatpush2.msra.mxu0 %v2575
      %3265 = vmatprep.subr.mxu0 %v2572
      %3266 = vmatpush2.msra.mxu0 %v2571
      %3267 = vmatprep.subr.mxu0 %v2568
      %3268 = vmatpush2.msra.mxu0 %v2567
      %3269 = vmatprep.mubr.f32.mxu0 %v2242
      %3270 = vmatmul.mubr.f32.gmra.mxu0 %v2241
      %v3271 = vpop.f32.mrf.mxu0
      %v3272 = vadd.f32 %v3201, %v3271
      %v3273 = vpop.f32.mrf.mxu0
      %v3274 = vadd.f32 %v3203, %v3273
      %3275 = vdwg.mxu0
      %3276 = vmatprep.subr.mxu0 %v2692
      %3277 = vmatpush1.msra.mxu0 %v2691
      %3278 = vmatprep.subr.mxu0 %v2688
      %3279 = vmatpush1.msra.mxu0 %v2687
      %3280 = vmatprep.subr.mxu0 %v2684
      %3281 = vmatpush1.msra.mxu0 %v2683
      %3282 = vmatprep.subr.mxu0 %v2680
      %3283 = vmatpush1.msra.mxu0 %v2679
      %3284 = vmatprep.subr.mxu0 %v2676
      %3285 = vmatpush1.msra.mxu0 %v2675
      %3286 = vmatprep.subr.mxu0 %v2672
      %3287 = vmatpush1.msra.mxu0 %v2671
      %3288 = vmatprep.subr.mxu0 %v2668
      %3289 = vmatpush1.msra.mxu0 %v2667
      %3290 = vmatprep.subr.mxu0 %v2664
      %3291 = vmatpush1.msra.mxu0 %v2663
      %3292 = vmatprep.subr.mxu0 %v2660
      %3293 = vmatpush1.msra.mxu0 %v2659
      %3294 = vmatprep.subr.mxu0 %v2656
      %3295 = vmatpush1.msra.mxu0 %v2655
      %3296 = vmatprep.subr.mxu0 %v2652
      %3297 = vmatpush1.msra.mxu0 %v2651
      %3298 = vmatprep.subr.mxu0 %v2648
      %3299 = vmatpush1.msra.mxu0 %v2647
      %3300 = vmatprep.subr.mxu0 %v2644
      %3301 = vmatpush1.msra.mxu0 %v2643
      %3302 = vmatprep.subr.mxu0 %v2640
      %3303 = vmatpush1.msra.mxu0 %v2639
      %3304 = vmatprep.subr.mxu0 %v2636
      %3305 = vmatpush1.msra.mxu0 %v2635
      %3306 = vmatprep.subr.mxu0 %v2632
      %3307 = vmatpush1.msra.mxu0 %v2631
      %3308 = vmatprep.subr.mxu0 %v2756
      %3309 = vmatpush2.msra.mxu0 %v2755
      %3310 = vmatprep.subr.mxu0 %v2752
      %3311 = vmatpush2.msra.mxu0 %v2751
      %3312 = vmatprep.subr.mxu0 %v2748
      %3313 = vmatpush2.msra.mxu0 %v2747
      %3314 = vmatprep.subr.mxu0 %v2744
      %3315 = vmatpush2.msra.mxu0 %v2743
      %3316 = vmatprep.subr.mxu0 %v2740
      %3317 = vmatpush2.msra.mxu0 %v2739
      %3318 = vmatprep.subr.mxu0 %v2736
      %3319 = vmatpush2.msra.mxu0 %v2735
      %3320 = vmatprep.subr.mxu0 %v2732
      %3321 = vmatpush2.msra.mxu0 %v2731
      %3322 = vmatprep.subr.mxu0 %v2728
      %3323 = vmatpush2.msra.mxu0 %v2727
      %3324 = vmatprep.subr.mxu0 %v2724
      %3325 = vmatpush2.msra.mxu0 %v2723
      %3326 = vmatprep.subr.mxu0 %v2720
      %3327 = vmatpush2.msra.mxu0 %v2719
      %3328 = vmatprep.subr.mxu0 %v2716
      %3329 = vmatpush2.msra.mxu0 %v2715
      %3330 = vmatprep.subr.mxu0 %v2712
      %3331 = vmatpush2.msra.mxu0 %v2711
      %3332 = vmatprep.subr.mxu0 %v2708
      %3333 = vmatpush2.msra.mxu0 %v2707
      %3334 = vmatprep.subr.mxu0 %v2704
      %3335 = vmatpush2.msra.mxu0 %v2703
      %3336 = vmatprep.subr.mxu0 %v2700
      %3337 = vmatpush2.msra.mxu0 %v2699
      %3338 = vmatprep.subr.mxu0 %v2696
      %3339 = vmatpush2.msra.mxu0 %v2695
      %3340 = vmatprep.mubr.f32.mxu0 %v2244
      %3341 = vmatmul.mubr.f32.gmra.mxu0 %v2243
      %v3342 = vpop.f32.mrf.mxu0
      %v3343 = vadd.f32 %v3272, %v3342
      %v3344 = vpop.f32.mrf.mxu0
      %v3345 = vadd.f32 %v3274, %v3344
      %3346 = vdwg.mxu0
      %v3347 = vmax.f32 %v3059, 0.0
      %v3348 = vmax.f32 %v3061, 0.0
      %v3349 = vmax.f32 %v3343, 0.0
      %v3350 = vmax.f32 %v3345, 0.0
      %v3351 = vld [vmem:[%s7] sm:$0xff]
      %v3352 = vld [vmem:[%s7 + $0x8] sm:$0xff]
      %v3353 = vld [vmem:[%s7 + $0x10] sm:$0xff]
      %v3354 = vld [vmem:[%s7 + $0x18] sm:$0xff]
      %v3355 = vld [vmem:[%s7 + $0x20] sm:$0xff]
      %v3356 = vld [vmem:[%s7 + $0x28] sm:$0xff]
      %v3357 = vld [vmem:[%s7 + $0x30] sm:$0xff]
      %v3358 = vld [vmem:[%s7 + $0x38] sm:$0xff]
      %v3359 = vld [vmem:[%s7 + $0x40] sm:$0xff]
      %v3360 = vld [vmem:[%s7 + $0x48] sm:$0xff]
      %v3361 = vld [vmem:[%s7 + $0x50] sm:$0xff]
      %v3362 = vld [vmem:[%s7 + $0x58] sm:$0xff]
      %v3363 = vld [vmem:[%s7 + $0x60] sm:$0xff]
      %v3364 = vld [vmem:[%s7 + $0x68] sm:$0xff]
      %v3365 = vld [vmem:[%s7 + $0x70] sm:$0xff]
      %v3366 = vld [vmem:[%s7 + $0x78] sm:$0xff]
      %v3367 = vld [vmem:[%s7 + $0x80] sm:$0xff]
      %v3368 = vld [vmem:[%s7 + $0x88] sm:$0xff]
      %v3369 = vld [vmem:[%s7 + $0x90] sm:$0xff]
      %v3370 = vld [vmem:[%s7 + $0x98] sm:$0xff]
      %v3371 = vld [vmem:[%s7 + $0xa0] sm:$0xff]
      %v3372 = vld [vmem:[%s7 + $0xa8] sm:$0xff]
      %v3373 = vld [vmem:[%s7 + $0xb0] sm:$0xff]
      %v3374 = vld [vmem:[%s7 + $0xb8] sm:$0xff]
      %v3375 = vld [vmem:[%s7 + $0xc0] sm:$0xff]
      %v3376 = vld [vmem:[%s7 + $0xc8] sm:$0xff]
      %v3377 = vld [vmem:[%s7 + $0xd0] sm:$0xff]
      %v3378 = vld [vmem:[%s7 + $0xd8] sm:$0xff]
      %v3379 = vld [vmem:[%s7 + $0xe0] sm:$0xff]
      %v3380 = vld [vmem:[%s7 + $0xe8] sm:$0xff]
      %v3381 = vld [vmem:[%s7 + $0xf0] sm:$0xff]
      %v3382 = vld [vmem:[%s7 + $0xf8] sm:$0xff]
      %v3383 = vld [vmem:[%s7 + $0x100] sm:$0xff]
      %v3384 = vld [vmem:[%s7 + $0x108] sm:$0xff]
      %v3385 = vld [vmem:[%s7 + $0x110] sm:$0xff]
      %v3386 = vld [vmem:[%s7 + $0x118] sm:$0xff]
      %v3387 = vld [vmem:[%s7 + $0x120] sm:$0xff]
      %v3388 = vld [vmem:[%s7 + $0x128] sm:$0xff]
      %v3389 = vld [vmem:[%s7 + $0x130] sm:$0xff]
      %v3390 = vld [vmem:[%s7 + $0x138] sm:$0xff]
      %v3391 = vld [vmem:[%s7 + $0x140] sm:$0xff]
      %v3392 = vld [vmem:[%s7 + $0x148] sm:$0xff]
      %v3393 = vld [vmem:[%s7 + $0x150] sm:$0xff]
      %v3394 = vld [vmem:[%s7 + $0x158] sm:$0xff]
      %v3395 = vld [vmem:[%s7 + $0x160] sm:$0xff]
      %v3396 = vld [vmem:[%s7 + $0x168] sm:$0xff]
      %v3397 = vld [vmem:[%s7 + $0x170] sm:$0xff]
      %v3398 = vld [vmem:[%s7 + $0x178] sm:$0xff]
      %v3399 = vld [vmem:[%s7 + $0x180] sm:$0xff]
      %v3400 = vld [vmem:[%s7 + $0x188] sm:$0xff]
      %v3401 = vld [vmem:[%s7 + $0x190] sm:$0xff]
      %v3402 = vld [vmem:[%s7 + $0x198] sm:$0xff]
      %v3403 = vld [vmem:[%s7 + $0x1a0] sm:$0xff]
      %v3404 = vld [vmem:[%s7 + $0x1a8] sm:$0xff]
      %v3405 = vld [vmem:[%s7 + $0x1b0] sm:$0xff]
      %v3406 = vld [vmem:[%s7 + $0x1b8] sm:$0xff]
      %v3407 = vld [vmem:[%s7 + $0x1c0] sm:$0xff]
      %v3408 = vld [vmem:[%s7 + $0x1c8] sm:$0xff]
      %v3409 = vld [vmem:[%s7 + $0x1d0] sm:$0xff]
      %v3410 = vld [vmem:[%s7 + $0x1d8] sm:$0xff]
      %v3411 = vld [vmem:[%s7 + $0x1e0] sm:$0xff]
      %v3412 = vld [vmem:[%s7 + $0x1e8] sm:$0xff]
      %v3413 = vld [vmem:[%s7 + $0x1f0] sm:$0xff]
      %v3414 = vld [vmem:[%s7 + $0x1f8] sm:$0xff]
      %v3415 = vld [vmem:[%s8] sm:$0x1]
      %3416 = vmatprep.subr.mxu0 0.0
      %3417 = vmatpush1.msra.mxu0 %v3366
      %3418 = vmatprep.subr.mxu0 0.0
      %3419 = vmatpush1.msra.mxu0 %v3365
      %3420 = vmatprep.subr.mxu0 0.0
      %3421 = vmatpush1.msra.mxu0 %v3364
      %3422 = vmatprep.subr.mxu0 0.0
      %3423 = vmatpush1.msra.mxu0 %v3363
      %3424 = vmatprep.subr.mxu0 0.0
      %3425 = vmatpush1.msra.mxu0 %v3362
      %3426 = vmatprep.subr.mxu0 0.0
      %3427 = vmatpush1.msra.mxu0 %v3361
      %3428 = vmatprep.subr.mxu0 0.0
      %3429 = vmatpush1.msra.mxu0 %v3360
      %3430 = vmatprep.subr.mxu0 0.0
      %3431 = vmatpush1.msra.mxu0 %v3359
      %3432 = vmatprep.subr.mxu0 0.0
      %3433 = vmatpush1.msra.mxu0 %v3358
      %3434 = vmatprep.subr.mxu0 0.0
      %3435 = vmatpush1.msra.mxu0 %v3357
      %3436 = vmatprep.subr.mxu0 0.0
      %3437 = vmatpush1.msra.mxu0 %v3356
      %3438 = vmatprep.subr.mxu0 0.0
      %3439 = vmatpush1.msra.mxu0 %v3355
      %3440 = vmatprep.subr.mxu0 0.0
      %3441 = vmatpush1.msra.mxu0 %v3354
      %3442 = vmatprep.subr.mxu0 0.0
      %3443 = vmatpush1.msra.mxu0 %v3353
      %3444 = vmatprep.subr.mxu0 0.0
      %3445 = vmatpush1.msra.mxu0 %v3352
      %3446 = vmatprep.subr.mxu0 0.0
      %3447 = vmatpush1.msra.mxu0 %v3351
      %3448 = vmatprep.subr.mxu0 0.0
      %3449 = vmatpush2.msra.mxu0 %v3382
      %3450 = vmatprep.subr.mxu0 0.0
      %3451 = vmatpush2.msra.mxu0 %v3381
      %3452 = vmatprep.subr.mxu0 0.0
      %3453 = vmatpush2.msra.mxu0 %v3380
      %3454 = vmatprep.subr.mxu0 0.0
      %3455 = vmatpush2.msra.mxu0 %v3379
      %3456 = vmatprep.subr.mxu0 0.0
      %3457 = vmatpush2.msra.mxu0 %v3378
      %3458 = vmatprep.subr.mxu0 0.0
      %3459 = vmatpush2.msra.mxu0 %v3377
      %3460 = vmatprep.subr.mxu0 0.0
      %3461 = vmatpush2.msra.mxu0 %v3376
      %3462 = vmatprep.subr.mxu0 0.0
      %3463 = vmatpush2.msra.mxu0 %v3375
      %3464 = vmatprep.subr.mxu0 0.0
      %3465 = vmatpush2.msra.mxu0 %v3374
      %3466 = vmatprep.subr.mxu0 0.0
      %3467 = vmatpush2.msra.mxu0 %v3373
      %3468 = vmatprep.subr.mxu0 0.0
      %3469 = vmatpush2.msra.mxu0 %v3372
      %3470 = vmatprep.subr.mxu0 0.0
      %3471 = vmatpush2.msra.mxu0 %v3371
      %3472 = vmatprep.subr.mxu0 0.0
      %3473 = vmatpush2.msra.mxu0 %v3370
      %3474 = vmatprep.subr.mxu0 0.0
      %3475 = vmatpush2.msra.mxu0 %v3369
      %3476 = vmatprep.subr.mxu0 0.0
      %3477 = vmatpush2.msra.mxu0 %v3368
      %3478 = vmatprep.subr.mxu0 0.0
      %3479 = vmatpush2.msra.mxu0 %v3367
      %3480 = vmatprep.mubr.f32.mxu0 %v3348
      %3481 = vmatmul.mubr.f32.gmra.mxu0 %v3347
      %v3482 = vpop.f32.mrf.mxu0
      %v3483 = vadd.f32 %v3415, %v3482
      %v3484 = vpop.f32.mrf.mxu0
      %3485 = vdwg.mxu0
      %3486 = vmatprep.subr.mxu0 0.0
      %3487 = vmatpush1.msra.mxu0 %v3398
      %3488 = vmatprep.subr.mxu0 0.0
      %3489 = vmatpush1.msra.mxu0 %v3397
      %3490 = vmatprep.subr.mxu0 0.0
      %3491 = vmatpush1.msra.mxu0 %v3396
      %3492 = vmatprep.subr.mxu0 0.0
      %3493 = vmatpush1.msra.mxu0 %v3395
      %3494 = vmatprep.subr.mxu0 0.0
      %3495 = vmatpush1.msra.mxu0 %v3394
      %3496 = vmatprep.subr.mxu0 0.0
      %3497 = vmatpush1.msra.mxu0 %v3393
      %3498 = vmatprep.subr.mxu0 0.0
      %3499 = vmatpush1.msra.mxu0 %v3392
      %3500 = vmatprep.subr.mxu0 0.0
      %3501 = vmatpush1.msra.mxu0 %v3391
      %3502 = vmatprep.subr.mxu0 0.0
      %3503 = vmatpush1.msra.mxu0 %v3390
      %3504 = vmatprep.subr.mxu0 0.0
      %3505 = vmatpush1.msra.mxu0 %v3389
      %3506 = vmatprep.subr.mxu0 0.0
      %3507 = vmatpush1.msra.mxu0 %v3388
      %3508 = vmatprep.subr.mxu0 0.0
      %3509 = vmatpush1.msra.mxu0 %v3387
      %3510 = vmatprep.subr.mxu0 0.0
      %3511 = vmatpush1.msra.mxu0 %v3386
      %3512 = vmatprep.subr.mxu0 0.0
      %3513 = vmatpush1.msra.mxu0 %v3385
      %3514 = vmatprep.subr.mxu0 0.0
      %3515 = vmatpush1.msra.mxu0 %v3384
      %3516 = vmatprep.subr.mxu0 0.0
      %3517 = vmatpush1.msra.mxu0 %v3383
      %3518 = vmatprep.subr.mxu0 0.0
      %3519 = vmatpush2.msra.mxu0 %v3414
      %3520 = vmatprep.subr.mxu0 0.0
      %3521 = vmatpush2.msra.mxu0 %v3413
      %3522 = vmatprep.subr.mxu0 0.0
      %3523 = vmatpush2.msra.mxu0 %v3412
      %3524 = vmatprep.subr.mxu0 0.0
      %3525 = vmatpush2.msra.mxu0 %v3411
      %3526 = vmatprep.subr.mxu0 0.0
      %3527 = vmatpush2.msra.mxu0 %v3410
      %3528 = vmatprep.subr.mxu0 0.0
      %3529 = vmatpush2.msra.mxu0 %v3409
      %3530 = vmatprep.subr.mxu0 0.0
      %3531 = vmatpush2.msra.mxu0 %v3408
      %3532 = vmatprep.subr.mxu0 0.0
      %3533 = vmatpush2.msra.mxu0 %v3407
      %3534 = vmatprep.subr.mxu0 0.0
      %3535 = vmatpush2.msra.mxu0 %v3406
      %3536 = vmatprep.subr.mxu0 0.0
      %3537 = vmatpush2.msra.mxu0 %v3405
      %3538 = vmatprep.subr.mxu0 0.0
      %3539 = vmatpush2.msra.mxu0 %v3404
      %3540 = vmatprep.subr.mxu0 0.0
      %3541 = vmatpush2.msra.mxu0 %v3403
      %3542 = vmatprep.subr.mxu0 0.0
      %3543 = vmatpush2.msra.mxu0 %v3402
      %3544 = vmatprep.subr.mxu0 0.0
      %3545 = vmatpush2.msra.mxu0 %v3401
      %3546 = vmatprep.subr.mxu0 0.0
      %3547 = vmatpush2.msra.mxu0 %v3400
      %3548 = vmatprep.subr.mxu0 0.0
      %3549 = vmatpush2.msra.mxu0 %v3399
      %3550 = vmatprep.mubr.f32.mxu0 %v3350
      %3551 = vmatmul.mubr.f32.gmra.mxu0 %v3349
      %v3552 = vpop.f32.mrf.mxu0
      %v3553 = vadd.f32 %v3483, %v3552
      %v3554 = vpop.f32.mrf.mxu0
      %3555 = vdwg.mxu0
      %vm3556 = vcmask 1040384
      %v3557 = vsel %vm3556, %v3553, -inf
      %3558 = vmax.xlane.f32.xlu0 %v3557
      %v3559 = vpop.xlane.xlu0 %3558
      %v3560 = vsub.f32 %v3553, %v3559
      %v3561 = vmul.f32 %v3560, 1.442695
      %v3562 = vpow.pop %v3561
      %v3563 = vsel %vm3556, %v3562, 0.0
      %3564 = vadd.xlane.f32.xlu0 %v3563
      %v3565 = vpop.xlane.xlu0 %3564
      %v3566 = vrcp.pop %v3565
      %v3567 = vmul.f32 %v3562, %v3566
      %v3568 = vlaneseq
      %v3569 = vshrl.u32 %v3568, 7
      %v3570 = vsub.s32 0, %v3569
      %v3571 = vrot.slane %v3567, %v3570
      %3572 = vst [vmem:[%s330] sm:$0xff] %v3571
      %p3573 = scmp.lt.s32.totalorder %s20, 3
      %s3574 = scalar_select %p3573, %s20, 3
      %s3575 = smul.addr %s3574, 8
      %s3576 = scalar_lea.vmem %s9, %s3575
      // Predicated region
      $region57: #{lenet_forward.1} parent=55 // pred_check
        %p3577 = pneg %p232
      $region58: #{lenet_forward.1} parent=55 // pred_check_branch
        %3579 = sbr.rel (%p3577) target = $region60
      $region59: #{lenet_forward.1} parent=55 // pred_region
        _
      $region60: #{lenet_forward.1} parent=55 // pred_fallthru
        _
    $region56: #{lenet_forward.1} parent=5 // pred_fallthru
      _
    %p3580 = scmp.le.s32.totalorder 2, %s15
    // Predicated region
    $region61: #{lenet_forward.1} parent=5 // pred_check
      %p3581 = pneg %p3580
    $region62: #{lenet_forward.1} parent=5 // pred_check_branch
      %3583 = sbr.rel (%p3581) target = $region64
    $region63: #{lenet_forward.1} parent=5 // pred_region
      %s3584 = ssub.s32 %s15, 2
      // Predicated region
      $region65: #{lenet_forward.1} parent=63 // pred_check
        %p3585 = pneg %p238
      $region66: #{lenet_forward.1} parent=63 // pred_check_branch
        %3587 = sbr.rel (%p3585) target = $region68
      $region67: #{lenet_forward.1} parent=63 // pred_region
        %p3588 = scmp.lt.s32.totalorder %s21, 3
        %s3589 = scalar_select %p3588, %s21, 3
        %s3590 = smul.addr %s3589, 8
        %s3591 = scalar_lea.vmem %s9, %s3590
      $region68: #{lenet_forward.1} parent=63 // pred_fallthru
        _
    $region64: #{lenet_forward.1} parent=5 // pred_fallthru
      _
  $region6: #{lenet_forward.1} parent=0 // loop_footer
    %s19 = sadd.s32 1, %s15
  $region7: #{lenet_forward.1} parent=0 // loop_footer_branch
    %14 = sbr.rel target = $region3
  $region8: #{lenet_forward.1} parent=0 // loop_exit
    _

</llo_original>
